<compile_context>
chip_gen: v7x
topology: tpu7x:2x2x1
jax: 0.10.0
libtpu: 0.0.40
codegen_flags: <defaults>
</compile_context>

<pallas_src>
import jax
import jax.numpy as jnp
from jax import lax
from jax.experimental import pallas as pl
from jax.experimental.pallas import tpu as pltpu

# ---- model hyper-parameters (small, consistent with the module) -------------
L = 8              # sequence length (tokens per sentence)
V = 50             # vocab size
E = 32             # embedding dim (Conv1d in_channels)
W = 3              # conv window (kernel_size)
C = 64             # conv out channels
H = 32             # out_size[-1] (semantic width == combination_layer in_features)
L_OUT = L - W + 1  # valid conv output length
WV = W * V         # fused (window, vocab) contraction axis of the gather+conv matmul

# ---- kernel tiling -----------------------------------------------------------
TILE_B = 128            # sentence pairs per grid step (lane-dense score tile)
R2 = 2 * TILE_B         # sentences per grid step (a-columns then b-columns)
ROWS_CONV = L_OUT * R2  # conv columns per grid step, t-major: col = t*R2 + sentence


def _siames_kernel(cols_ref, wconv_ref, bconv_ref, wfc_ref, bfc_ref,
                   wcomb_ref, bcomb_ref, out_ref):
    """One batch tile: TILE_B pairs == R2 sentences, both branches fused."""
    cols = cols_ref[0]                                        # (W, ROWS_CONV) int32

    # --- embedding gather + Conv1d fused into ONE MXU matmul -------------------
    # onehot[k, r] = 1  iff  k == w*V + token_id(r, w) for some window position w,
    # so  conv = (emb @ conv_w)^T @ onehot  ==  Conv1d(valid) of the embedded seq.
    k_iota = lax.broadcasted_iota(jnp.int32, (WV, ROWS_CONV), 0)
    onehot = jnp.zeros((WV, ROWS_CONV), jnp.float32)
    for w in range(W):                                        # W static -> unrolled
        onehot += (k_iota == cols[w:w + 1, :]).astype(jnp.float32)

    conv = jnp.dot(wconv_ref[...], onehot,
                   preferred_element_type=jnp.float32)        # (C, ROWS_CONV)
    conv = jnp.tanh(conv + bconv_ref[...])                    # bias (C,1) broadcast

    # --- max-pool over time -----------------------------------------------------
    # Columns are t-major (col = t*R2 + sentence): each time step is a contiguous,
    # 128-aligned lane block -> plain VPU maxima, no relayout / strided access.
    pooled = conv[:, 0:R2]
    for t in range(1, L_OUT):
        pooled = jnp.maximum(pooled, conv[:, t * R2:(t + 1) * R2])   # (C, R2)

    # --- semantic Linear + tanh ---------------------------------------------------
    sem = jnp.tanh(jnp.dot(wfc_ref[...], pooled,
                           preferred_element_type=jnp.float32)
                   + bfc_ref[...])                            # (H, R2)

    # --- Siames head: sigmoid(Linear(vec_a * vec_b)) ------------------------------
    va = sem[:, :TILE_B]                                      # a-branch (128-aligned)
    vb = sem[:, TILE_B:]                                      # b-branch
    prod = va * vb                                            # (H, TILE_B)
    logits = jnp.dot(wcomb_ref[...], prod,
                     preferred_element_type=jnp.float32) + bcomb_ref[0, 0]  # (1,TILE_B)
    out_ref[0] = jax.nn.sigmoid(logits)                       # lane-dense, unmasked store


def _make_cols(batch_a, batch_b):
    """Host-side integer glue: tile the pairs, window the token ids and fold them
    into fused (window, vocab) one-hot column indices, laid out t-major."""
    n = batch_a.shape[0]
    n_tiles = (n + TILE_B - 1) // TILE_B
    pad = ((0, n_tiles * TILE_B - n), (0, 0))
    ia = jnp.pad(batch_a.astype(jnp.int32), pad).reshape(n_tiles, TILE_B, L)
    ib = jnp.pad(batch_b.astype(jnp.int32), pad).reshape(n_tiles, TILE_B, L)
    ids = jnp.concatenate([ia, ib], axis=1)                   # (n_tiles, R2, L)
    # win[tile, s, t, w] = ids[tile, s, t + w]
    win = jnp.stack([ids[:, :, w:w + L_OUT] for w in range(W)], axis=-1)
    # kernel layout: cols[tile, w, t*R2 + s] = w*V + ids[tile, s, t + w]
    cols = win.transpose(0, 3, 2, 1).reshape(n_tiles, W, ROWS_CONV)
    cols = cols + (jnp.arange(W, dtype=jnp.int32) * V)[None, :, None]
    return cols, n_tiles


@jax.jit
def siames_forward(batch_a, batch_b, params):
    """batch_a / batch_b: int32 token ids of shape (N, L). Returns (N,) scores."""
    n = batch_a.shape[0]
    cols, n_tiles = _make_cols(batch_a, batch_b)

    # Fold the embedding table into the conv weight once (tiny (C, W*V) tensor) so
    # the in-kernel gather+conv is a single one-hot matmul.
    w_conv = jnp.einsum("ve,wec->cwv", params["embedding"],
                        params["conv_w"]).reshape(C, WV)
    b_conv = params["conv_b"].reshape(C, 1)
    w_fc = params["fc_w"].T                                   # (H, C)
    b_fc = params["fc_b"].reshape(H, 1)

    out = pl.pallas_call(
        _siames_kernel,
        grid=(n_tiles,),
        in_specs=[
            pl.BlockSpec((1, W, ROWS_CONV), lambda i: (i, 0, 0)),  # per-tile token cols
            pl.BlockSpec((C, WV), lambda i: (0, 0)),               # weights: constant
            pl.BlockSpec((C, 1), lambda i: (0, 0)),                #   index_map ->
            pl.BlockSpec((H, C), lambda i: (0, 0)),                #   DMA'd once,
            pl.BlockSpec((H, 1), lambda i: (0, 0)),                #   VMEM-resident
            pl.BlockSpec((1, H), lambda i: (0, 0)),
            pl.BlockSpec((1, 1), lambda i: (0, 0),
                         memory_space=pltpu.MemorySpace.SMEM),     # scalar comb bias
        ],
        out_specs=pl.BlockSpec((1, 1, TILE_B), lambda i: (i, 0, 0)),  # lane-dense scores
        out_shape=jax.ShapeDtypeStruct((n_tiles, 1, TILE_B), jnp.float32),
        compiler_params=pltpu.CompilerParams(
            dimension_semantics=("parallel",)),                    # megacore / v7x 2 TCs
    )(cols, w_conv, b_conv, w_fc, b_fc, params["comb_w"], params["comb_b"])

    scores = out.reshape(n_tiles * TILE_B)[:n]
    return jnp.squeeze(scores)                                # matches torch .squeeze()


# ----------------------- pure-JAX reference (for checking) --------------------
@jax.jit
def siames_reference(batch_a, batch_b, params):
    def branch(ids):
        x = params["embedding"][ids]                          # (N, L, E)
        acc = jnp.zeros((ids.shape[0], L_OUT, C), jnp.float32)
        for w in range(W):
            acc = acc + jnp.einsum("nle,ec->nlc",
                                   x[:, w:w + L_OUT, :], params["conv_w"][w])
        conv = jnp.tanh(acc + params["conv_b"][None, :, :])
        pooled = jnp.max(conv, axis=1)                        # (N, C)
        return jnp.tanh(pooled @ params["fc_w"] + params["fc_b"])

    va = branch(batch_a)
    vb = branch(batch_b)
    logits = (va * vb) @ params["comb_w"].T + params["comb_b"][0, 0]
    return jnp.squeeze(jax.nn.sigmoid(logits))


def init_params(key):
    ks = jax.random.split(key, 7)
    s = 0.1
    return {
        "embedding": s * jax.random.normal(ks[0], (V, E), jnp.float32),
        # PyTorch Conv1d weight is (C_out, E, W); stored here as (W, E, C_out).
        "conv_w": s * jax.random.normal(ks[1], (W, E, C), jnp.float32),
        "conv_b": s * jax.random.normal(ks[2], (1, C), jnp.float32),
        "fc_w": s * jax.random.normal(ks[3], (C, H), jnp.float32),   # Linear C->H
        "fc_b": s * jax.random.normal(ks[4], (1, H), jnp.float32),
        "comb_w": s * jax.random.normal(ks[5], (1, H), jnp.float32),  # Linear H->1
        "comb_b": s * jax.random.normal(ks[6], (1, 1), jnp.float32),
    }


if __name__ == "__main__":
    key = jax.random.PRNGKey(0)
    kp, ka, kb, ka2, kb2 = jax.random.split(key, 5)
    params = init_params(kp)

    # small shapes consistent with the module: batch of 2 sentence pairs, seq len 8
    batch_a = jax.random.randint(ka, (2, L), 0, V, dtype=jnp.int32)
    batch_b = jax.random.randint(kb, (2, L), 0, V, dtype=jnp.int32)
    out = jax.block_until_ready(siames_forward(batch_a, batch_b, params))
    ref = jax.block_until_ready(siames_reference(batch_a, batch_b, params))
    assert out.shape == (2,), out.shape
    assert bool(jnp.all((out >= 0.0) & (out <= 1.0)))
    assert bool(jnp.allclose(out, ref, atol=1e-5, rtol=1e-5)), (out, ref)

    # larger batch exercising the batch-tile grid (3 tiles of 128 pairs) + padding
    n_big = 300
    big_a = jax.random.randint(ka2, (n_big, L), 0, V, dtype=jnp.int32)
    big_b = jax.random.randint(kb2, (n_big, L), 0, V, dtype=jnp.int32)
    out_big = jax.block_until_ready(siames_forward(big_a, big_b, params))
    ref_big = jax.block_until_ready(siames_reference(big_a, big_b, params))
    assert out_big.shape == (n_big,), out_big.shape
    assert bool(jnp.allclose(out_big, ref_big, atol=1e-5, rtol=1e-5))

    print("KERNEL_OK")
</pallas_src>

<mosaic_0001>
module attributes {stable_mosaic.version = 11 : i64} {
  func.func @_siames_kernel(%arg0: i32, %arg1: memref<1x3x1536xi32, #tpu.memory_space<vmem>>, %arg2: memref<64x150xf32, #tpu.memory_space<vmem>>, %arg3: memref<64x1xf32, #tpu.memory_space<vmem>>, %arg4: memref<32x64xf32, #tpu.memory_space<vmem>>, %arg5: memref<32x1xf32, #tpu.memory_space<vmem>>, %arg6: memref<1x32xf32, #tpu.memory_space<vmem>>, %arg7: memref<1x1xf32, #tpu.memory_space<smem>>, %arg8: memref<1x1x128xf32, #tpu.memory_space<vmem>>) attributes {dimension_semantics = [#tpu.dimension_semantics<parallel>], iteration_bounds = array<i64: 1>, scalar_prefetch = 0 : i64, scratch_operands = 0 : i64, tpu.core_type = #tpu.core_type<tc>, window_params = [{transform_indices = @transform_0, window_bounds = array<i64: 1, 3, 1536>}, {pipeline_mode = #tpu.pipeline_mode<synchronous>, transform_indices = @transform_1, window_bounds = array<i64: 64, 150>}, {pipeline_mode = #tpu.pipeline_mode<synchronous>, transform_indices = @transform_2, window_bounds = array<i64: 64, 1>}, {pipeline_mode = #tpu.pipeline_mode<synchronous>, transform_indices = @transform_3, window_bounds = array<i64: 32, 64>}, {pipeline_mode = #tpu.pipeline_mode<synchronous>, transform_indices = @transform_4, window_bounds = array<i64: 32, 1>}, {pipeline_mode = #tpu.pipeline_mode<synchronous>, transform_indices = @transform_5, window_bounds = array<i64: 1, 32>}, {transform_indices = @transform_6, window_bounds = array<i64: 1, 1>}, {transform_indices = @transform_7, window_bounds = array<i64: 1, 1, 128>}]} {
    %c0 = arith.constant 0 : index
    %c0_0 = arith.constant 0 : index
    %c0_1 = arith.constant 0 : index
    %0 = vector.load %arg1[%c0, %c0_0, %c0_1] : memref<1x3x1536xi32, #tpu.memory_space<vmem>>, vector<1x3x1536xi32>
    %1 = vector.shape_cast %0 : vector<1x3x1536xi32> to vector<3x1536xi32>
    %2 = tpu.iota {dimensions = array<i32: 0>} : vector<150x1536xi32>
    %cst = arith.constant 0.000000e+00 : f32
    %3 = vector.broadcast %cst : f32 to vector<150x1536xf32>
    %4 = vector.extract_strided_slice %1 {offsets = [0, 0], sizes = [1, 1536], strides = [1, 1]} : vector<3x1536xi32> to vector<1x1536xi32>
    %5 = vector.broadcast %4 : vector<1x1536xi32> to vector<150x1536xi32>
    %6 = arith.cmpi eq, %2, %5 : vector<150x1536xi32>
    %7 = arith.extui %6 : vector<150x1536xi1> to vector<150x1536xi32>
    %8 = arith.sitofp %7 : vector<150x1536xi32> to vector<150x1536xf32>
    %9 = arith.addf %3, %8 : vector<150x1536xf32>
    %10 = vector.extract_strided_slice %1 {offsets = [1, 0], sizes = [1, 1536], strides = [1, 1]} : vector<3x1536xi32> to vector<1x1536xi32>
    %11 = vector.broadcast %10 : vector<1x1536xi32> to vector<150x1536xi32>
    %12 = arith.cmpi eq, %2, %11 : vector<150x1536xi32>
    %13 = arith.extui %12 : vector<150x1536xi1> to vector<150x1536xi32>
    %14 = arith.sitofp %13 : vector<150x1536xi32> to vector<150x1536xf32>
    %15 = arith.addf %9, %14 : vector<150x1536xf32>
    %16 = vector.extract_strided_slice %1 {offsets = [2, 0], sizes = [1, 1536], strides = [1, 1]} : vector<3x1536xi32> to vector<1x1536xi32>
    %17 = vector.broadcast %16 : vector<1x1536xi32> to vector<150x1536xi32>
    %18 = arith.cmpi eq, %2, %17 : vector<150x1536xi32>
    %19 = arith.extui %18 : vector<150x1536xi1> to vector<150x1536xi32>
    %20 = arith.sitofp %19 : vector<150x1536xi32> to vector<150x1536xf32>
    %21 = arith.addf %15, %20 : vector<150x1536xf32>
    %c0_2 = arith.constant 0 : index
    %c0_3 = arith.constant 0 : index
    %22 = vector.load %arg2[%c0_2, %c0_3] : memref<64x150xf32, #tpu.memory_space<vmem>>, vector<64x150xf32>
    %cst_4 = arith.constant dense<0.000000e+00> : vector<64x1536xf32>
    %23 = tpu.matmul %22, %21, %cst_4 {dimension_numbers = #tpu.dot_dimension_numbers<[1], [0], [0], [1], [0, 0, 1, 1], [], []>} : vector<64x150xf32>, vector<150x1536xf32>, vector<64x1536xf32> -> vector<64x1536xf32>
    %c0_5 = arith.constant 0 : index
    %c0_6 = arith.constant 0 : index
    %24 = vector.load %arg3[%c0_5, %c0_6] : memref<64x1xf32, #tpu.memory_space<vmem>>, vector<64x1xf32>
    %25 = vector.broadcast %24 : vector<64x1xf32> to vector<64x1536xf32>
    %26 = arith.addf %23, %25 : vector<64x1536xf32>
    %27 = math.tanh %26 : vector<64x1536xf32>
    %28 = vector.extract_strided_slice %27 {offsets = [0, 0], sizes = [64, 256], strides = [1, 1]} : vector<64x1536xf32> to vector<64x256xf32>
    %29 = vector.extract_strided_slice %27 {offsets = [0, 256], sizes = [64, 256], strides = [1, 1]} : vector<64x1536xf32> to vector<64x256xf32>
    %30 = arith.maximumf %28, %29 : vector<64x256xf32>
    %31 = vector.extract_strided_slice %27 {offsets = [0, 512], sizes = [64, 256], strides = [1, 1]} : vector<64x1536xf32> to vector<64x256xf32>
    %32 = arith.maximumf %30, %31 : vector<64x256xf32>
    %33 = vector.extract_strided_slice %27 {offsets = [0, 768], sizes = [64, 256], strides = [1, 1]} : vector<64x1536xf32> to vector<64x256xf32>
    %34 = arith.maximumf %32, %33 : vector<64x256xf32>
    %35 = vector.extract_strided_slice %27 {offsets = [0, 1024], sizes = [64, 256], strides = [1, 1]} : vector<64x1536xf32> to vector<64x256xf32>
    %36 = arith.maximumf %34, %35 : vector<64x256xf32>
    %37 = vector.extract_strided_slice %27 {offsets = [0, 1280], sizes = [64, 256], strides = [1, 1]} : vector<64x1536xf32> to vector<64x256xf32>
    %38 = arith.maximumf %36, %37 : vector<64x256xf32>
    %c0_7 = arith.constant 0 : index
    %c0_8 = arith.constant 0 : index
    %39 = vector.load %arg4[%c0_7, %c0_8] : memref<32x64xf32, #tpu.memory_space<vmem>>, vector<32x64xf32>
    %cst_9 = arith.constant dense<0.000000e+00> : vector<32x256xf32>
    %40 = tpu.matmul %39, %38, %cst_9 {dimension_numbers = #tpu.dot_dimension_numbers<[1], [0], [0], [1], [0, 0, 1, 1], [], []>} : vector<32x64xf32>, vector<64x256xf32>, vector<32x256xf32> -> vector<32x256xf32>
    %c0_10 = arith.constant 0 : index
    %c0_11 = arith.constant 0 : index
    %41 = vector.load %arg5[%c0_10, %c0_11] : memref<32x1xf32, #tpu.memory_space<vmem>>, vector<32x1xf32>
    %42 = vector.broadcast %41 : vector<32x1xf32> to vector<32x256xf32>
    %43 = arith.addf %40, %42 : vector<32x256xf32>
    %44 = math.tanh %43 : vector<32x256xf32>
    %45 = vector.extract_strided_slice %44 {offsets = [0, 0], sizes = [32, 128], strides = [1, 1]} : vector<32x256xf32> to vector<32x128xf32>
    %46 = vector.extract_strided_slice %44 {offsets = [0, 128], sizes = [32, 128], strides = [1, 1]} : vector<32x256xf32> to vector<32x128xf32>
    %47 = arith.mulf %45, %46 : vector<32x128xf32>
    %c0_12 = arith.constant 0 : index
    %c0_13 = arith.constant 0 : index
    %48 = vector.load %arg6[%c0_12, %c0_13] : memref<1x32xf32, #tpu.memory_space<vmem>>, vector<1x32xf32>
    %cst_14 = arith.constant dense<0.000000e+00> : vector<1x128xf32>
    %49 = tpu.matmul %48, %47, %cst_14 {dimension_numbers = #tpu.dot_dimension_numbers<[1], [0], [0], [1], [0, 0, 1, 1], [], []>} : vector<1x32xf32>, vector<32x128xf32>, vector<1x128xf32> -> vector<1x128xf32>
    %c0_15 = arith.constant 0 : index
    %c0_16 = arith.constant 0 : index
    %50 = memref.load %arg7[%c0_15, %c0_16] : memref<1x1xf32, #tpu.memory_space<smem>>
    %51 = vector.broadcast %50 : f32 to vector<1x128xf32>
    %52 = arith.addf %49, %51 : vector<1x128xf32>
    %53 = arith.negf %52 : vector<1x128xf32>
    %54 = math.exp %53 : vector<1x128xf32>
    %cst_17 = arith.constant 1.000000e+00 : f32
    %55 = vector.broadcast %cst_17 : f32 to vector<1x128xf32>
    %56 = arith.addf %55, %54 : vector<1x128xf32>
    %57 = arith.divf %55, %56 : vector<1x128xf32>
    %c0_18 = arith.constant 0 : index
    %c0_19 = arith.constant 0 : index
    %c0_20 = arith.constant 0 : index
    %58 = vector.load %arg8[%c0_18, %c0_19, %c0_20] : memref<1x1x128xf32, #tpu.memory_space<vmem>>, vector<1x1x128xf32>
    %59 = vector.shape_cast %58 : vector<1x1x128xf32> to vector<1x128xf32>
    %60 = vector.shape_cast %57 : vector<1x128xf32> to vector<1x1x128xf32>
    tpu.vector_store %arg8[%c0_18, %c0_19, %c0_20], %60 {strides = array<i32>} : memref<1x1x128xf32, #tpu.memory_space<vmem>>, vector<1x1x128xf32>,
    return
  }
  func.func @transform_0(%arg0: i32) -> (i32, i32, i32) {
    %c0_i32 = arith.constant 0 : i32
    %c0_i32_0 = arith.constant 0 : i32
    %c0_i32_1 = arith.constant 0 : i32
    return %arg0, %c0_i32, %c0_i32_0 : i32, i32, i32
  }
  func.func @transform_1(%arg0: i32) -> (i32, i32) {
    %c0_i32 = arith.constant 0 : i32
    %c0_i32_0 = arith.constant 0 : i32
    %c0_i32_1 = arith.constant 0 : i32
    return %c0_i32, %c0_i32_0 : i32, i32
  }
  func.func @transform_2(%arg0: i32) -> (i32, i32) {
    %c0_i32 = arith.constant 0 : i32
    %c0_i32_0 = arith.constant 0 : i32
    %c0_i32_1 = arith.constant 0 : i32
    return %c0_i32, %c0_i32_0 : i32, i32
  }
  func.func @transform_3(%arg0: i32) -> (i32, i32) {
    %c0_i32 = arith.constant 0 : i32
    %c0_i32_0 = arith.constant 0 : i32
    %c0_i32_1 = arith.constant 0 : i32
    return %c0_i32, %c0_i32_0 : i32, i32
  }
  func.func @transform_4(%arg0: i32) -> (i32, i32) {
    %c0_i32 = arith.constant 0 : i32
    %c0_i32_0 = arith.constant 0 : i32
    %c0_i32_1 = arith.constant 0 : i32
    return %c0_i32, %c0_i32_0 : i32, i32
  }
  func.func @transform_5(%arg0: i32) -> (i32, i32) {
    %c0_i32 = arith.constant 0 : i32
    %c0_i32_0 = arith.constant 0 : i32
    %c0_i32_1 = arith.constant 0 : i32
    return %c0_i32, %c0_i32_0 : i32, i32
  }
  func.func @transform_6(%arg0: i32) -> (i32, i32) {
    %c0_i32 = arith.constant 0 : i32
    %c0_i32_0 = arith.constant 0 : i32
    %c0_i32_1 = arith.constant 0 : i32
    return %c0_i32, %c0_i32_0 : i32, i32
  }
  func.func @transform_7(%arg0: i32) -> (i32, i32, i32) {
    %c0_i32 = arith.constant 0 : i32
    %c0_i32_0 = arith.constant 0 : i32
    %c0_i32_1 = arith.constant 0 : i32
    return %arg0, %c0_i32, %c0_i32_0 : i32, i32, i32
  }
}

</mosaic_0001>

<llo_original>
// kernel: siames_forward.1
$region0: #{siames_forward.1}
  #allocation0 [shape = 'u32[]', space=smem, size = 0x4, offset = 0x4, fixed_abs, tag = 'smem constant byte address 0x4 - core index']
  #allocation1 [shape = 'u32[144,128]{1,0:T(1,128)}', space=vmem, size = 0x12000, scoped, tag = 'internal scratch']
  #allocation2 [shape = 'f32[1,1]{1,0:T(1,128)S(6)}', space=smem, size = 0x200, scoped, tag = 'scoped memory for siames_forward.1']
  %s0 = inlined_call_operand.vmem [shape: s32[1,3,1536], index: 0, kind: input, shape index: {}]
  %s1 = inlined_call_operand.vmem [shape: f32[64,150], index: 1, kind: input, shape index: {}]
  %s2 = inlined_call_operand.vmem [shape: f32[64,1], index: 2, kind: input, shape index: {}]
  %s3 = inlined_call_operand.vmem [shape: f32[32,64], index: 3, kind: input, shape index: {}]
  %s4 = inlined_call_operand.vmem [shape: f32[32,1], index: 4, kind: input, shape index: {}]
  %s5 = inlined_call_operand.vmem [shape: f32[1,32], index: 5, kind: input, shape index: {}]
  %s6 = inlined_call_operand.<no memory space> [shape: f32[1,1], index: 6, kind: input, shape index: {}]
  %s7 = inlined_call_operand.vmem [shape: f32[1,1,128], index: 7, kind: output, shape index: {}]
  %s8 = sld [smem:[#allocation0]]
  $region38: #{siames_forward.1} parent=0
    _
  %s10 = ssub.s32 1, %s8
  %s11 = scalar_select 0, %s10, %s8
  %12 = sst [smem:[#allocation2]] %s6
  // Predicated region
  $region2: #{siames_forward.1} parent=0 // pred_check
    _
  $region3: #{siames_forward.1} parent=0 // pred_check_branch
    %14 = sbr.rel (0) target = $region5
  $region4: #{siames_forward.1} parent=0 // pred_region
    _
  $region5: #{siames_forward.1} parent=0 // pred_fallthru
    _
  // Predicated region
  $region6: #{siames_forward.1} parent=0 // pred_check
    _
  $region7: #{siames_forward.1} parent=0 // pred_check_branch
    %16 = sbr.rel (0) target = $region9
  $region8: #{siames_forward.1} parent=0 // pred_region
    _
  $region9: #{siames_forward.1} parent=0 // pred_fallthru
    _
  // Predicated region
  $region10: #{siames_forward.1} parent=0 // pred_check
    _
  $region11: #{siames_forward.1} parent=0 // pred_check_branch
    %18 = sbr.rel (0) target = $region13
  $region12: #{siames_forward.1} parent=0 // pred_region
    _
  $region13: #{siames_forward.1} parent=0 // pred_fallthru
    _
  // Predicated region
  $region14: #{siames_forward.1} parent=0 // pred_check
    _
  $region15: #{siames_forward.1} parent=0 // pred_check_branch
    %20 = sbr.rel (0) target = $region17
  $region16: #{siames_forward.1} parent=0 // pred_region
    _
  $region17: #{siames_forward.1} parent=0 // pred_fallthru
    _
  // Predicated region
  $region18: #{siames_forward.1} parent=0 // pred_check
    _
  $region19: #{siames_forward.1} parent=0 // pred_check_branch
    %22 = sbr.rel (0) target = $region21
  $region20: #{siames_forward.1} parent=0 // pred_region
    _
  $region21: #{siames_forward.1} parent=0 // pred_fallthru
    _
  // Predicated region
  $region22: #{siames_forward.1} parent=0 // pred_check
    _
  $region23: #{siames_forward.1} parent=0 // pred_check_branch
    %24 = sbr.rel (0) target = $region25
  $region24: #{siames_forward.1} parent=0 // pred_region
    _
  $region25: #{siames_forward.1} parent=0 // pred_fallthru
    _
  // Predicated region
  $region26: #{siames_forward.1} parent=0 // pred_check
    _
  $region27: #{siames_forward.1} parent=0 // pred_check_branch
    %26 = sbr.rel (0) target = $region29
  $region28: #{siames_forward.1} parent=0 // pred_region
    _
  $region29: #{siames_forward.1} parent=0 // pred_fallthru
    _
  %v27 = vld [vmem:[%s0] sm:$0x77]
  %v28 = vld [vmem:[%s0 + $0x8] sm:$0x77]
  %v29 = vld [vmem:[%s0 + $0x10] sm:$0x77]
  %v30 = vld [vmem:[%s0 + $0x18] sm:$0x77]
  %v31 = vld [vmem:[%s0 + $0x20] sm:$0x77]
  %v32 = vld [vmem:[%s0 + $0x28] sm:$0x77]
  %v33 = vlaneseq
  %v34 = vshrl.u32 %v33, 7
  %v35 = vadd.s32 %v34, 8
  %v36 = vadd.s32 %v34, 16
  %v37 = vadd.s32 %v34, 24
  %v38 = vadd.s32 %v34, 32
  %v39 = vadd.s32 %v34, 40
  %v40 = vadd.s32 %v34, 48
  %v41 = vadd.s32 %v34, 56
  %v42 = vadd.s32 %v34, 64
  %v43 = vadd.s32 %v34, 72
  %v44 = vadd.s32 %v34, 80
  %v45 = vadd.s32 %v34, 88
  %v46 = vadd.s32 %v34, 96
  %v47 = vadd.s32 %v34, 104
  %v48 = vadd.s32 %v34, 112
  %v49 = vadd.s32 %v34, 120
  %v50 = vadd.s32 %v34, 128
  %v51 = vadd.s32 %v34, 136
  %v52 = vadd.s32 %v34, 144
  %v53 = vlaneseq
  %v54 = vshrl.u32 %v53, 7
  %v55 = vsub.s32 0, %v54
  %v56 = vrot.slane %v27, %v55
  %v57 = vlaneseq
  %v58 = vshrl.u32 %v57, 7
  %v59 = vsub.s32 4, %v58
  %v60 = vrot.slane %v27, %v59
  %v61 = vlaneseq
  %v62 = vshrl.u32 %v61, 7
  %v63 = vsub.s32 0, %v62
  %v64 = vrot.slane %v28, %v63
  %v65 = vlaneseq
  %v66 = vshrl.u32 %v65, 7
  %v67 = vsub.s32 4, %v66
  %v68 = vrot.slane %v28, %v67
  %v69 = vlaneseq
  %v70 = vshrl.u32 %v69, 7
  %v71 = vsub.s32 0, %v70
  %v72 = vrot.slane %v29, %v71
  %v73 = vlaneseq
  %v74 = vshrl.u32 %v73, 7
  %v75 = vsub.s32 4, %v74
  %v76 = vrot.slane %v29, %v75
  %v77 = vlaneseq
  %v78 = vshrl.u32 %v77, 7
  %v79 = vsub.s32 0, %v78
  %v80 = vrot.slane %v30, %v79
  %v81 = vlaneseq
  %v82 = vshrl.u32 %v81, 7
  %v83 = vsub.s32 4, %v82
  %v84 = vrot.slane %v30, %v83
  %v85 = vlaneseq
  %v86 = vshrl.u32 %v85, 7
  %v87 = vsub.s32 0, %v86
  %v88 = vrot.slane %v31, %v87
  %v89 = vlaneseq
  %v90 = vshrl.u32 %v89, 7
  %v91 = vsub.s32 4, %v90
  %v92 = vrot.slane %v31, %v91
  %v93 = vlaneseq
  %v94 = vshrl.u32 %v93, 7
  %v95 = vsub.s32 0, %v94
  %v96 = vrot.slane %v32, %v95
  %v97 = vlaneseq
  %v98 = vshrl.u32 %v97, 7
  %v99 = vsub.s32 4, %v98
  %v100 = vrot.slane %v32, %v99
  %v101 = vlaneseq
  %v102 = vshrl.u32 %v101, 7
  %v103 = vsub.s32 0, %v102
  %v104 = vrot.slane %v56, %v103
  %v105 = vlaneseq
  %v106 = vshrl.u32 %v105, 7
  %v107 = vsub.s32 0, %v106
  %v108 = vrot.slane %v60, %v107
  %v109 = vlaneseq
  %v110 = vshrl.u32 %v109, 7
  %v111 = vsub.s32 0, %v110
  %v112 = vrot.slane %v64, %v111
  %v113 = vlaneseq
  %v114 = vshrl.u32 %v113, 7
  %v115 = vsub.s32 0, %v114
  %v116 = vrot.slane %v68, %v115
  %v117 = vlaneseq
  %v118 = vshrl.u32 %v117, 7
  %v119 = vsub.s32 0, %v118
  %v120 = vrot.slane %v72, %v119
  %v121 = vlaneseq
  %v122 = vshrl.u32 %v121, 7
  %v123 = vsub.s32 0, %v122
  %v124 = vrot.slane %v76, %v123
  %v125 = vlaneseq
  %v126 = vshrl.u32 %v125, 7
  %v127 = vsub.s32 0, %v126
  %v128 = vrot.slane %v80, %v127
  %v129 = vlaneseq
  %v130 = vshrl.u32 %v129, 7
  %v131 = vsub.s32 0, %v130
  %v132 = vrot.slane %v84, %v131
  %v133 = vlaneseq
  %v134 = vshrl.u32 %v133, 7
  %v135 = vsub.s32 0, %v134
  %v136 = vrot.slane %v88, %v135
  %v137 = vlaneseq
  %v138 = vshrl.u32 %v137, 7
  %v139 = vsub.s32 0, %v138
  %v140 = vrot.slane %v92, %v139
  %v141 = vlaneseq
  %v142 = vshrl.u32 %v141, 7
  %v143 = vsub.s32 0, %v142
  %v144 = vrot.slane %v96, %v143
  %v145 = vlaneseq
  %v146 = vshrl.u32 %v145, 7
  %v147 = vsub.s32 0, %v146
  %v148 = vrot.slane %v100, %v147
  %vm149 = vcmp.eq.s32.totalorder %v34, %v104
  %vm150 = vcmp.eq.s32.totalorder %v34, %v108
  %vm151 = vcmp.eq.s32.totalorder %v34, %v112
  %vm152 = vcmp.eq.s32.totalorder %v34, %v116
  %vm153 = vcmp.eq.s32.totalorder %v34, %v120
  %vm154 = vcmp.eq.s32.totalorder %v34, %v124
  %vm155 = vcmp.eq.s32.totalorder %v34, %v128
  %vm156 = vcmp.eq.s32.totalorder %v34, %v132
  %vm157 = vcmp.eq.s32.totalorder %v34, %v136
  %vm158 = vcmp.eq.s32.totalorder %v34, %v140
  %vm159 = vcmp.eq.s32.totalorder %v34, %v144
  %vm160 = vcmp.eq.s32.totalorder %v34, %v148
  %vm161 = vcmp.eq.s32.totalorder %v35, %v104
  %vm162 = vcmp.eq.s32.totalorder %v35, %v108
  %vm163 = vcmp.eq.s32.totalorder %v35, %v112
  %vm164 = vcmp.eq.s32.totalorder %v35, %v116
  %vm165 = vcmp.eq.s32.totalorder %v35, %v120
  %vm166 = vcmp.eq.s32.totalorder %v35, %v124
  %vm167 = vcmp.eq.s32.totalorder %v35, %v128
  %vm168 = vcmp.eq.s32.totalorder %v35, %v132
  %vm169 = vcmp.eq.s32.totalorder %v35, %v136
  %vm170 = vcmp.eq.s32.totalorder %v35, %v140
  %vm171 = vcmp.eq.s32.totalorder %v35, %v144
  %vm172 = vcmp.eq.s32.totalorder %v35, %v148
  %vm173 = vcmp.eq.s32.totalorder %v36, %v104
  %vm174 = vcmp.eq.s32.totalorder %v36, %v108
  %vm175 = vcmp.eq.s32.totalorder %v36, %v112
  %vm176 = vcmp.eq.s32.totalorder %v36, %v116
  %vm177 = vcmp.eq.s32.totalorder %v36, %v120
  %vm178 = vcmp.eq.s32.totalorder %v36, %v124
  %vm179 = vcmp.eq.s32.totalorder %v36, %v128
  %vm180 = vcmp.eq.s32.totalorder %v36, %v132
  %vm181 = vcmp.eq.s32.totalorder %v36, %v136
  %vm182 = vcmp.eq.s32.totalorder %v36, %v140
  %vm183 = vcmp.eq.s32.totalorder %v36, %v144
  %vm184 = vcmp.eq.s32.totalorder %v36, %v148
  %vm185 = vcmp.eq.s32.totalorder %v37, %v104
  %vm186 = vcmp.eq.s32.totalorder %v37, %v108
  %vm187 = vcmp.eq.s32.totalorder %v37, %v112
  %vm188 = vcmp.eq.s32.totalorder %v37, %v116
  %vm189 = vcmp.eq.s32.totalorder %v37, %v120
  %vm190 = vcmp.eq.s32.totalorder %v37, %v124
  %vm191 = vcmp.eq.s32.totalorder %v37, %v128
  %vm192 = vcmp.eq.s32.totalorder %v37, %v132
  %vm193 = vcmp.eq.s32.totalorder %v37, %v136
  %vm194 = vcmp.eq.s32.totalorder %v37, %v140
  %vm195 = vcmp.eq.s32.totalorder %v37, %v144
  %vm196 = vcmp.eq.s32.totalorder %v37, %v148
  %vm197 = vcmp.eq.s32.totalorder %v38, %v104
  %vm198 = vcmp.eq.s32.totalorder %v38, %v108
  %vm199 = vcmp.eq.s32.totalorder %v38, %v112
  %vm200 = vcmp.eq.s32.totalorder %v38, %v116
  %vm201 = vcmp.eq.s32.totalorder %v38, %v120
  %vm202 = vcmp.eq.s32.totalorder %v38, %v124
  %vm203 = vcmp.eq.s32.totalorder %v38, %v128
  %vm204 = vcmp.eq.s32.totalorder %v38, %v132
  %vm205 = vcmp.eq.s32.totalorder %v38, %v136
  %vm206 = vcmp.eq.s32.totalorder %v38, %v140
  %vm207 = vcmp.eq.s32.totalorder %v38, %v144
  %vm208 = vcmp.eq.s32.totalorder %v38, %v148
  %vm209 = vcmp.eq.s32.totalorder %v39, %v104
  %vm210 = vcmp.eq.s32.totalorder %v39, %v108
  %vm211 = vcmp.eq.s32.totalorder %v39, %v112
  %vm212 = vcmp.eq.s32.totalorder %v39, %v116
  %vm213 = vcmp.eq.s32.totalorder %v39, %v120
  %vm214 = vcmp.eq.s32.totalorder %v39, %v124
  %vm215 = vcmp.eq.s32.totalorder %v39, %v128
  %vm216 = vcmp.eq.s32.totalorder %v39, %v132
  %vm217 = vcmp.eq.s32.totalorder %v39, %v136
  %vm218 = vcmp.eq.s32.totalorder %v39, %v140
  %vm219 = vcmp.eq.s32.totalorder %v39, %v144
  %vm220 = vcmp.eq.s32.totalorder %v39, %v148
  %vm221 = vcmp.eq.s32.totalorder %v40, %v104
  %vm222 = vcmp.eq.s32.totalorder %v40, %v108
  %vm223 = vcmp.eq.s32.totalorder %v40, %v112
  %vm224 = vcmp.eq.s32.totalorder %v40, %v116
  %vm225 = vcmp.eq.s32.totalorder %v40, %v120
  %vm226 = vcmp.eq.s32.totalorder %v40, %v124
  %vm227 = vcmp.eq.s32.totalorder %v40, %v128
  %vm228 = vcmp.eq.s32.totalorder %v40, %v132
  %vm229 = vcmp.eq.s32.totalorder %v40, %v136
  %vm230 = vcmp.eq.s32.totalorder %v40, %v140
  %vm231 = vcmp.eq.s32.totalorder %v40, %v144
  %vm232 = vcmp.eq.s32.totalorder %v40, %v148
  %vm233 = vcmp.eq.s32.totalorder %v41, %v104
  %vm234 = vcmp.eq.s32.totalorder %v41, %v108
  %vm235 = vcmp.eq.s32.totalorder %v41, %v112
  %vm236 = vcmp.eq.s32.totalorder %v41, %v116
  %vm237 = vcmp.eq.s32.totalorder %v41, %v120
  %vm238 = vcmp.eq.s32.totalorder %v41, %v124
  %vm239 = vcmp.eq.s32.totalorder %v41, %v128
  %vm240 = vcmp.eq.s32.totalorder %v41, %v132
  %vm241 = vcmp.eq.s32.totalorder %v41, %v136
  %vm242 = vcmp.eq.s32.totalorder %v41, %v140
  %vm243 = vcmp.eq.s32.totalorder %v41, %v144
  %vm244 = vcmp.eq.s32.totalorder %v41, %v148
  %vm245 = vcmp.eq.s32.totalorder %v42, %v104
  %vm246 = vcmp.eq.s32.totalorder %v42, %v108
  %vm247 = vcmp.eq.s32.totalorder %v42, %v112
  %vm248 = vcmp.eq.s32.totalorder %v42, %v116
  %vm249 = vcmp.eq.s32.totalorder %v42, %v120
  %vm250 = vcmp.eq.s32.totalorder %v42, %v124
  %vm251 = vcmp.eq.s32.totalorder %v42, %v128
  %vm252 = vcmp.eq.s32.totalorder %v42, %v132
  %vm253 = vcmp.eq.s32.totalorder %v42, %v136
  %vm254 = vcmp.eq.s32.totalorder %v42, %v140
  %vm255 = vcmp.eq.s32.totalorder %v42, %v144
  %vm256 = vcmp.eq.s32.totalorder %v42, %v148
  %vm257 = vcmp.eq.s32.totalorder %v43, %v104
  %vm258 = vcmp.eq.s32.totalorder %v43, %v108
  %vm259 = vcmp.eq.s32.totalorder %v43, %v112
  %vm260 = vcmp.eq.s32.totalorder %v43, %v116
  %vm261 = vcmp.eq.s32.totalorder %v43, %v120
  %vm262 = vcmp.eq.s32.totalorder %v43, %v124
  %vm263 = vcmp.eq.s32.totalorder %v43, %v128
  %vm264 = vcmp.eq.s32.totalorder %v43, %v132
  %vm265 = vcmp.eq.s32.totalorder %v43, %v136
  %vm266 = vcmp.eq.s32.totalorder %v43, %v140
  %vm267 = vcmp.eq.s32.totalorder %v43, %v144
  %vm268 = vcmp.eq.s32.totalorder %v43, %v148
  %vm269 = vcmp.eq.s32.totalorder %v44, %v104
  %vm270 = vcmp.eq.s32.totalorder %v44, %v108
  %vm271 = vcmp.eq.s32.totalorder %v44, %v112
  %vm272 = vcmp.eq.s32.totalorder %v44, %v116
  %vm273 = vcmp.eq.s32.totalorder %v44, %v120
  %vm274 = vcmp.eq.s32.totalorder %v44, %v124
  %vm275 = vcmp.eq.s32.totalorder %v44, %v128
  %vm276 = vcmp.eq.s32.totalorder %v44, %v132
  %vm277 = vcmp.eq.s32.totalorder %v44, %v136
  %vm278 = vcmp.eq.s32.totalorder %v44, %v140
  %vm279 = vcmp.eq.s32.totalorder %v44, %v144
  %vm280 = vcmp.eq.s32.totalorder %v44, %v148
  %vm281 = vcmp.eq.s32.totalorder %v45, %v104
  %vm282 = vcmp.eq.s32.totalorder %v45, %v108
  %vm283 = vcmp.eq.s32.totalorder %v45, %v112
  %vm284 = vcmp.eq.s32.totalorder %v45, %v116
  %vm285 = vcmp.eq.s32.totalorder %v45, %v120
  %vm286 = vcmp.eq.s32.totalorder %v45, %v124
  %vm287 = vcmp.eq.s32.totalorder %v45, %v128
  %vm288 = vcmp.eq.s32.totalorder %v45, %v132
  %vm289 = vcmp.eq.s32.totalorder %v45, %v136
  %vm290 = vcmp.eq.s32.totalorder %v45, %v140
  %vm291 = vcmp.eq.s32.totalorder %v45, %v144
  %vm292 = vcmp.eq.s32.totalorder %v45, %v148
  %vm293 = vcmp.eq.s32.totalorder %v46, %v104
  %vm294 = vcmp.eq.s32.totalorder %v46, %v108
  %vm295 = vcmp.eq.s32.totalorder %v46, %v112
  %vm296 = vcmp.eq.s32.totalorder %v46, %v116
  %vm297 = vcmp.eq.s32.totalorder %v46, %v120
  %vm298 = vcmp.eq.s32.totalorder %v46, %v124
  %vm299 = vcmp.eq.s32.totalorder %v46, %v128
  %vm300 = vcmp.eq.s32.totalorder %v46, %v132
  %vm301 = vcmp.eq.s32.totalorder %v46, %v136
  %vm302 = vcmp.eq.s32.totalorder %v46, %v140
  %vm303 = vcmp.eq.s32.totalorder %v46, %v144
  %vm304 = vcmp.eq.s32.totalorder %v46, %v148
  %vm305 = vcmp.eq.s32.totalorder %v47, %v104
  %vm306 = vcmp.eq.s32.totalorder %v47, %v108
  %vm307 = vcmp.eq.s32.totalorder %v47, %v112
  %vm308 = vcmp.eq.s32.totalorder %v47, %v116
  %vm309 = vcmp.eq.s32.totalorder %v47, %v120
  %vm310 = vcmp.eq.s32.totalorder %v47, %v124
  %vm311 = vcmp.eq.s32.totalorder %v47, %v128
  %vm312 = vcmp.eq.s32.totalorder %v47, %v132
  %vm313 = vcmp.eq.s32.totalorder %v47, %v136
  %vm314 = vcmp.eq.s32.totalorder %v47, %v140
  %vm315 = vcmp.eq.s32.totalorder %v47, %v144
  %vm316 = vcmp.eq.s32.totalorder %v47, %v148
  %vm317 = vcmp.eq.s32.totalorder %v48, %v104
  %vm318 = vcmp.eq.s32.totalorder %v48, %v108
  %vm319 = vcmp.eq.s32.totalorder %v48, %v112
  %vm320 = vcmp.eq.s32.totalorder %v48, %v116
  %vm321 = vcmp.eq.s32.totalorder %v48, %v120
  %vm322 = vcmp.eq.s32.totalorder %v48, %v124
  %vm323 = vcmp.eq.s32.totalorder %v48, %v128
  %vm324 = vcmp.eq.s32.totalorder %v48, %v132
  %vm325 = vcmp.eq.s32.totalorder %v48, %v136
  %vm326 = vcmp.eq.s32.totalorder %v48, %v140
  %vm327 = vcmp.eq.s32.totalorder %v48, %v144
  %vm328 = vcmp.eq.s32.totalorder %v48, %v148
  %vm329 = vcmp.eq.s32.totalorder %v49, %v104
  %vm330 = vcmp.eq.s32.totalorder %v49, %v108
  %vm331 = vcmp.eq.s32.totalorder %v49, %v112
  %vm332 = vcmp.eq.s32.totalorder %v49, %v116
  %vm333 = vcmp.eq.s32.totalorder %v49, %v120
  %vm334 = vcmp.eq.s32.totalorder %v49, %v124
  %vm335 = vcmp.eq.s32.totalorder %v49, %v128
  %vm336 = vcmp.eq.s32.totalorder %v49, %v132
  %vm337 = vcmp.eq.s32.totalorder %v49, %v136
  %vm338 = vcmp.eq.s32.totalorder %v49, %v140
  %vm339 = vcmp.eq.s32.totalorder %v49, %v144
  %vm340 = vcmp.eq.s32.totalorder %v49, %v148
  %vm341 = vcmp.eq.s32.totalorder %v50, %v104
  %vm342 = vcmp.eq.s32.totalorder %v50, %v108
  %vm343 = vcmp.eq.s32.totalorder %v50, %v112
  %vm344 = vcmp.eq.s32.totalorder %v50, %v116
  %vm345 = vcmp.eq.s32.totalorder %v50, %v120
  %vm346 = vcmp.eq.s32.totalorder %v50, %v124
  %vm347 = vcmp.eq.s32.totalorder %v50, %v128
  %vm348 = vcmp.eq.s32.totalorder %v50, %v132
  %vm349 = vcmp.eq.s32.totalorder %v50, %v136
  %vm350 = vcmp.eq.s32.totalorder %v50, %v140
  %vm351 = vcmp.eq.s32.totalorder %v50, %v144
  %vm352 = vcmp.eq.s32.totalorder %v50, %v148
  %vm353 = vcmp.eq.s32.totalorder %v51, %v104
  %vm354 = vcmp.eq.s32.totalorder %v51, %v108
  %vm355 = vcmp.eq.s32.totalorder %v51, %v112
  %vm356 = vcmp.eq.s32.totalorder %v51, %v116
  %vm357 = vcmp.eq.s32.totalorder %v51, %v120
  %vm358 = vcmp.eq.s32.totalorder %v51, %v124
  %vm359 = vcmp.eq.s32.totalorder %v51, %v128
  %vm360 = vcmp.eq.s32.totalorder %v51, %v132
  %vm361 = vcmp.eq.s32.totalorder %v51, %v136
  %vm362 = vcmp.eq.s32.totalorder %v51, %v140
  %vm363 = vcmp.eq.s32.totalorder %v51, %v144
  %vm364 = vcmp.eq.s32.totalorder %v51, %v148
  %vm365 = vcmp.eq.s32.totalorder %v52, %v104
  %vm366 = vcmp.eq.s32.totalorder %v52, %v108
  %vm367 = vcmp.eq.s32.totalorder %v52, %v112
  %vm368 = vcmp.eq.s32.totalorder %v52, %v116
  %vm369 = vcmp.eq.s32.totalorder %v52, %v120
  %vm370 = vcmp.eq.s32.totalorder %v52, %v124
  %vm371 = vcmp.eq.s32.totalorder %v52, %v128
  %vm372 = vcmp.eq.s32.totalorder %v52, %v132
  %vm373 = vcmp.eq.s32.totalorder %v52, %v136
  %vm374 = vcmp.eq.s32.totalorder %v52, %v140
  %vm375 = vcmp.eq.s32.totalorder %v52, %v144
  %vm376 = vcmp.eq.s32.totalorder %v52, %v148
  %v377 = vsel %vm149, 1, 0
  %v378 = vsel %vm150, 1, 0
  %v379 = vsel %vm151, 1, 0
  %v380 = vsel %vm152, 1, 0
  %v381 = vsel %vm153, 1, 0
  %v382 = vsel %vm154, 1, 0
  %v383 = vsel %vm155, 1, 0
  %v384 = vsel %vm156, 1, 0
  %v385 = vsel %vm157, 1, 0
  %v386 = vsel %vm158, 1, 0
  %v387 = vsel %vm159, 1, 0
  %v388 = vsel %vm160, 1, 0
  %v389 = vsel %vm161, 1, 0
  %v390 = vsel %vm162, 1, 0
  %v391 = vsel %vm163, 1, 0
  %v392 = vsel %vm164, 1, 0
  %v393 = vsel %vm165, 1, 0
  %v394 = vsel %vm166, 1, 0
  %v395 = vsel %vm167, 1, 0
  %v396 = vsel %vm168, 1, 0
  %v397 = vsel %vm169, 1, 0
  %v398 = vsel %vm170, 1, 0
  %v399 = vsel %vm171, 1, 0
  %v400 = vsel %vm172, 1, 0
  %v401 = vsel %vm173, 1, 0
  %v402 = vsel %vm174, 1, 0
  %v403 = vsel %vm175, 1, 0
  %v404 = vsel %vm176, 1, 0
  %v405 = vsel %vm177, 1, 0
  %v406 = vsel %vm178, 1, 0
  %v407 = vsel %vm179, 1, 0
  %v408 = vsel %vm180, 1, 0
  %v409 = vsel %vm181, 1, 0
  %v410 = vsel %vm182, 1, 0
  %v411 = vsel %vm183, 1, 0
  %v412 = vsel %vm184, 1, 0
  %v413 = vsel %vm185, 1, 0
  %v414 = vsel %vm186, 1, 0
  %v415 = vsel %vm187, 1, 0
  %v416 = vsel %vm188, 1, 0
  %v417 = vsel %vm189, 1, 0
  %v418 = vsel %vm190, 1, 0
  %v419 = vsel %vm191, 1, 0
  %v420 = vsel %vm192, 1, 0
  %v421 = vsel %vm193, 1, 0
  %v422 = vsel %vm194, 1, 0
  %v423 = vsel %vm195, 1, 0
  %v424 = vsel %vm196, 1, 0
  %v425 = vsel %vm197, 1, 0
  %v426 = vsel %vm198, 1, 0
  %v427 = vsel %vm199, 1, 0
  %v428 = vsel %vm200, 1, 0
  %v429 = vsel %vm201, 1, 0
  %v430 = vsel %vm202, 1, 0
  %v431 = vsel %vm203, 1, 0
  %v432 = vsel %vm204, 1, 0
  %v433 = vsel %vm205, 1, 0
  %v434 = vsel %vm206, 1, 0
  %v435 = vsel %vm207, 1, 0
  %v436 = vsel %vm208, 1, 0
  %v437 = vsel %vm209, 1, 0
  %v438 = vsel %vm210, 1, 0
  %v439 = vsel %vm211, 1, 0
  %v440 = vsel %vm212, 1, 0
  %v441 = vsel %vm213, 1, 0
  %v442 = vsel %vm214, 1, 0
  %v443 = vsel %vm215, 1, 0
  %v444 = vsel %vm216, 1, 0
  %v445 = vsel %vm217, 1, 0
  %v446 = vsel %vm218, 1, 0
  %v447 = vsel %vm219, 1, 0
  %v448 = vsel %vm220, 1, 0
  %v449 = vsel %vm221, 1, 0
  %v450 = vsel %vm222, 1, 0
  %v451 = vsel %vm223, 1, 0
  %v452 = vsel %vm224, 1, 0
  %v453 = vsel %vm225, 1, 0
  %v454 = vsel %vm226, 1, 0
  %v455 = vsel %vm227, 1, 0
  %v456 = vsel %vm228, 1, 0
  %v457 = vsel %vm229, 1, 0
  %v458 = vsel %vm230, 1, 0
  %v459 = vsel %vm231, 1, 0
  %v460 = vsel %vm232, 1, 0
  %v461 = vsel %vm233, 1, 0
  %v462 = vsel %vm234, 1, 0
  %v463 = vsel %vm235, 1, 0
  %v464 = vsel %vm236, 1, 0
  %v465 = vsel %vm237, 1, 0
  %v466 = vsel %vm238, 1, 0
  %v467 = vsel %vm239, 1, 0
  %v468 = vsel %vm240, 1, 0
  %v469 = vsel %vm241, 1, 0
  %v470 = vsel %vm242, 1, 0
  %v471 = vsel %vm243, 1, 0
  %v472 = vsel %vm244, 1, 0
  %v473 = vsel %vm245, 1, 0
  %v474 = vsel %vm246, 1, 0
  %v475 = vsel %vm247, 1, 0
  %v476 = vsel %vm248, 1, 0
  %v477 = vsel %vm249, 1, 0
  %v478 = vsel %vm250, 1, 0
  %v479 = vsel %vm251, 1, 0
  %v480 = vsel %vm252, 1, 0
  %v481 = vsel %vm253, 1, 0
  %v482 = vsel %vm254, 1, 0
  %v483 = vsel %vm255, 1, 0
  %v484 = vsel %vm256, 1, 0
  %v485 = vsel %vm257, 1, 0
  %v486 = vsel %vm258, 1, 0
  %v487 = vsel %vm259, 1, 0
  %v488 = vsel %vm260, 1, 0
  %v489 = vsel %vm261, 1, 0
  %v490 = vsel %vm262, 1, 0
  %v491 = vsel %vm263, 1, 0
  %v492 = vsel %vm264, 1, 0
  %v493 = vsel %vm265, 1, 0
  %v494 = vsel %vm266, 1, 0
  %v495 = vsel %vm267, 1, 0
  %v496 = vsel %vm268, 1, 0
  %v497 = vsel %vm269, 1, 0
  %v498 = vsel %vm270, 1, 0
  %v499 = vsel %vm271, 1, 0
  %v500 = vsel %vm272, 1, 0
  %v501 = vsel %vm273, 1, 0
  %v502 = vsel %vm274, 1, 0
  %v503 = vsel %vm275, 1, 0
  %v504 = vsel %vm276, 1, 0
  %v505 = vsel %vm277, 1, 0
  %v506 = vsel %vm278, 1, 0
  %v507 = vsel %vm279, 1, 0
  %v508 = vsel %vm280, 1, 0
  %v509 = vsel %vm281, 1, 0
  %v510 = vsel %vm282, 1, 0
  %v511 = vsel %vm283, 1, 0
  %v512 = vsel %vm284, 1, 0
  %v513 = vsel %vm285, 1, 0
  %v514 = vsel %vm286, 1, 0
  %v515 = vsel %vm287, 1, 0
  %v516 = vsel %vm288, 1, 0
  %v517 = vsel %vm289, 1, 0
  %v518 = vsel %vm290, 1, 0
  %v519 = vsel %vm291, 1, 0
  %v520 = vsel %vm292, 1, 0
  %v521 = vsel %vm293, 1, 0
  %v522 = vsel %vm294, 1, 0
  %v523 = vsel %vm295, 1, 0
  %v524 = vsel %vm296, 1, 0
  %v525 = vsel %vm297, 1, 0
  %v526 = vsel %vm298, 1, 0
  %v527 = vsel %vm299, 1, 0
  %v528 = vsel %vm300, 1, 0
  %v529 = vsel %vm301, 1, 0
  %v530 = vsel %vm302, 1, 0
  %v531 = vsel %vm303, 1, 0
  %v532 = vsel %vm304, 1, 0
  %v533 = vsel %vm305, 1, 0
  %v534 = vsel %vm306, 1, 0
  %v535 = vsel %vm307, 1, 0
  %v536 = vsel %vm308, 1, 0
  %v537 = vsel %vm309, 1, 0
  %v538 = vsel %vm310, 1, 0
  %v539 = vsel %vm311, 1, 0
  %v540 = vsel %vm312, 1, 0
  %v541 = vsel %vm313, 1, 0
  %v542 = vsel %vm314, 1, 0
  %v543 = vsel %vm315, 1, 0
  %v544 = vsel %vm316, 1, 0
  %v545 = vsel %vm317, 1, 0
  %v546 = vsel %vm318, 1, 0
  %v547 = vsel %vm319, 1, 0
  %v548 = vsel %vm320, 1, 0
  %v549 = vsel %vm321, 1, 0
  %v550 = vsel %vm322, 1, 0
  %v551 = vsel %vm323, 1, 0
  %v552 = vsel %vm324, 1, 0
  %v553 = vsel %vm325, 1, 0
  %v554 = vsel %vm326, 1, 0
  %v555 = vsel %vm327, 1, 0
  %v556 = vsel %vm328, 1, 0
  %v557 = vsel %vm329, 1, 0
  %v558 = vsel %vm330, 1, 0
  %v559 = vsel %vm331, 1, 0
  %v560 = vsel %vm332, 1, 0
  %v561 = vsel %vm333, 1, 0
  %v562 = vsel %vm334, 1, 0
  %v563 = vsel %vm335, 1, 0
  %v564 = vsel %vm336, 1, 0
  %v565 = vsel %vm337, 1, 0
  %v566 = vsel %vm338, 1, 0
  %v567 = vsel %vm339, 1, 0
  %v568 = vsel %vm340, 1, 0
  %v569 = vsel %vm341, 1, 0
  %v570 = vsel %vm342, 1, 0
  %v571 = vsel %vm343, 1, 0
  %v572 = vsel %vm344, 1, 0
  %v573 = vsel %vm345, 1, 0
  %v574 = vsel %vm346, 1, 0
  %v575 = vsel %vm347, 1, 0
  %v576 = vsel %vm348, 1, 0
  %v577 = vsel %vm349, 1, 0
  %v578 = vsel %vm350, 1, 0
  %v579 = vsel %vm351, 1, 0
  %v580 = vsel %vm352, 1, 0
  %v581 = vsel %vm353, 1, 0
  %v582 = vsel %vm354, 1, 0
  %v583 = vsel %vm355, 1, 0
  %v584 = vsel %vm356, 1, 0
  %v585 = vsel %vm357, 1, 0
  %v586 = vsel %vm358, 1, 0
  %v587 = vsel %vm359, 1, 0
  %v588 = vsel %vm360, 1, 0
  %v589 = vsel %vm361, 1, 0
  %v590 = vsel %vm362, 1, 0
  %v591 = vsel %vm363, 1, 0
  %v592 = vsel %vm364, 1, 0
  %v593 = vsel %vm365, 1, 0
  %v594 = vsel %vm366, 1, 0
  %v595 = vsel %vm367, 1, 0
  %v596 = vsel %vm368, 1, 0
  %v597 = vsel %vm369, 1, 0
  %v598 = vsel %vm370, 1, 0
  %v599 = vsel %vm371, 1, 0
  %v600 = vsel %vm372, 1, 0
  %v601 = vsel %vm373, 1, 0
  %v602 = vsel %vm374, 1, 0
  %v603 = vsel %vm375, 1, 0
  %v604 = vsel %vm376, 1, 0
  %v605 = vcvt.s32.f32 %v377
  %v606 = vcvt.s32.f32 %v378
  %v607 = vcvt.s32.f32 %v379
  %v608 = vcvt.s32.f32 %v380
  %v609 = vcvt.s32.f32 %v381
  %v610 = vcvt.s32.f32 %v382
  %v611 = vcvt.s32.f32 %v383
  %v612 = vcvt.s32.f32 %v384
  %v613 = vcvt.s32.f32 %v385
  %v614 = vcvt.s32.f32 %v386
  %v615 = vcvt.s32.f32 %v387
  %v616 = vcvt.s32.f32 %v388
  %v617 = vcvt.s32.f32 %v389
  %v618 = vcvt.s32.f32 %v390
  %v619 = vcvt.s32.f32 %v391
  %v620 = vcvt.s32.f32 %v392
  %v621 = vcvt.s32.f32 %v393
  %v622 = vcvt.s32.f32 %v394
  %v623 = vcvt.s32.f32 %v395
  %v624 = vcvt.s32.f32 %v396
  %v625 = vcvt.s32.f32 %v397
  %v626 = vcvt.s32.f32 %v398
  %v627 = vcvt.s32.f32 %v399
  %v628 = vcvt.s32.f32 %v400
  %v629 = vcvt.s32.f32 %v401
  %v630 = vcvt.s32.f32 %v402
  %v631 = vcvt.s32.f32 %v403
  %v632 = vcvt.s32.f32 %v404
  %v633 = vcvt.s32.f32 %v405
  %v634 = vcvt.s32.f32 %v406
  %v635 = vcvt.s32.f32 %v407
  %v636 = vcvt.s32.f32 %v408
  %v637 = vcvt.s32.f32 %v409
  %v638 = vcvt.s32.f32 %v410
  %v639 = vcvt.s32.f32 %v411
  %v640 = vcvt.s32.f32 %v412
  %v641 = vcvt.s32.f32 %v413
  %v642 = vcvt.s32.f32 %v414
  %v643 = vcvt.s32.f32 %v415
  %v644 = vcvt.s32.f32 %v416
  %v645 = vcvt.s32.f32 %v417
  %v646 = vcvt.s32.f32 %v418
  %v647 = vcvt.s32.f32 %v419
  %v648 = vcvt.s32.f32 %v420
  %v649 = vcvt.s32.f32 %v421
  %v650 = vcvt.s32.f32 %v422
  %v651 = vcvt.s32.f32 %v423
  %v652 = vcvt.s32.f32 %v424
  %v653 = vcvt.s32.f32 %v425
  %v654 = vcvt.s32.f32 %v426
  %v655 = vcvt.s32.f32 %v427
  %v656 = vcvt.s32.f32 %v428
  %v657 = vcvt.s32.f32 %v429
  %v658 = vcvt.s32.f32 %v430
  %v659 = vcvt.s32.f32 %v431
  %v660 = vcvt.s32.f32 %v432
  %v661 = vcvt.s32.f32 %v433
  %v662 = vcvt.s32.f32 %v434
  %v663 = vcvt.s32.f32 %v435
  %v664 = vcvt.s32.f32 %v436
  %v665 = vcvt.s32.f32 %v437
  %v666 = vcvt.s32.f32 %v438
  %v667 = vcvt.s32.f32 %v439
  %v668 = vcvt.s32.f32 %v440
  %v669 = vcvt.s32.f32 %v441
  %v670 = vcvt.s32.f32 %v442
  %v671 = vcvt.s32.f32 %v443
  %v672 = vcvt.s32.f32 %v444
  %v673 = vcvt.s32.f32 %v445
  %v674 = vcvt.s32.f32 %v446
  %v675 = vcvt.s32.f32 %v447
  %v676 = vcvt.s32.f32 %v448
  %v677 = vcvt.s32.f32 %v449
  %v678 = vcvt.s32.f32 %v450
  %v679 = vcvt.s32.f32 %v451
  %v680 = vcvt.s32.f32 %v452
  %v681 = vcvt.s32.f32 %v453
  %v682 = vcvt.s32.f32 %v454
  %v683 = vcvt.s32.f32 %v455
  %v684 = vcvt.s32.f32 %v456
  %v685 = vcvt.s32.f32 %v457
  %v686 = vcvt.s32.f32 %v458
  %v687 = vcvt.s32.f32 %v459
  %v688 = vcvt.s32.f32 %v460
  %v689 = vcvt.s32.f32 %v461
  %v690 = vcvt.s32.f32 %v462
  %v691 = vcvt.s32.f32 %v463
  %v692 = vcvt.s32.f32 %v464
  %v693 = vcvt.s32.f32 %v465
  %v694 = vcvt.s32.f32 %v466
  %v695 = vcvt.s32.f32 %v467
  %v696 = vcvt.s32.f32 %v468
  %v697 = vcvt.s32.f32 %v469
  %v698 = vcvt.s32.f32 %v470
  %v699 = vcvt.s32.f32 %v471
  %v700 = vcvt.s32.f32 %v472
  %v701 = vcvt.s32.f32 %v473
  %v702 = vcvt.s32.f32 %v474
  %v703 = vcvt.s32.f32 %v475
  %v704 = vcvt.s32.f32 %v476
  %v705 = vcvt.s32.f32 %v477
  %v706 = vcvt.s32.f32 %v478
  %v707 = vcvt.s32.f32 %v479
  %v708 = vcvt.s32.f32 %v480
  %v709 = vcvt.s32.f32 %v481
  %v710 = vcvt.s32.f32 %v482
  %v711 = vcvt.s32.f32 %v483
  %v712 = vcvt.s32.f32 %v484
  %v713 = vcvt.s32.f32 %v485
  %v714 = vcvt.s32.f32 %v486
  %v715 = vcvt.s32.f32 %v487
  %v716 = vcvt.s32.f32 %v488
  %v717 = vcvt.s32.f32 %v489
  %v718 = vcvt.s32.f32 %v490
  %v719 = vcvt.s32.f32 %v491
  %v720 = vcvt.s32.f32 %v492
  %v721 = vcvt.s32.f32 %v493
  %v722 = vcvt.s32.f32 %v494
  %v723 = vcvt.s32.f32 %v495
  %v724 = vcvt.s32.f32 %v496
  %v725 = vcvt.s32.f32 %v497
  %v726 = vcvt.s32.f32 %v498
  %v727 = vcvt.s32.f32 %v499
  %v728 = vcvt.s32.f32 %v500
  %v729 = vcvt.s32.f32 %v501
  %v730 = vcvt.s32.f32 %v502
  %v731 = vcvt.s32.f32 %v503
  %v732 = vcvt.s32.f32 %v504
  %v733 = vcvt.s32.f32 %v505
  %v734 = vcvt.s32.f32 %v506
  %v735 = vcvt.s32.f32 %v507
  %v736 = vcvt.s32.f32 %v508
  %v737 = vcvt.s32.f32 %v509
  %v738 = vcvt.s32.f32 %v510
  %v739 = vcvt.s32.f32 %v511
  %v740 = vcvt.s32.f32 %v512
  %v741 = vcvt.s32.f32 %v513
  %v742 = vcvt.s32.f32 %v514
  %v743 = vcvt.s32.f32 %v515
  %v744 = vcvt.s32.f32 %v516
  %v745 = vcvt.s32.f32 %v517
  %v746 = vcvt.s32.f32 %v518
  %v747 = vcvt.s32.f32 %v519
  %v748 = vcvt.s32.f32 %v520
  %v749 = vcvt.s32.f32 %v521
  %v750 = vcvt.s32.f32 %v522
  %v751 = vcvt.s32.f32 %v523
  %v752 = vcvt.s32.f32 %v524
  %v753 = vcvt.s32.f32 %v525
  %v754 = vcvt.s32.f32 %v526
  %v755 = vcvt.s32.f32 %v527
  %v756 = vcvt.s32.f32 %v528
  %v757 = vcvt.s32.f32 %v529
  %v758 = vcvt.s32.f32 %v530
  %v759 = vcvt.s32.f32 %v531
  %v760 = vcvt.s32.f32 %v532
  %v761 = vcvt.s32.f32 %v533
  %v762 = vcvt.s32.f32 %v534
  %v763 = vcvt.s32.f32 %v535
  %v764 = vcvt.s32.f32 %v536
  %v765 = vcvt.s32.f32 %v537
  %v766 = vcvt.s32.f32 %v538
  %v767 = vcvt.s32.f32 %v539
  %v768 = vcvt.s32.f32 %v540
  %v769 = vcvt.s32.f32 %v541
  %v770 = vcvt.s32.f32 %v542
  %v771 = vcvt.s32.f32 %v543
  %v772 = vcvt.s32.f32 %v544
  %v773 = vcvt.s32.f32 %v545
  %v774 = vcvt.s32.f32 %v546
  %v775 = vcvt.s32.f32 %v547
  %v776 = vcvt.s32.f32 %v548
  %v777 = vcvt.s32.f32 %v549
  %v778 = vcvt.s32.f32 %v550
  %v779 = vcvt.s32.f32 %v551
  %v780 = vcvt.s32.f32 %v552
  %v781 = vcvt.s32.f32 %v553
  %v782 = vcvt.s32.f32 %v554
  %v783 = vcvt.s32.f32 %v555
  %v784 = vcvt.s32.f32 %v556
  %v785 = vcvt.s32.f32 %v557
  %v786 = vcvt.s32.f32 %v558
  %v787 = vcvt.s32.f32 %v559
  %v788 = vcvt.s32.f32 %v560
  %v789 = vcvt.s32.f32 %v561
  %v790 = vcvt.s32.f32 %v562
  %v791 = vcvt.s32.f32 %v563
  %v792 = vcvt.s32.f32 %v564
  %v793 = vcvt.s32.f32 %v565
  %v794 = vcvt.s32.f32 %v566
  %v795 = vcvt.s32.f32 %v567
  %v796 = vcvt.s32.f32 %v568
  %v797 = vcvt.s32.f32 %v569
  %v798 = vcvt.s32.f32 %v570
  %v799 = vcvt.s32.f32 %v571
  %v800 = vcvt.s32.f32 %v572
  %v801 = vcvt.s32.f32 %v573
  %v802 = vcvt.s32.f32 %v574
  %v803 = vcvt.s32.f32 %v575
  %v804 = vcvt.s32.f32 %v576
  %v805 = vcvt.s32.f32 %v577
  %v806 = vcvt.s32.f32 %v578
  %v807 = vcvt.s32.f32 %v579
  %v808 = vcvt.s32.f32 %v580
  %v809 = vcvt.s32.f32 %v581
  %v810 = vcvt.s32.f32 %v582
  %v811 = vcvt.s32.f32 %v583
  %v812 = vcvt.s32.f32 %v584
  %v813 = vcvt.s32.f32 %v585
  %v814 = vcvt.s32.f32 %v586
  %v815 = vcvt.s32.f32 %v587
  %v816 = vcvt.s32.f32 %v588
  %v817 = vcvt.s32.f32 %v589
  %v818 = vcvt.s32.f32 %v590
  %v819 = vcvt.s32.f32 %v591
  %v820 = vcvt.s32.f32 %v592
  %v821 = vcvt.s32.f32 %v593
  %v822 = vcvt.s32.f32 %v594
  %v823 = vcvt.s32.f32 %v595
  %v824 = vcvt.s32.f32 %v596
  %v825 = vcvt.s32.f32 %v597
  %v826 = vcvt.s32.f32 %v598
  %v827 = vcvt.s32.f32 %v599
  %v828 = vcvt.s32.f32 %v600
  %v829 = vcvt.s32.f32 %v601
  %v830 = vcvt.s32.f32 %v602
  %v831 = vcvt.s32.f32 %v603
  %v832 = vcvt.s32.f32 %v604
  %v833 = vadd.f32 %v605, 0.0
  %v834 = vadd.f32 %v606, 0.0
  %v835 = vadd.f32 %v607, 0.0
  %v836 = vadd.f32 %v608, 0.0
  %v837 = vadd.f32 %v609, 0.0
  %v838 = vadd.f32 %v610, 0.0
  %v839 = vadd.f32 %v611, 0.0
  %v840 = vadd.f32 %v612, 0.0
  %v841 = vadd.f32 %v613, 0.0
  %v842 = vadd.f32 %v614, 0.0
  %v843 = vadd.f32 %v615, 0.0
  %v844 = vadd.f32 %v616, 0.0
  %v845 = vadd.f32 %v617, 0.0
  %v846 = vadd.f32 %v618, 0.0
  %v847 = vadd.f32 %v619, 0.0
  %v848 = vadd.f32 %v620, 0.0
  %v849 = vadd.f32 %v621, 0.0
  %v850 = vadd.f32 %v622, 0.0
  %v851 = vadd.f32 %v623, 0.0
  %v852 = vadd.f32 %v624, 0.0
  %v853 = vadd.f32 %v625, 0.0
  %v854 = vadd.f32 %v626, 0.0
  %v855 = vadd.f32 %v627, 0.0
  %v856 = vadd.f32 %v628, 0.0
  %v857 = vadd.f32 %v629, 0.0
  %v858 = vadd.f32 %v630, 0.0
  %v859 = vadd.f32 %v631, 0.0
  %v860 = vadd.f32 %v632, 0.0
  %v861 = vadd.f32 %v633, 0.0
  %v862 = vadd.f32 %v634, 0.0
  %v863 = vadd.f32 %v635, 0.0
  %v864 = vadd.f32 %v636, 0.0
  %v865 = vadd.f32 %v637, 0.0
  %v866 = vadd.f32 %v638, 0.0
  %v867 = vadd.f32 %v639, 0.0
  %v868 = vadd.f32 %v640, 0.0
  %v869 = vadd.f32 %v641, 0.0
  %v870 = vadd.f32 %v642, 0.0
  %v871 = vadd.f32 %v643, 0.0
  %v872 = vadd.f32 %v644, 0.0
  %v873 = vadd.f32 %v645, 0.0
  %v874 = vadd.f32 %v646, 0.0
  %v875 = vadd.f32 %v647, 0.0
  %v876 = vadd.f32 %v648, 0.0
  %v877 = vadd.f32 %v649, 0.0
  %v878 = vadd.f32 %v650, 0.0
  %v879 = vadd.f32 %v651, 0.0
  %v880 = vadd.f32 %v652, 0.0
  %v881 = vadd.f32 %v653, 0.0
  %v882 = vadd.f32 %v654, 0.0
  %v883 = vadd.f32 %v655, 0.0
  %v884 = vadd.f32 %v656, 0.0
  %v885 = vadd.f32 %v657, 0.0
  %v886 = vadd.f32 %v658, 0.0
  %v887 = vadd.f32 %v659, 0.0
  %v888 = vadd.f32 %v660, 0.0
  %v889 = vadd.f32 %v661, 0.0
  %v890 = vadd.f32 %v662, 0.0
  %v891 = vadd.f32 %v663, 0.0
  %v892 = vadd.f32 %v664, 0.0
  %v893 = vadd.f32 %v665, 0.0
  %v894 = vadd.f32 %v666, 0.0
  %v895 = vadd.f32 %v667, 0.0
  %v896 = vadd.f32 %v668, 0.0
  %v897 = vadd.f32 %v669, 0.0
  %v898 = vadd.f32 %v670, 0.0
  %v899 = vadd.f32 %v671, 0.0
  %v900 = vadd.f32 %v672, 0.0
  %v901 = vadd.f32 %v673, 0.0
  %v902 = vadd.f32 %v674, 0.0
  %v903 = vadd.f32 %v675, 0.0
  %v904 = vadd.f32 %v676, 0.0
  %v905 = vadd.f32 %v677, 0.0
  %v906 = vadd.f32 %v678, 0.0
  %v907 = vadd.f32 %v679, 0.0
  %v908 = vadd.f32 %v680, 0.0
  %v909 = vadd.f32 %v681, 0.0
  %v910 = vadd.f32 %v682, 0.0
  %v911 = vadd.f32 %v683, 0.0
  %v912 = vadd.f32 %v684, 0.0
  %v913 = vadd.f32 %v685, 0.0
  %v914 = vadd.f32 %v686, 0.0
  %v915 = vadd.f32 %v687, 0.0
  %v916 = vadd.f32 %v688, 0.0
  %v917 = vadd.f32 %v689, 0.0
  %v918 = vadd.f32 %v690, 0.0
  %v919 = vadd.f32 %v691, 0.0
  %v920 = vadd.f32 %v692, 0.0
  %v921 = vadd.f32 %v693, 0.0
  %v922 = vadd.f32 %v694, 0.0
  %v923 = vadd.f32 %v695, 0.0
  %v924 = vadd.f32 %v696, 0.0
  %v925 = vadd.f32 %v697, 0.0
  %v926 = vadd.f32 %v698, 0.0
  %v927 = vadd.f32 %v699, 0.0
  %v928 = vadd.f32 %v700, 0.0
  %v929 = vadd.f32 %v701, 0.0
  %v930 = vadd.f32 %v702, 0.0
  %v931 = vadd.f32 %v703, 0.0
  %v932 = vadd.f32 %v704, 0.0
  %v933 = vadd.f32 %v705, 0.0
  %v934 = vadd.f32 %v706, 0.0
  %v935 = vadd.f32 %v707, 0.0
  %v936 = vadd.f32 %v708, 0.0
  %v937 = vadd.f32 %v709, 0.0
  %v938 = vadd.f32 %v710, 0.0
  %v939 = vadd.f32 %v711, 0.0
  %v940 = vadd.f32 %v712, 0.0
  %v941 = vadd.f32 %v713, 0.0
  %v942 = vadd.f32 %v714, 0.0
  %v943 = vadd.f32 %v715, 0.0
  %v944 = vadd.f32 %v716, 0.0
  %v945 = vadd.f32 %v717, 0.0
  %v946 = vadd.f32 %v718, 0.0
  %v947 = vadd.f32 %v719, 0.0
  %v948 = vadd.f32 %v720, 0.0
  %v949 = vadd.f32 %v721, 0.0
  %v950 = vadd.f32 %v722, 0.0
  %v951 = vadd.f32 %v723, 0.0
  %v952 = vadd.f32 %v724, 0.0
  %v953 = vadd.f32 %v725, 0.0
  %v954 = vadd.f32 %v726, 0.0
  %v955 = vadd.f32 %v727, 0.0
  %v956 = vadd.f32 %v728, 0.0
  %v957 = vadd.f32 %v729, 0.0
  %v958 = vadd.f32 %v730, 0.0
  %v959 = vadd.f32 %v731, 0.0
  %v960 = vadd.f32 %v732, 0.0
  %v961 = vadd.f32 %v733, 0.0
  %v962 = vadd.f32 %v734, 0.0
  %v963 = vadd.f32 %v735, 0.0
  %v964 = vadd.f32 %v736, 0.0
  %v965 = vadd.f32 %v737, 0.0
  %v966 = vadd.f32 %v738, 0.0
  %v967 = vadd.f32 %v739, 0.0
  %v968 = vadd.f32 %v740, 0.0
  %v969 = vadd.f32 %v741, 0.0
  %v970 = vadd.f32 %v742, 0.0
  %v971 = vadd.f32 %v743, 0.0
  %v972 = vadd.f32 %v744, 0.0
  %v973 = vadd.f32 %v745, 0.0
  %v974 = vadd.f32 %v746, 0.0
  %v975 = vadd.f32 %v747, 0.0
  %v976 = vadd.f32 %v748, 0.0
  %v977 = vadd.f32 %v749, 0.0
  %v978 = vadd.f32 %v750, 0.0
  %v979 = vadd.f32 %v751, 0.0
  %v980 = vadd.f32 %v752, 0.0
  %v981 = vadd.f32 %v753, 0.0
  %v982 = vadd.f32 %v754, 0.0
  %v983 = vadd.f32 %v755, 0.0
  %v984 = vadd.f32 %v756, 0.0
  %v985 = vadd.f32 %v757, 0.0
  %v986 = vadd.f32 %v758, 0.0
  %v987 = vadd.f32 %v759, 0.0
  %v988 = vadd.f32 %v760, 0.0
  %v989 = vadd.f32 %v761, 0.0
  %v990 = vadd.f32 %v762, 0.0
  %v991 = vadd.f32 %v763, 0.0
  %v992 = vadd.f32 %v764, 0.0
  %v993 = vadd.f32 %v765, 0.0
  %v994 = vadd.f32 %v766, 0.0
  %v995 = vadd.f32 %v767, 0.0
  %v996 = vadd.f32 %v768, 0.0
  %v997 = vadd.f32 %v769, 0.0
  %v998 = vadd.f32 %v770, 0.0
  %v999 = vadd.f32 %v771, 0.0
  %v1000 = vadd.f32 %v772, 0.0
  %v1001 = vadd.f32 %v773, 0.0
  %v1002 = vadd.f32 %v774, 0.0
  %v1003 = vadd.f32 %v775, 0.0
  %v1004 = vadd.f32 %v776, 0.0
  %v1005 = vadd.f32 %v777, 0.0
  %v1006 = vadd.f32 %v778, 0.0
  %v1007 = vadd.f32 %v779, 0.0
  %v1008 = vadd.f32 %v780, 0.0
  %v1009 = vadd.f32 %v781, 0.0
  %v1010 = vadd.f32 %v782, 0.0
  %v1011 = vadd.f32 %v783, 0.0
  %v1012 = vadd.f32 %v784, 0.0
  %v1013 = vadd.f32 %v785, 0.0
  %v1014 = vadd.f32 %v786, 0.0
  %v1015 = vadd.f32 %v787, 0.0
  %v1016 = vadd.f32 %v788, 0.0
  %v1017 = vadd.f32 %v789, 0.0
  %v1018 = vadd.f32 %v790, 0.0
  %v1019 = vadd.f32 %v791, 0.0
  %v1020 = vadd.f32 %v792, 0.0
  %v1021 = vadd.f32 %v793, 0.0
  %v1022 = vadd.f32 %v794, 0.0
  %v1023 = vadd.f32 %v795, 0.0
  %v1024 = vadd.f32 %v796, 0.0
  %v1025 = vadd.f32 %v797, 0.0
  %v1026 = vadd.f32 %v798, 0.0
  %v1027 = vadd.f32 %v799, 0.0
  %v1028 = vadd.f32 %v800, 0.0
  %v1029 = vadd.f32 %v801, 0.0
  %v1030 = vadd.f32 %v802, 0.0
  %v1031 = vadd.f32 %v803, 0.0
  %v1032 = vadd.f32 %v804, 0.0
  %v1033 = vadd.f32 %v805, 0.0
  %v1034 = vadd.f32 %v806, 0.0
  %v1035 = vadd.f32 %v807, 0.0
  %v1036 = vadd.f32 %v808, 0.0
  %v1037 = vadd.f32 %v809, 0.0
  %v1038 = vadd.f32 %v810, 0.0
  %v1039 = vadd.f32 %v811, 0.0
  %v1040 = vadd.f32 %v812, 0.0
  %v1041 = vadd.f32 %v813, 0.0
  %v1042 = vadd.f32 %v814, 0.0
  %v1043 = vadd.f32 %v815, 0.0
  %v1044 = vadd.f32 %v816, 0.0
  %v1045 = vadd.f32 %v817, 0.0
  %v1046 = vadd.f32 %v818, 0.0
  %v1047 = vadd.f32 %v819, 0.0
  %v1048 = vadd.f32 %v820, 0.0
  %v1049 = vadd.f32 %v821, 0.0
  %v1050 = vadd.f32 %v822, 0.0
  %v1051 = vadd.f32 %v823, 0.0
  %v1052 = vadd.f32 %v824, 0.0
  %v1053 = vadd.f32 %v825, 0.0
  %v1054 = vadd.f32 %v826, 0.0
  %v1055 = vadd.f32 %v827, 0.0
  %v1056 = vadd.f32 %v828, 0.0
  %v1057 = vadd.f32 %v829, 0.0
  %v1058 = vadd.f32 %v830, 0.0
  %v1059 = vadd.f32 %v831, 0.0
  %v1060 = vadd.f32 %v832, 0.0
  %v1061 = vlaneseq
  %v1062 = vshrl.u32 %v1061, 7
  %v1063 = vsub.s32 1, %v1062
  %v1064 = vrot.slane %v27, %v1063
  %v1065 = vlaneseq
  %v1066 = vshrl.u32 %v1065, 7
  %v1067 = vsub.s32 5, %v1066
  %v1068 = vrot.slane %v27, %v1067
  %v1069 = vlaneseq
  %v1070 = vshrl.u32 %v1069, 7
  %v1071 = vsub.s32 1, %v1070
  %v1072 = vrot.slane %v28, %v1071
  %v1073 = vlaneseq
  %v1074 = vshrl.u32 %v1073, 7
  %v1075 = vsub.s32 5, %v1074
  %v1076 = vrot.slane %v28, %v1075
  %v1077 = vlaneseq
  %v1078 = vshrl.u32 %v1077, 7
  %v1079 = vsub.s32 1, %v1078
  %v1080 = vrot.slane %v29, %v1079
  %v1081 = vlaneseq
  %v1082 = vshrl.u32 %v1081, 7
  %v1083 = vsub.s32 5, %v1082
  %v1084 = vrot.slane %v29, %v1083
  %v1085 = vlaneseq
  %v1086 = vshrl.u32 %v1085, 7
  %v1087 = vsub.s32 1, %v1086
  %v1088 = vrot.slane %v30, %v1087
  %v1089 = vlaneseq
  %v1090 = vshrl.u32 %v1089, 7
  %v1091 = vsub.s32 5, %v1090
  %v1092 = vrot.slane %v30, %v1091
  %v1093 = vlaneseq
  %v1094 = vshrl.u32 %v1093, 7
  %v1095 = vsub.s32 1, %v1094
  %v1096 = vrot.slane %v31, %v1095
  %v1097 = vlaneseq
  %v1098 = vshrl.u32 %v1097, 7
  %v1099 = vsub.s32 5, %v1098
  %v1100 = vrot.slane %v31, %v1099
  %v1101 = vlaneseq
  %v1102 = vshrl.u32 %v1101, 7
  %v1103 = vsub.s32 1, %v1102
  %v1104 = vrot.slane %v32, %v1103
  %v1105 = vlaneseq
  %v1106 = vshrl.u32 %v1105, 7
  %v1107 = vsub.s32 5, %v1106
  %v1108 = vrot.slane %v32, %v1107
  %v1109 = vlaneseq
  %v1110 = vshrl.u32 %v1109, 7
  %v1111 = vsub.s32 1, %v1110
  %v1112 = vrot.slane %v1064, %v1111
  %v1113 = vlaneseq
  %v1114 = vshrl.u32 %v1113, 7
  %v1115 = vsub.s32 1, %v1114
  %v1116 = vrot.slane %v1068, %v1115
  %v1117 = vlaneseq
  %v1118 = vshrl.u32 %v1117, 7
  %v1119 = vsub.s32 1, %v1118
  %v1120 = vrot.slane %v1072, %v1119
  %v1121 = vlaneseq
  %v1122 = vshrl.u32 %v1121, 7
  %v1123 = vsub.s32 1, %v1122
  %v1124 = vrot.slane %v1076, %v1123
  %v1125 = vlaneseq
  %v1126 = vshrl.u32 %v1125, 7
  %v1127 = vsub.s32 1, %v1126
  %v1128 = vrot.slane %v1080, %v1127
  %v1129 = vlaneseq
  %v1130 = vshrl.u32 %v1129, 7
  %v1131 = vsub.s32 1, %v1130
  %v1132 = vrot.slane %v1084, %v1131
  %v1133 = vlaneseq
  %v1134 = vshrl.u32 %v1133, 7
  %v1135 = vsub.s32 1, %v1134
  %v1136 = vrot.slane %v1088, %v1135
  %v1137 = vlaneseq
  %v1138 = vshrl.u32 %v1137, 7
  %v1139 = vsub.s32 1, %v1138
  %v1140 = vrot.slane %v1092, %v1139
  %v1141 = vlaneseq
  %v1142 = vshrl.u32 %v1141, 7
  %v1143 = vsub.s32 1, %v1142
  %v1144 = vrot.slane %v1096, %v1143
  %v1145 = vlaneseq
  %v1146 = vshrl.u32 %v1145, 7
  %v1147 = vsub.s32 1, %v1146
  %v1148 = vrot.slane %v1100, %v1147
  %v1149 = vlaneseq
  %v1150 = vshrl.u32 %v1149, 7
  %v1151 = vsub.s32 1, %v1150
  %v1152 = vrot.slane %v1104, %v1151
  %v1153 = vlaneseq
  %v1154 = vshrl.u32 %v1153, 7
  %v1155 = vsub.s32 1, %v1154
  %v1156 = vrot.slane %v1108, %v1155
  %vm1157 = vcmp.eq.s32.totalorder %v34, %v1112
  %vm1158 = vcmp.eq.s32.totalorder %v34, %v1116
  %vm1159 = vcmp.eq.s32.totalorder %v34, %v1120
  %vm1160 = vcmp.eq.s32.totalorder %v34, %v1124
  %vm1161 = vcmp.eq.s32.totalorder %v34, %v1128
  %vm1162 = vcmp.eq.s32.totalorder %v34, %v1132
  %vm1163 = vcmp.eq.s32.totalorder %v34, %v1136
  %vm1164 = vcmp.eq.s32.totalorder %v34, %v1140
  %vm1165 = vcmp.eq.s32.totalorder %v34, %v1144
  %vm1166 = vcmp.eq.s32.totalorder %v34, %v1148
  %vm1167 = vcmp.eq.s32.totalorder %v34, %v1152
  %vm1168 = vcmp.eq.s32.totalorder %v34, %v1156
  %vm1169 = vcmp.eq.s32.totalorder %v35, %v1112
  %vm1170 = vcmp.eq.s32.totalorder %v35, %v1116
  %vm1171 = vcmp.eq.s32.totalorder %v35, %v1120
  %vm1172 = vcmp.eq.s32.totalorder %v35, %v1124
  %vm1173 = vcmp.eq.s32.totalorder %v35, %v1128
  %vm1174 = vcmp.eq.s32.totalorder %v35, %v1132
  %vm1175 = vcmp.eq.s32.totalorder %v35, %v1136
  %vm1176 = vcmp.eq.s32.totalorder %v35, %v1140
  %vm1177 = vcmp.eq.s32.totalorder %v35, %v1144
  %vm1178 = vcmp.eq.s32.totalorder %v35, %v1148
  %vm1179 = vcmp.eq.s32.totalorder %v35, %v1152
  %vm1180 = vcmp.eq.s32.totalorder %v35, %v1156
  %vm1181 = vcmp.eq.s32.totalorder %v36, %v1112
  %vm1182 = vcmp.eq.s32.totalorder %v36, %v1116
  %vm1183 = vcmp.eq.s32.totalorder %v36, %v1120
  %vm1184 = vcmp.eq.s32.totalorder %v36, %v1124
  %vm1185 = vcmp.eq.s32.totalorder %v36, %v1128
  %vm1186 = vcmp.eq.s32.totalorder %v36, %v1132
  %vm1187 = vcmp.eq.s32.totalorder %v36, %v1136
  %vm1188 = vcmp.eq.s32.totalorder %v36, %v1140
  %vm1189 = vcmp.eq.s32.totalorder %v36, %v1144
  %vm1190 = vcmp.eq.s32.totalorder %v36, %v1148
  %vm1191 = vcmp.eq.s32.totalorder %v36, %v1152
  %vm1192 = vcmp.eq.s32.totalorder %v36, %v1156
  %vm1193 = vcmp.eq.s32.totalorder %v37, %v1112
  %vm1194 = vcmp.eq.s32.totalorder %v37, %v1116
  %vm1195 = vcmp.eq.s32.totalorder %v37, %v1120
  %vm1196 = vcmp.eq.s32.totalorder %v37, %v1124
  %vm1197 = vcmp.eq.s32.totalorder %v37, %v1128
  %vm1198 = vcmp.eq.s32.totalorder %v37, %v1132
  %vm1199 = vcmp.eq.s32.totalorder %v37, %v1136
  %vm1200 = vcmp.eq.s32.totalorder %v37, %v1140
  %vm1201 = vcmp.eq.s32.totalorder %v37, %v1144
  %vm1202 = vcmp.eq.s32.totalorder %v37, %v1148
  %vm1203 = vcmp.eq.s32.totalorder %v37, %v1152
  %vm1204 = vcmp.eq.s32.totalorder %v37, %v1156
  %vm1205 = vcmp.eq.s32.totalorder %v38, %v1112
  %vm1206 = vcmp.eq.s32.totalorder %v38, %v1116
  %vm1207 = vcmp.eq.s32.totalorder %v38, %v1120
  %vm1208 = vcmp.eq.s32.totalorder %v38, %v1124
  %vm1209 = vcmp.eq.s32.totalorder %v38, %v1128
  %vm1210 = vcmp.eq.s32.totalorder %v38, %v1132
  %vm1211 = vcmp.eq.s32.totalorder %v38, %v1136
  %vm1212 = vcmp.eq.s32.totalorder %v38, %v1140
  %vm1213 = vcmp.eq.s32.totalorder %v38, %v1144
  %vm1214 = vcmp.eq.s32.totalorder %v38, %v1148
  %vm1215 = vcmp.eq.s32.totalorder %v38, %v1152
  %vm1216 = vcmp.eq.s32.totalorder %v38, %v1156
  %vm1217 = vcmp.eq.s32.totalorder %v39, %v1112
  %vm1218 = vcmp.eq.s32.totalorder %v39, %v1116
  %vm1219 = vcmp.eq.s32.totalorder %v39, %v1120
  %vm1220 = vcmp.eq.s32.totalorder %v39, %v1124
  %vm1221 = vcmp.eq.s32.totalorder %v39, %v1128
  %vm1222 = vcmp.eq.s32.totalorder %v39, %v1132
  %vm1223 = vcmp.eq.s32.totalorder %v39, %v1136
  %vm1224 = vcmp.eq.s32.totalorder %v39, %v1140
  %vm1225 = vcmp.eq.s32.totalorder %v39, %v1144
  %vm1226 = vcmp.eq.s32.totalorder %v39, %v1148
  %vm1227 = vcmp.eq.s32.totalorder %v39, %v1152
  %vm1228 = vcmp.eq.s32.totalorder %v39, %v1156
  %vm1229 = vcmp.eq.s32.totalorder %v40, %v1112
  %vm1230 = vcmp.eq.s32.totalorder %v40, %v1116
  %vm1231 = vcmp.eq.s32.totalorder %v40, %v1120
  %vm1232 = vcmp.eq.s32.totalorder %v40, %v1124
  %vm1233 = vcmp.eq.s32.totalorder %v40, %v1128
  %vm1234 = vcmp.eq.s32.totalorder %v40, %v1132
  %vm1235 = vcmp.eq.s32.totalorder %v40, %v1136
  %vm1236 = vcmp.eq.s32.totalorder %v40, %v1140
  %vm1237 = vcmp.eq.s32.totalorder %v40, %v1144
  %vm1238 = vcmp.eq.s32.totalorder %v40, %v1148
  %vm1239 = vcmp.eq.s32.totalorder %v40, %v1152
  %vm1240 = vcmp.eq.s32.totalorder %v40, %v1156
  %vm1241 = vcmp.eq.s32.totalorder %v41, %v1112
  %vm1242 = vcmp.eq.s32.totalorder %v41, %v1116
  %vm1243 = vcmp.eq.s32.totalorder %v41, %v1120
  %vm1244 = vcmp.eq.s32.totalorder %v41, %v1124
  %vm1245 = vcmp.eq.s32.totalorder %v41, %v1128
  %vm1246 = vcmp.eq.s32.totalorder %v41, %v1132
  %vm1247 = vcmp.eq.s32.totalorder %v41, %v1136
  %vm1248 = vcmp.eq.s32.totalorder %v41, %v1140
  %vm1249 = vcmp.eq.s32.totalorder %v41, %v1144
  %vm1250 = vcmp.eq.s32.totalorder %v41, %v1148
  %vm1251 = vcmp.eq.s32.totalorder %v41, %v1152
  %vm1252 = vcmp.eq.s32.totalorder %v41, %v1156
  %vm1253 = vcmp.eq.s32.totalorder %v42, %v1112
  %vm1254 = vcmp.eq.s32.totalorder %v42, %v1116
  %vm1255 = vcmp.eq.s32.totalorder %v42, %v1120
  %vm1256 = vcmp.eq.s32.totalorder %v42, %v1124
  %vm1257 = vcmp.eq.s32.totalorder %v42, %v1128
  %vm1258 = vcmp.eq.s32.totalorder %v42, %v1132
  %vm1259 = vcmp.eq.s32.totalorder %v42, %v1136
  %vm1260 = vcmp.eq.s32.totalorder %v42, %v1140
  %vm1261 = vcmp.eq.s32.totalorder %v42, %v1144
  %vm1262 = vcmp.eq.s32.totalorder %v42, %v1148
  %vm1263 = vcmp.eq.s32.totalorder %v42, %v1152
  %vm1264 = vcmp.eq.s32.totalorder %v42, %v1156
  %vm1265 = vcmp.eq.s32.totalorder %v43, %v1112
  %vm1266 = vcmp.eq.s32.totalorder %v43, %v1116
  %vm1267 = vcmp.eq.s32.totalorder %v43, %v1120
  %vm1268 = vcmp.eq.s32.totalorder %v43, %v1124
  %vm1269 = vcmp.eq.s32.totalorder %v43, %v1128
  %vm1270 = vcmp.eq.s32.totalorder %v43, %v1132
  %vm1271 = vcmp.eq.s32.totalorder %v43, %v1136
  %vm1272 = vcmp.eq.s32.totalorder %v43, %v1140
  %vm1273 = vcmp.eq.s32.totalorder %v43, %v1144
  %vm1274 = vcmp.eq.s32.totalorder %v43, %v1148
  %vm1275 = vcmp.eq.s32.totalorder %v43, %v1152
  %vm1276 = vcmp.eq.s32.totalorder %v43, %v1156
  %vm1277 = vcmp.eq.s32.totalorder %v44, %v1112
  %vm1278 = vcmp.eq.s32.totalorder %v44, %v1116
  %vm1279 = vcmp.eq.s32.totalorder %v44, %v1120
  %vm1280 = vcmp.eq.s32.totalorder %v44, %v1124
  %vm1281 = vcmp.eq.s32.totalorder %v44, %v1128
  %vm1282 = vcmp.eq.s32.totalorder %v44, %v1132
  %vm1283 = vcmp.eq.s32.totalorder %v44, %v1136
  %vm1284 = vcmp.eq.s32.totalorder %v44, %v1140
  %vm1285 = vcmp.eq.s32.totalorder %v44, %v1144
  %vm1286 = vcmp.eq.s32.totalorder %v44, %v1148
  %vm1287 = vcmp.eq.s32.totalorder %v44, %v1152
  %vm1288 = vcmp.eq.s32.totalorder %v44, %v1156
  %vm1289 = vcmp.eq.s32.totalorder %v45, %v1112
  %vm1290 = vcmp.eq.s32.totalorder %v45, %v1116
  %vm1291 = vcmp.eq.s32.totalorder %v45, %v1120
  %vm1292 = vcmp.eq.s32.totalorder %v45, %v1124
  %vm1293 = vcmp.eq.s32.totalorder %v45, %v1128
  %vm1294 = vcmp.eq.s32.totalorder %v45, %v1132
  %vm1295 = vcmp.eq.s32.totalorder %v45, %v1136
  %vm1296 = vcmp.eq.s32.totalorder %v45, %v1140
  %vm1297 = vcmp.eq.s32.totalorder %v45, %v1144
  %vm1298 = vcmp.eq.s32.totalorder %v45, %v1148
  %vm1299 = vcmp.eq.s32.totalorder %v45, %v1152
  %vm1300 = vcmp.eq.s32.totalorder %v45, %v1156
  %vm1301 = vcmp.eq.s32.totalorder %v46, %v1112
  %vm1302 = vcmp.eq.s32.totalorder %v46, %v1116
  %vm1303 = vcmp.eq.s32.totalorder %v46, %v1120
  %vm1304 = vcmp.eq.s32.totalorder %v46, %v1124
  %vm1305 = vcmp.eq.s32.totalorder %v46, %v1128
  %vm1306 = vcmp.eq.s32.totalorder %v46, %v1132
  %vm1307 = vcmp.eq.s32.totalorder %v46, %v1136
  %vm1308 = vcmp.eq.s32.totalorder %v46, %v1140
  %vm1309 = vcmp.eq.s32.totalorder %v46, %v1144
  %vm1310 = vcmp.eq.s32.totalorder %v46, %v1148
  %vm1311 = vcmp.eq.s32.totalorder %v46, %v1152
  %vm1312 = vcmp.eq.s32.totalorder %v46, %v1156
  %vm1313 = vcmp.eq.s32.totalorder %v47, %v1112
  %vm1314 = vcmp.eq.s32.totalorder %v47, %v1116
  %vm1315 = vcmp.eq.s32.totalorder %v47, %v1120
  %vm1316 = vcmp.eq.s32.totalorder %v47, %v1124
  %vm1317 = vcmp.eq.s32.totalorder %v47, %v1128
  %vm1318 = vcmp.eq.s32.totalorder %v47, %v1132
  %vm1319 = vcmp.eq.s32.totalorder %v47, %v1136
  %vm1320 = vcmp.eq.s32.totalorder %v47, %v1140
  %vm1321 = vcmp.eq.s32.totalorder %v47, %v1144
  %vm1322 = vcmp.eq.s32.totalorder %v47, %v1148
  %vm1323 = vcmp.eq.s32.totalorder %v47, %v1152
  %vm1324 = vcmp.eq.s32.totalorder %v47, %v1156
  %vm1325 = vcmp.eq.s32.totalorder %v48, %v1112
  %vm1326 = vcmp.eq.s32.totalorder %v48, %v1116
  %vm1327 = vcmp.eq.s32.totalorder %v48, %v1120
  %vm1328 = vcmp.eq.s32.totalorder %v48, %v1124
  %vm1329 = vcmp.eq.s32.totalorder %v48, %v1128
  %vm1330 = vcmp.eq.s32.totalorder %v48, %v1132
  %vm1331 = vcmp.eq.s32.totalorder %v48, %v1136
  %vm1332 = vcmp.eq.s32.totalorder %v48, %v1140
  %vm1333 = vcmp.eq.s32.totalorder %v48, %v1144
  %vm1334 = vcmp.eq.s32.totalorder %v48, %v1148
  %vm1335 = vcmp.eq.s32.totalorder %v48, %v1152
  %vm1336 = vcmp.eq.s32.totalorder %v48, %v1156
  %vm1337 = vcmp.eq.s32.totalorder %v49, %v1112
  %vm1338 = vcmp.eq.s32.totalorder %v49, %v1116
  %vm1339 = vcmp.eq.s32.totalorder %v49, %v1120
  %vm1340 = vcmp.eq.s32.totalorder %v49, %v1124
  %vm1341 = vcmp.eq.s32.totalorder %v49, %v1128
  %vm1342 = vcmp.eq.s32.totalorder %v49, %v1132
  %vm1343 = vcmp.eq.s32.totalorder %v49, %v1136
  %vm1344 = vcmp.eq.s32.totalorder %v49, %v1140
  %vm1345 = vcmp.eq.s32.totalorder %v49, %v1144
  %vm1346 = vcmp.eq.s32.totalorder %v49, %v1148
  %vm1347 = vcmp.eq.s32.totalorder %v49, %v1152
  %vm1348 = vcmp.eq.s32.totalorder %v49, %v1156
  %vm1349 = vcmp.eq.s32.totalorder %v50, %v1112
  %vm1350 = vcmp.eq.s32.totalorder %v50, %v1116
  %vm1351 = vcmp.eq.s32.totalorder %v50, %v1120
  %vm1352 = vcmp.eq.s32.totalorder %v50, %v1124
  %vm1353 = vcmp.eq.s32.totalorder %v50, %v1128
  %vm1354 = vcmp.eq.s32.totalorder %v50, %v1132
  %vm1355 = vcmp.eq.s32.totalorder %v50, %v1136
  %vm1356 = vcmp.eq.s32.totalorder %v50, %v1140
  %vm1357 = vcmp.eq.s32.totalorder %v50, %v1144
  %vm1358 = vcmp.eq.s32.totalorder %v50, %v1148
  %vm1359 = vcmp.eq.s32.totalorder %v50, %v1152
  %vm1360 = vcmp.eq.s32.totalorder %v50, %v1156
  %vm1361 = vcmp.eq.s32.totalorder %v51, %v1112
  %vm1362 = vcmp.eq.s32.totalorder %v51, %v1116
  %vm1363 = vcmp.eq.s32.totalorder %v51, %v1120
  %vm1364 = vcmp.eq.s32.totalorder %v51, %v1124
  %vm1365 = vcmp.eq.s32.totalorder %v51, %v1128
  %vm1366 = vcmp.eq.s32.totalorder %v51, %v1132
  %vm1367 = vcmp.eq.s32.totalorder %v51, %v1136
  %vm1368 = vcmp.eq.s32.totalorder %v51, %v1140
  %vm1369 = vcmp.eq.s32.totalorder %v51, %v1144
  %vm1370 = vcmp.eq.s32.totalorder %v51, %v1148
  %vm1371 = vcmp.eq.s32.totalorder %v51, %v1152
  %vm1372 = vcmp.eq.s32.totalorder %v51, %v1156
  %vm1373 = vcmp.eq.s32.totalorder %v52, %v1112
  %vm1374 = vcmp.eq.s32.totalorder %v52, %v1116
  %vm1375 = vcmp.eq.s32.totalorder %v52, %v1120
  %vm1376 = vcmp.eq.s32.totalorder %v52, %v1124
  %vm1377 = vcmp.eq.s32.totalorder %v52, %v1128
  %vm1378 = vcmp.eq.s32.totalorder %v52, %v1132
  %vm1379 = vcmp.eq.s32.totalorder %v52, %v1136
  %vm1380 = vcmp.eq.s32.totalorder %v52, %v1140
  %vm1381 = vcmp.eq.s32.totalorder %v52, %v1144
  %vm1382 = vcmp.eq.s32.totalorder %v52, %v1148
  %vm1383 = vcmp.eq.s32.totalorder %v52, %v1152
  %vm1384 = vcmp.eq.s32.totalorder %v52, %v1156
  %v1385 = vsel %vm1157, 1, 0
  %v1386 = vsel %vm1158, 1, 0
  %v1387 = vsel %vm1159, 1, 0
  %v1388 = vsel %vm1160, 1, 0
  %v1389 = vsel %vm1161, 1, 0
  %v1390 = vsel %vm1162, 1, 0
  %v1391 = vsel %vm1163, 1, 0
  %v1392 = vsel %vm1164, 1, 0
  %v1393 = vsel %vm1165, 1, 0
  %v1394 = vsel %vm1166, 1, 0
  %v1395 = vsel %vm1167, 1, 0
  %v1396 = vsel %vm1168, 1, 0
  %v1397 = vsel %vm1169, 1, 0
  %v1398 = vsel %vm1170, 1, 0
  %v1399 = vsel %vm1171, 1, 0
  %v1400 = vsel %vm1172, 1, 0
  %v1401 = vsel %vm1173, 1, 0
  %v1402 = vsel %vm1174, 1, 0
  %v1403 = vsel %vm1175, 1, 0
  %v1404 = vsel %vm1176, 1, 0
  %v1405 = vsel %vm1177, 1, 0
  %v1406 = vsel %vm1178, 1, 0
  %v1407 = vsel %vm1179, 1, 0
  %v1408 = vsel %vm1180, 1, 0
  %v1409 = vsel %vm1181, 1, 0
  %v1410 = vsel %vm1182, 1, 0
  %v1411 = vsel %vm1183, 1, 0
  %v1412 = vsel %vm1184, 1, 0
  %v1413 = vsel %vm1185, 1, 0
  %v1414 = vsel %vm1186, 1, 0
  %v1415 = vsel %vm1187, 1, 0
  %v1416 = vsel %vm1188, 1, 0
  %v1417 = vsel %vm1189, 1, 0
  %v1418 = vsel %vm1190, 1, 0
  %v1419 = vsel %vm1191, 1, 0
  %v1420 = vsel %vm1192, 1, 0
  %v1421 = vsel %vm1193, 1, 0
  %v1422 = vsel %vm1194, 1, 0
  %v1423 = vsel %vm1195, 1, 0
  %v1424 = vsel %vm1196, 1, 0
  %v1425 = vsel %vm1197, 1, 0
  %v1426 = vsel %vm1198, 1, 0
  %v1427 = vsel %vm1199, 1, 0
  %v1428 = vsel %vm1200, 1, 0
  %v1429 = vsel %vm1201, 1, 0
  %v1430 = vsel %vm1202, 1, 0
  %v1431 = vsel %vm1203, 1, 0
  %v1432 = vsel %vm1204, 1, 0
  %v1433 = vsel %vm1205, 1, 0
  %v1434 = vsel %vm1206, 1, 0
  %v1435 = vsel %vm1207, 1, 0
  %v1436 = vsel %vm1208, 1, 0
  %v1437 = vsel %vm1209, 1, 0
  %v1438 = vsel %vm1210, 1, 0
  %v1439 = vsel %vm1211, 1, 0
  %v1440 = vsel %vm1212, 1, 0
  %v1441 = vsel %vm1213, 1, 0
  %v1442 = vsel %vm1214, 1, 0
  %v1443 = vsel %vm1215, 1, 0
  %v1444 = vsel %vm1216, 1, 0
  %v1445 = vsel %vm1217, 1, 0
  %v1446 = vsel %vm1218, 1, 0
  %v1447 = vsel %vm1219, 1, 0
  %v1448 = vsel %vm1220, 1, 0
  %v1449 = vsel %vm1221, 1, 0
  %v1450 = vsel %vm1222, 1, 0
  %v1451 = vsel %vm1223, 1, 0
  %v1452 = vsel %vm1224, 1, 0
  %v1453 = vsel %vm1225, 1, 0
  %v1454 = vsel %vm1226, 1, 0
  %v1455 = vsel %vm1227, 1, 0
  %v1456 = vsel %vm1228, 1, 0
  %v1457 = vsel %vm1229, 1, 0
  %v1458 = vsel %vm1230, 1, 0
  %v1459 = vsel %vm1231, 1, 0
  %v1460 = vsel %vm1232, 1, 0
  %v1461 = vsel %vm1233, 1, 0
  %v1462 = vsel %vm1234, 1, 0
  %v1463 = vsel %vm1235, 1, 0
  %v1464 = vsel %vm1236, 1, 0
  %v1465 = vsel %vm1237, 1, 0
  %v1466 = vsel %vm1238, 1, 0
  %v1467 = vsel %vm1239, 1, 0
  %v1468 = vsel %vm1240, 1, 0
  %v1469 = vsel %vm1241, 1, 0
  %v1470 = vsel %vm1242, 1, 0
  %v1471 = vsel %vm1243, 1, 0
  %v1472 = vsel %vm1244, 1, 0
  %v1473 = vsel %vm1245, 1, 0
  %v1474 = vsel %vm1246, 1, 0
  %v1475 = vsel %vm1247, 1, 0
  %v1476 = vsel %vm1248, 1, 0
  %v1477 = vsel %vm1249, 1, 0
  %v1478 = vsel %vm1250, 1, 0
  %v1479 = vsel %vm1251, 1, 0
  %v1480 = vsel %vm1252, 1, 0
  %v1481 = vsel %vm1253, 1, 0
  %v1482 = vsel %vm1254, 1, 0
  %v1483 = vsel %vm1255, 1, 0
  %v1484 = vsel %vm1256, 1, 0
  %v1485 = vsel %vm1257, 1, 0
  %v1486 = vsel %vm1258, 1, 0
  %v1487 = vsel %vm1259, 1, 0
  %v1488 = vsel %vm1260, 1, 0
  %v1489 = vsel %vm1261, 1, 0
  %v1490 = vsel %vm1262, 1, 0
  %v1491 = vsel %vm1263, 1, 0
  %v1492 = vsel %vm1264, 1, 0
  %v1493 = vsel %vm1265, 1, 0
  %v1494 = vsel %vm1266, 1, 0
  %v1495 = vsel %vm1267, 1, 0
  %v1496 = vsel %vm1268, 1, 0
  %v1497 = vsel %vm1269, 1, 0
  %v1498 = vsel %vm1270, 1, 0
  %v1499 = vsel %vm1271, 1, 0
  %v1500 = vsel %vm1272, 1, 0
  %v1501 = vsel %vm1273, 1, 0
  %v1502 = vsel %vm1274, 1, 0
  %v1503 = vsel %vm1275, 1, 0
  %v1504 = vsel %vm1276, 1, 0
  %v1505 = vsel %vm1277, 1, 0
  %v1506 = vsel %vm1278, 1, 0
  %v1507 = vsel %vm1279, 1, 0
  %v1508 = vsel %vm1280, 1, 0
  %v1509 = vsel %vm1281, 1, 0
  %v1510 = vsel %vm1282, 1, 0
  %v1511 = vsel %vm1283, 1, 0
  %v1512 = vsel %vm1284, 1, 0
  %v1513 = vsel %vm1285, 1, 0
  %v1514 = vsel %vm1286, 1, 0
  %v1515 = vsel %vm1287, 1, 0
  %v1516 = vsel %vm1288, 1, 0
  %v1517 = vsel %vm1289, 1, 0
  %v1518 = vsel %vm1290, 1, 0
  %v1519 = vsel %vm1291, 1, 0
  %v1520 = vsel %vm1292, 1, 0
  %v1521 = vsel %vm1293, 1, 0
  %v1522 = vsel %vm1294, 1, 0
  %v1523 = vsel %vm1295, 1, 0
  %v1524 = vsel %vm1296, 1, 0
  %v1525 = vsel %vm1297, 1, 0
  %v1526 = vsel %vm1298, 1, 0
  %v1527 = vsel %vm1299, 1, 0
  %v1528 = vsel %vm1300, 1, 0
  %v1529 = vsel %vm1301, 1, 0
  %v1530 = vsel %vm1302, 1, 0
  %v1531 = vsel %vm1303, 1, 0
  %v1532 = vsel %vm1304, 1, 0
  %v1533 = vsel %vm1305, 1, 0
  %v1534 = vsel %vm1306, 1, 0
  %v1535 = vsel %vm1307, 1, 0
  %v1536 = vsel %vm1308, 1, 0
  %v1537 = vsel %vm1309, 1, 0
  %v1538 = vsel %vm1310, 1, 0
  %v1539 = vsel %vm1311, 1, 0
  %v1540 = vsel %vm1312, 1, 0
  %v1541 = vsel %vm1313, 1, 0
  %v1542 = vsel %vm1314, 1, 0
  %v1543 = vsel %vm1315, 1, 0
  %v1544 = vsel %vm1316, 1, 0
  %v1545 = vsel %vm1317, 1, 0
  %v1546 = vsel %vm1318, 1, 0
  %v1547 = vsel %vm1319, 1, 0
  %v1548 = vsel %vm1320, 1, 0
  %v1549 = vsel %vm1321, 1, 0
  %v1550 = vsel %vm1322, 1, 0
  %v1551 = vsel %vm1323, 1, 0
  %v1552 = vsel %vm1324, 1, 0
  %v1553 = vsel %vm1325, 1, 0
  %v1554 = vsel %vm1326, 1, 0
  %v1555 = vsel %vm1327, 1, 0
  %v1556 = vsel %vm1328, 1, 0
  %v1557 = vsel %vm1329, 1, 0
  %v1558 = vsel %vm1330, 1, 0
  %v1559 = vsel %vm1331, 1, 0
  %v1560 = vsel %vm1332, 1, 0
  %v1561 = vsel %vm1333, 1, 0
  %v1562 = vsel %vm1334, 1, 0
  %v1563 = vsel %vm1335, 1, 0
  %v1564 = vsel %vm1336, 1, 0
  %v1565 = vsel %vm1337, 1, 0
  %v1566 = vsel %vm1338, 1, 0
  %v1567 = vsel %vm1339, 1, 0
  %v1568 = vsel %vm1340, 1, 0
  %v1569 = vsel %vm1341, 1, 0
  %v1570 = vsel %vm1342, 1, 0
  %v1571 = vsel %vm1343, 1, 0
  %v1572 = vsel %vm1344, 1, 0
  %v1573 = vsel %vm1345, 1, 0
  %v1574 = vsel %vm1346, 1, 0
  %v1575 = vsel %vm1347, 1, 0
  %v1576 = vsel %vm1348, 1, 0
  %v1577 = vsel %vm1349, 1, 0
  %v1578 = vsel %vm1350, 1, 0
  %v1579 = vsel %vm1351, 1, 0
  %v1580 = vsel %vm1352, 1, 0
  %v1581 = vsel %vm1353, 1, 0
  %v1582 = vsel %vm1354, 1, 0
  %v1583 = vsel %vm1355, 1, 0
  %v1584 = vsel %vm1356, 1, 0
  %v1585 = vsel %vm1357, 1, 0
  %v1586 = vsel %vm1358, 1, 0
  %v1587 = vsel %vm1359, 1, 0
  %v1588 = vsel %vm1360, 1, 0
  %v1589 = vsel %vm1361, 1, 0
  %v1590 = vsel %vm1362, 1, 0
  %v1591 = vsel %vm1363, 1, 0
  %v1592 = vsel %vm1364, 1, 0
  %v1593 = vsel %vm1365, 1, 0
  %v1594 = vsel %vm1366, 1, 0
  %v1595 = vsel %vm1367, 1, 0
  %v1596 = vsel %vm1368, 1, 0
  %v1597 = vsel %vm1369, 1, 0
  %v1598 = vsel %vm1370, 1, 0
  %v1599 = vsel %vm1371, 1, 0
  %v1600 = vsel %vm1372, 1, 0
  %v1601 = vsel %vm1373, 1, 0
  %v1602 = vsel %vm1374, 1, 0
  %v1603 = vsel %vm1375, 1, 0
  %v1604 = vsel %vm1376, 1, 0
  %v1605 = vsel %vm1377, 1, 0
  %v1606 = vsel %vm1378, 1, 0
  %v1607 = vsel %vm1379, 1, 0
  %v1608 = vsel %vm1380, 1, 0
  %v1609 = vsel %vm1381, 1, 0
  %v1610 = vsel %vm1382, 1, 0
  %v1611 = vsel %vm1383, 1, 0
  %v1612 = vsel %vm1384, 1, 0
  %v1613 = vcvt.s32.f32 %v1385
  %v1614 = vcvt.s32.f32 %v1386
  %v1615 = vcvt.s32.f32 %v1387
  %v1616 = vcvt.s32.f32 %v1388
  %v1617 = vcvt.s32.f32 %v1389
  %v1618 = vcvt.s32.f32 %v1390
  %v1619 = vcvt.s32.f32 %v1391
  %v1620 = vcvt.s32.f32 %v1392
  %v1621 = vcvt.s32.f32 %v1393
  %v1622 = vcvt.s32.f32 %v1394
  %v1623 = vcvt.s32.f32 %v1395
  %v1624 = vcvt.s32.f32 %v1396
  %v1625 = vcvt.s32.f32 %v1397
  %v1626 = vcvt.s32.f32 %v1398
  %v1627 = vcvt.s32.f32 %v1399
  %v1628 = vcvt.s32.f32 %v1400
  %v1629 = vcvt.s32.f32 %v1401
  %v1630 = vcvt.s32.f32 %v1402
  %v1631 = vcvt.s32.f32 %v1403
  %v1632 = vcvt.s32.f32 %v1404
  %v1633 = vcvt.s32.f32 %v1405
  %v1634 = vcvt.s32.f32 %v1406
  %v1635 = vcvt.s32.f32 %v1407
  %v1636 = vcvt.s32.f32 %v1408
  %v1637 = vcvt.s32.f32 %v1409
  %v1638 = vcvt.s32.f32 %v1410
  %v1639 = vcvt.s32.f32 %v1411
  %v1640 = vcvt.s32.f32 %v1412
  %v1641 = vcvt.s32.f32 %v1413
  %v1642 = vcvt.s32.f32 %v1414
  %v1643 = vcvt.s32.f32 %v1415
  %v1644 = vcvt.s32.f32 %v1416
  %v1645 = vcvt.s32.f32 %v1417
  %v1646 = vcvt.s32.f32 %v1418
  %v1647 = vcvt.s32.f32 %v1419
  %v1648 = vcvt.s32.f32 %v1420
  %v1649 = vcvt.s32.f32 %v1421
  %v1650 = vcvt.s32.f32 %v1422
  %v1651 = vcvt.s32.f32 %v1423
  %v1652 = vcvt.s32.f32 %v1424
  %v1653 = vcvt.s32.f32 %v1425
  %v1654 = vcvt.s32.f32 %v1426
  %v1655 = vcvt.s32.f32 %v1427
  %v1656 = vcvt.s32.f32 %v1428
  %v1657 = vcvt.s32.f32 %v1429
  %v1658 = vcvt.s32.f32 %v1430
  %v1659 = vcvt.s32.f32 %v1431
  %v1660 = vcvt.s32.f32 %v1432
  %v1661 = vcvt.s32.f32 %v1433
  %v1662 = vcvt.s32.f32 %v1434
  %v1663 = vcvt.s32.f32 %v1435
  %v1664 = vcvt.s32.f32 %v1436
  %v1665 = vcvt.s32.f32 %v1437
  %v1666 = vcvt.s32.f32 %v1438
  %v1667 = vcvt.s32.f32 %v1439
  %v1668 = vcvt.s32.f32 %v1440
  %v1669 = vcvt.s32.f32 %v1441
  %v1670 = vcvt.s32.f32 %v1442
  %v1671 = vcvt.s32.f32 %v1443
  %v1672 = vcvt.s32.f32 %v1444
  %v1673 = vcvt.s32.f32 %v1445
  %v1674 = vcvt.s32.f32 %v1446
  %v1675 = vcvt.s32.f32 %v1447
  %v1676 = vcvt.s32.f32 %v1448
  %v1677 = vcvt.s32.f32 %v1449
  %v1678 = vcvt.s32.f32 %v1450
  %v1679 = vcvt.s32.f32 %v1451
  %v1680 = vcvt.s32.f32 %v1452
  %v1681 = vcvt.s32.f32 %v1453
  %v1682 = vcvt.s32.f32 %v1454
  %v1683 = vcvt.s32.f32 %v1455
  %v1684 = vcvt.s32.f32 %v1456
  %v1685 = vcvt.s32.f32 %v1457
  %v1686 = vcvt.s32.f32 %v1458
  %v1687 = vcvt.s32.f32 %v1459
  %v1688 = vcvt.s32.f32 %v1460
  %v1689 = vcvt.s32.f32 %v1461
  %v1690 = vcvt.s32.f32 %v1462
  %v1691 = vcvt.s32.f32 %v1463
  %v1692 = vcvt.s32.f32 %v1464
  %v1693 = vcvt.s32.f32 %v1465
  %v1694 = vcvt.s32.f32 %v1466
  %v1695 = vcvt.s32.f32 %v1467
  %v1696 = vcvt.s32.f32 %v1468
  %v1697 = vcvt.s32.f32 %v1469
  %v1698 = vcvt.s32.f32 %v1470
  %v1699 = vcvt.s32.f32 %v1471
  %v1700 = vcvt.s32.f32 %v1472
  %v1701 = vcvt.s32.f32 %v1473
  %v1702 = vcvt.s32.f32 %v1474
  %v1703 = vcvt.s32.f32 %v1475
  %v1704 = vcvt.s32.f32 %v1476
  %v1705 = vcvt.s32.f32 %v1477
  %v1706 = vcvt.s32.f32 %v1478
  %v1707 = vcvt.s32.f32 %v1479
  %v1708 = vcvt.s32.f32 %v1480
  %v1709 = vcvt.s32.f32 %v1481
  %v1710 = vcvt.s32.f32 %v1482
  %v1711 = vcvt.s32.f32 %v1483
  %v1712 = vcvt.s32.f32 %v1484
  %v1713 = vcvt.s32.f32 %v1485
  %v1714 = vcvt.s32.f32 %v1486
  %v1715 = vcvt.s32.f32 %v1487
  %v1716 = vcvt.s32.f32 %v1488
  %v1717 = vcvt.s32.f32 %v1489
  %v1718 = vcvt.s32.f32 %v1490
  %v1719 = vcvt.s32.f32 %v1491
  %v1720 = vcvt.s32.f32 %v1492
  %v1721 = vcvt.s32.f32 %v1493
  %v1722 = vcvt.s32.f32 %v1494
  %v1723 = vcvt.s32.f32 %v1495
  %v1724 = vcvt.s32.f32 %v1496
  %v1725 = vcvt.s32.f32 %v1497
  %v1726 = vcvt.s32.f32 %v1498
  %v1727 = vcvt.s32.f32 %v1499
  %v1728 = vcvt.s32.f32 %v1500
  %v1729 = vcvt.s32.f32 %v1501
  %v1730 = vcvt.s32.f32 %v1502
  %v1731 = vcvt.s32.f32 %v1503
  %v1732 = vcvt.s32.f32 %v1504
  %v1733 = vcvt.s32.f32 %v1505
  %v1734 = vcvt.s32.f32 %v1506
  %v1735 = vcvt.s32.f32 %v1507
  %v1736 = vcvt.s32.f32 %v1508
  %v1737 = vcvt.s32.f32 %v1509
  %v1738 = vcvt.s32.f32 %v1510
  %v1739 = vcvt.s32.f32 %v1511
  %v1740 = vcvt.s32.f32 %v1512
  %v1741 = vcvt.s32.f32 %v1513
  %v1742 = vcvt.s32.f32 %v1514
  %v1743 = vcvt.s32.f32 %v1515
  %v1744 = vcvt.s32.f32 %v1516
  %v1745 = vcvt.s32.f32 %v1517
  %v1746 = vcvt.s32.f32 %v1518
  %v1747 = vcvt.s32.f32 %v1519
  %v1748 = vcvt.s32.f32 %v1520
  %v1749 = vcvt.s32.f32 %v1521
  %v1750 = vcvt.s32.f32 %v1522
  %v1751 = vcvt.s32.f32 %v1523
  %v1752 = vcvt.s32.f32 %v1524
  %v1753 = vcvt.s32.f32 %v1525
  %v1754 = vcvt.s32.f32 %v1526
  %v1755 = vcvt.s32.f32 %v1527
  %v1756 = vcvt.s32.f32 %v1528
  %v1757 = vcvt.s32.f32 %v1529
  %v1758 = vcvt.s32.f32 %v1530
  %v1759 = vcvt.s32.f32 %v1531
  %v1760 = vcvt.s32.f32 %v1532
  %v1761 = vcvt.s32.f32 %v1533
  %v1762 = vcvt.s32.f32 %v1534
  %v1763 = vcvt.s32.f32 %v1535
  %v1764 = vcvt.s32.f32 %v1536
  %v1765 = vcvt.s32.f32 %v1537
  %v1766 = vcvt.s32.f32 %v1538
  %v1767 = vcvt.s32.f32 %v1539
  %v1768 = vcvt.s32.f32 %v1540
  %v1769 = vcvt.s32.f32 %v1541
  %v1770 = vcvt.s32.f32 %v1542
  %v1771 = vcvt.s32.f32 %v1543
  %v1772 = vcvt.s32.f32 %v1544
  %v1773 = vcvt.s32.f32 %v1545
  %v1774 = vcvt.s32.f32 %v1546
  %v1775 = vcvt.s32.f32 %v1547
  %v1776 = vcvt.s32.f32 %v1548
  %v1777 = vcvt.s32.f32 %v1549
  %v1778 = vcvt.s32.f32 %v1550
  %v1779 = vcvt.s32.f32 %v1551
  %v1780 = vcvt.s32.f32 %v1552
  %v1781 = vcvt.s32.f32 %v1553
  %v1782 = vcvt.s32.f32 %v1554
  %v1783 = vcvt.s32.f32 %v1555
  %v1784 = vcvt.s32.f32 %v1556
  %v1785 = vcvt.s32.f32 %v1557
  %v1786 = vcvt.s32.f32 %v1558
  %v1787 = vcvt.s32.f32 %v1559
  %v1788 = vcvt.s32.f32 %v1560
  %v1789 = vcvt.s32.f32 %v1561
  %v1790 = vcvt.s32.f32 %v1562
  %v1791 = vcvt.s32.f32 %v1563
  %v1792 = vcvt.s32.f32 %v1564
  %v1793 = vcvt.s32.f32 %v1565
  %v1794 = vcvt.s32.f32 %v1566
  %v1795 = vcvt.s32.f32 %v1567
  %v1796 = vcvt.s32.f32 %v1568
  %v1797 = vcvt.s32.f32 %v1569
  %v1798 = vcvt.s32.f32 %v1570
  %v1799 = vcvt.s32.f32 %v1571
  %v1800 = vcvt.s32.f32 %v1572
  %v1801 = vcvt.s32.f32 %v1573
  %v1802 = vcvt.s32.f32 %v1574
  %v1803 = vcvt.s32.f32 %v1575
  %v1804 = vcvt.s32.f32 %v1576
  %v1805 = vcvt.s32.f32 %v1577
  %v1806 = vcvt.s32.f32 %v1578
  %v1807 = vcvt.s32.f32 %v1579
  %v1808 = vcvt.s32.f32 %v1580
  %v1809 = vcvt.s32.f32 %v1581
  %v1810 = vcvt.s32.f32 %v1582
  %v1811 = vcvt.s32.f32 %v1583
  %v1812 = vcvt.s32.f32 %v1584
  %v1813 = vcvt.s32.f32 %v1585
  %v1814 = vcvt.s32.f32 %v1586
  %v1815 = vcvt.s32.f32 %v1587
  %v1816 = vcvt.s32.f32 %v1588
  %v1817 = vcvt.s32.f32 %v1589
  %v1818 = vcvt.s32.f32 %v1590
  %v1819 = vcvt.s32.f32 %v1591
  %v1820 = vcvt.s32.f32 %v1592
  %v1821 = vcvt.s32.f32 %v1593
  %v1822 = vcvt.s32.f32 %v1594
  %v1823 = vcvt.s32.f32 %v1595
  %v1824 = vcvt.s32.f32 %v1596
  %v1825 = vcvt.s32.f32 %v1597
  %v1826 = vcvt.s32.f32 %v1598
  %v1827 = vcvt.s32.f32 %v1599
  %v1828 = vcvt.s32.f32 %v1600
  %v1829 = vcvt.s32.f32 %v1601
  %v1830 = vcvt.s32.f32 %v1602
  %v1831 = vcvt.s32.f32 %v1603
  %v1832 = vcvt.s32.f32 %v1604
  %v1833 = vcvt.s32.f32 %v1605
  %v1834 = vcvt.s32.f32 %v1606
  %v1835 = vcvt.s32.f32 %v1607
  %v1836 = vcvt.s32.f32 %v1608
  %v1837 = vcvt.s32.f32 %v1609
  %v1838 = vcvt.s32.f32 %v1610
  %v1839 = vcvt.s32.f32 %v1611
  %v1840 = vcvt.s32.f32 %v1612
  %v1841 = vadd.f32 %v833, %v1613
  %v1842 = vadd.f32 %v834, %v1614
  %v1843 = vadd.f32 %v835, %v1615
  %v1844 = vadd.f32 %v836, %v1616
  %v1845 = vadd.f32 %v837, %v1617
  %v1846 = vadd.f32 %v838, %v1618
  %v1847 = vadd.f32 %v839, %v1619
  %v1848 = vadd.f32 %v840, %v1620
  %v1849 = vadd.f32 %v841, %v1621
  %v1850 = vadd.f32 %v842, %v1622
  %v1851 = vadd.f32 %v843, %v1623
  %v1852 = vadd.f32 %v844, %v1624
  %v1853 = vadd.f32 %v845, %v1625
  %v1854 = vadd.f32 %v846, %v1626
  %v1855 = vadd.f32 %v847, %v1627
  %v1856 = vadd.f32 %v848, %v1628
  %v1857 = vadd.f32 %v849, %v1629
  %v1858 = vadd.f32 %v850, %v1630
  %v1859 = vadd.f32 %v851, %v1631
  %v1860 = vadd.f32 %v852, %v1632
  %v1861 = vadd.f32 %v853, %v1633
  %v1862 = vadd.f32 %v854, %v1634
  %v1863 = vadd.f32 %v855, %v1635
  %v1864 = vadd.f32 %v856, %v1636
  %v1865 = vadd.f32 %v857, %v1637
  %v1866 = vadd.f32 %v858, %v1638
  %v1867 = vadd.f32 %v859, %v1639
  %v1868 = vadd.f32 %v860, %v1640
  %v1869 = vadd.f32 %v861, %v1641
  %v1870 = vadd.f32 %v862, %v1642
  %v1871 = vadd.f32 %v863, %v1643
  %v1872 = vadd.f32 %v864, %v1644
  %v1873 = vadd.f32 %v865, %v1645
  %v1874 = vadd.f32 %v866, %v1646
  %v1875 = vadd.f32 %v867, %v1647
  %v1876 = vadd.f32 %v868, %v1648
  %v1877 = vadd.f32 %v869, %v1649
  %v1878 = vadd.f32 %v870, %v1650
  %v1879 = vadd.f32 %v871, %v1651
  %v1880 = vadd.f32 %v872, %v1652
  %v1881 = vadd.f32 %v873, %v1653
  %v1882 = vadd.f32 %v874, %v1654
  %v1883 = vadd.f32 %v875, %v1655
  %v1884 = vadd.f32 %v876, %v1656
  %v1885 = vadd.f32 %v877, %v1657
  %v1886 = vadd.f32 %v878, %v1658
  %v1887 = vadd.f32 %v879, %v1659
  %v1888 = vadd.f32 %v880, %v1660
  %v1889 = vadd.f32 %v881, %v1661
  %v1890 = vadd.f32 %v882, %v1662
  %v1891 = vadd.f32 %v883, %v1663
  %v1892 = vadd.f32 %v884, %v1664
  %v1893 = vadd.f32 %v885, %v1665
  %v1894 = vadd.f32 %v886, %v1666
  %v1895 = vadd.f32 %v887, %v1667
  %v1896 = vadd.f32 %v888, %v1668
  %v1897 = vadd.f32 %v889, %v1669
  %v1898 = vadd.f32 %v890, %v1670
  %v1899 = vadd.f32 %v891, %v1671
  %v1900 = vadd.f32 %v892, %v1672
  %v1901 = vadd.f32 %v893, %v1673
  %v1902 = vadd.f32 %v894, %v1674
  %v1903 = vadd.f32 %v895, %v1675
  %v1904 = vadd.f32 %v896, %v1676
  %v1905 = vadd.f32 %v897, %v1677
  %v1906 = vadd.f32 %v898, %v1678
  %v1907 = vadd.f32 %v899, %v1679
  %v1908 = vadd.f32 %v900, %v1680
  %v1909 = vadd.f32 %v901, %v1681
  %v1910 = vadd.f32 %v902, %v1682
  %v1911 = vadd.f32 %v903, %v1683
  %v1912 = vadd.f32 %v904, %v1684
  %v1913 = vadd.f32 %v905, %v1685
  %v1914 = vadd.f32 %v906, %v1686
  %v1915 = vadd.f32 %v907, %v1687
  %v1916 = vadd.f32 %v908, %v1688
  %v1917 = vadd.f32 %v909, %v1689
  %v1918 = vadd.f32 %v910, %v1690
  %v1919 = vadd.f32 %v911, %v1691
  %v1920 = vadd.f32 %v912, %v1692
  %v1921 = vadd.f32 %v913, %v1693
  %v1922 = vadd.f32 %v914, %v1694
  %v1923 = vadd.f32 %v915, %v1695
  %v1924 = vadd.f32 %v916, %v1696
  %v1925 = vadd.f32 %v917, %v1697
  %v1926 = vadd.f32 %v918, %v1698
  %v1927 = vadd.f32 %v919, %v1699
  %v1928 = vadd.f32 %v920, %v1700
  %v1929 = vadd.f32 %v921, %v1701
  %v1930 = vadd.f32 %v922, %v1702
  %v1931 = vadd.f32 %v923, %v1703
  %v1932 = vadd.f32 %v924, %v1704
  %v1933 = vadd.f32 %v925, %v1705
  %v1934 = vadd.f32 %v926, %v1706
  %v1935 = vadd.f32 %v927, %v1707
  %v1936 = vadd.f32 %v928, %v1708
  %v1937 = vadd.f32 %v929, %v1709
  %v1938 = vadd.f32 %v930, %v1710
  %v1939 = vadd.f32 %v931, %v1711
  %v1940 = vadd.f32 %v932, %v1712
  %v1941 = vadd.f32 %v933, %v1713
  %v1942 = vadd.f32 %v934, %v1714
  %v1943 = vadd.f32 %v935, %v1715
  %v1944 = vadd.f32 %v936, %v1716
  %v1945 = vadd.f32 %v937, %v1717
  %v1946 = vadd.f32 %v938, %v1718
  %v1947 = vadd.f32 %v939, %v1719
  %v1948 = vadd.f32 %v940, %v1720
  %v1949 = vadd.f32 %v941, %v1721
  %v1950 = vadd.f32 %v942, %v1722
  %v1951 = vadd.f32 %v943, %v1723
  %v1952 = vadd.f32 %v944, %v1724
  %v1953 = vadd.f32 %v945, %v1725
  %v1954 = vadd.f32 %v946, %v1726
  %v1955 = vadd.f32 %v947, %v1727
  %v1956 = vadd.f32 %v948, %v1728
  %v1957 = vadd.f32 %v949, %v1729
  %v1958 = vadd.f32 %v950, %v1730
  %v1959 = vadd.f32 %v951, %v1731
  %v1960 = vadd.f32 %v952, %v1732
  %v1961 = vadd.f32 %v953, %v1733
  %v1962 = vadd.f32 %v954, %v1734
  %v1963 = vadd.f32 %v955, %v1735
  %v1964 = vadd.f32 %v956, %v1736
  %v1965 = vadd.f32 %v957, %v1737
  %v1966 = vadd.f32 %v958, %v1738
  %v1967 = vadd.f32 %v959, %v1739
  %v1968 = vadd.f32 %v960, %v1740
  %v1969 = vadd.f32 %v961, %v1741
  %v1970 = vadd.f32 %v962, %v1742
  %v1971 = vadd.f32 %v963, %v1743
  %v1972 = vadd.f32 %v964, %v1744
  %v1973 = vadd.f32 %v965, %v1745
  %v1974 = vadd.f32 %v966, %v1746
  %v1975 = vadd.f32 %v967, %v1747
  %v1976 = vadd.f32 %v968, %v1748
  %v1977 = vadd.f32 %v969, %v1749
  %v1978 = vadd.f32 %v970, %v1750
  %v1979 = vadd.f32 %v971, %v1751
  %v1980 = vadd.f32 %v972, %v1752
  %v1981 = vadd.f32 %v973, %v1753
  %v1982 = vadd.f32 %v974, %v1754
  %v1983 = vadd.f32 %v975, %v1755
  %v1984 = vadd.f32 %v976, %v1756
  %v1985 = vadd.f32 %v977, %v1757
  %v1986 = vadd.f32 %v978, %v1758
  %v1987 = vadd.f32 %v979, %v1759
  %v1988 = vadd.f32 %v980, %v1760
  %v1989 = vadd.f32 %v981, %v1761
  %v1990 = vadd.f32 %v982, %v1762
  %v1991 = vadd.f32 %v983, %v1763
  %v1992 = vadd.f32 %v984, %v1764
  %v1993 = vadd.f32 %v985, %v1765
  %v1994 = vadd.f32 %v986, %v1766
  %v1995 = vadd.f32 %v987, %v1767
  %v1996 = vadd.f32 %v988, %v1768
  %v1997 = vadd.f32 %v989, %v1769
  %v1998 = vadd.f32 %v990, %v1770
  %v1999 = vadd.f32 %v991, %v1771
  %v2000 = vadd.f32 %v992, %v1772
  %v2001 = vadd.f32 %v993, %v1773
  %v2002 = vadd.f32 %v994, %v1774
  %v2003 = vadd.f32 %v995, %v1775
  %v2004 = vadd.f32 %v996, %v1776
  %v2005 = vadd.f32 %v997, %v1777
  %v2006 = vadd.f32 %v998, %v1778
  %v2007 = vadd.f32 %v999, %v1779
  %v2008 = vadd.f32 %v1000, %v1780
  %v2009 = vadd.f32 %v1001, %v1781
  %v2010 = vadd.f32 %v1002, %v1782
  %v2011 = vadd.f32 %v1003, %v1783
  %v2012 = vadd.f32 %v1004, %v1784
  %v2013 = vadd.f32 %v1005, %v1785
  %v2014 = vadd.f32 %v1006, %v1786
  %v2015 = vadd.f32 %v1007, %v1787
  %v2016 = vadd.f32 %v1008, %v1788
  %v2017 = vadd.f32 %v1009, %v1789
  %v2018 = vadd.f32 %v1010, %v1790
  %v2019 = vadd.f32 %v1011, %v1791
  %v2020 = vadd.f32 %v1012, %v1792
  %v2021 = vadd.f32 %v1013, %v1793
  %v2022 = vadd.f32 %v1014, %v1794
  %v2023 = vadd.f32 %v1015, %v1795
  %v2024 = vadd.f32 %v1016, %v1796
  %v2025 = vadd.f32 %v1017, %v1797
  %v2026 = vadd.f32 %v1018, %v1798
  %v2027 = vadd.f32 %v1019, %v1799
  %v2028 = vadd.f32 %v1020, %v1800
  %v2029 = vadd.f32 %v1021, %v1801
  %v2030 = vadd.f32 %v1022, %v1802
  %v2031 = vadd.f32 %v1023, %v1803
  %v2032 = vadd.f32 %v1024, %v1804
  %v2033 = vadd.f32 %v1025, %v1805
  %v2034 = vadd.f32 %v1026, %v1806
  %v2035 = vadd.f32 %v1027, %v1807
  %v2036 = vadd.f32 %v1028, %v1808
  %v2037 = vadd.f32 %v1029, %v1809
  %v2038 = vadd.f32 %v1030, %v1810
  %v2039 = vadd.f32 %v1031, %v1811
  %v2040 = vadd.f32 %v1032, %v1812
  %v2041 = vadd.f32 %v1033, %v1813
  %v2042 = vadd.f32 %v1034, %v1814
  %v2043 = vadd.f32 %v1035, %v1815
  %v2044 = vadd.f32 %v1036, %v1816
  %v2045 = vadd.f32 %v1037, %v1817
  %v2046 = vadd.f32 %v1038, %v1818
  %v2047 = vadd.f32 %v1039, %v1819
  %v2048 = vadd.f32 %v1040, %v1820
  %v2049 = vadd.f32 %v1041, %v1821
  %v2050 = vadd.f32 %v1042, %v1822
  %v2051 = vadd.f32 %v1043, %v1823
  %v2052 = vadd.f32 %v1044, %v1824
  %v2053 = vadd.f32 %v1045, %v1825
  %v2054 = vadd.f32 %v1046, %v1826
  %v2055 = vadd.f32 %v1047, %v1827
  %v2056 = vadd.f32 %v1048, %v1828
  %v2057 = vadd.f32 %v1049, %v1829
  %v2058 = vadd.f32 %v1050, %v1830
  %v2059 = vadd.f32 %v1051, %v1831
  %v2060 = vadd.f32 %v1052, %v1832
  %v2061 = vadd.f32 %v1053, %v1833
  %v2062 = vadd.f32 %v1054, %v1834
  %v2063 = vadd.f32 %v1055, %v1835
  %v2064 = vadd.f32 %v1056, %v1836
  %v2065 = vadd.f32 %v1057, %v1837
  %v2066 = vadd.f32 %v1058, %v1838
  %v2067 = vadd.f32 %v1059, %v1839
  %v2068 = vadd.f32 %v1060, %v1840
  %v2069 = vlaneseq
  %v2070 = vshrl.u32 %v2069, 7
  %v2071 = vsub.s32 2, %v2070
  %v2072 = vrot.slane %v27, %v2071
  %v2073 = vlaneseq
  %v2074 = vshrl.u32 %v2073, 7
  %v2075 = vsub.s32 6, %v2074
  %v2076 = vrot.slane %v27, %v2075
  %v2077 = vlaneseq
  %v2078 = vshrl.u32 %v2077, 7
  %v2079 = vsub.s32 2, %v2078
  %v2080 = vrot.slane %v28, %v2079
  %v2081 = vlaneseq
  %v2082 = vshrl.u32 %v2081, 7
  %v2083 = vsub.s32 6, %v2082
  %v2084 = vrot.slane %v28, %v2083
  %v2085 = vlaneseq
  %v2086 = vshrl.u32 %v2085, 7
  %v2087 = vsub.s32 2, %v2086
  %v2088 = vrot.slane %v29, %v2087
  %v2089 = vlaneseq
  %v2090 = vshrl.u32 %v2089, 7
  %v2091 = vsub.s32 6, %v2090
  %v2092 = vrot.slane %v29, %v2091
  %v2093 = vlaneseq
  %v2094 = vshrl.u32 %v2093, 7
  %v2095 = vsub.s32 2, %v2094
  %v2096 = vrot.slane %v30, %v2095
  %v2097 = vlaneseq
  %v2098 = vshrl.u32 %v2097, 7
  %v2099 = vsub.s32 6, %v2098
  %v2100 = vrot.slane %v30, %v2099
  %v2101 = vlaneseq
  %v2102 = vshrl.u32 %v2101, 7
  %v2103 = vsub.s32 2, %v2102
  %v2104 = vrot.slane %v31, %v2103
  %v2105 = vlaneseq
  %v2106 = vshrl.u32 %v2105, 7
  %v2107 = vsub.s32 6, %v2106
  %v2108 = vrot.slane %v31, %v2107
  %v2109 = vlaneseq
  %v2110 = vshrl.u32 %v2109, 7
  %v2111 = vsub.s32 2, %v2110
  %v2112 = vrot.slane %v32, %v2111
  %v2113 = vlaneseq
  %v2114 = vshrl.u32 %v2113, 7
  %v2115 = vsub.s32 6, %v2114
  %v2116 = vrot.slane %v32, %v2115
  %v2117 = vlaneseq
  %v2118 = vshrl.u32 %v2117, 7
  %v2119 = vsub.s32 2, %v2118
  %v2120 = vrot.slane %v2072, %v2119
  %v2121 = vlaneseq
  %v2122 = vshrl.u32 %v2121, 7
  %v2123 = vsub.s32 2, %v2122
  %v2124 = vrot.slane %v2076, %v2123
  %v2125 = vlaneseq
  %v2126 = vshrl.u32 %v2125, 7
  %v2127 = vsub.s32 2, %v2126
  %v2128 = vrot.slane %v2080, %v2127
  %v2129 = vlaneseq
  %v2130 = vshrl.u32 %v2129, 7
  %v2131 = vsub.s32 2, %v2130
  %v2132 = vrot.slane %v2084, %v2131
  %v2133 = vlaneseq
  %v2134 = vshrl.u32 %v2133, 7
  %v2135 = vsub.s32 2, %v2134
  %v2136 = vrot.slane %v2088, %v2135
  %v2137 = vlaneseq
  %v2138 = vshrl.u32 %v2137, 7
  %v2139 = vsub.s32 2, %v2138
  %v2140 = vrot.slane %v2092, %v2139
  %v2141 = vlaneseq
  %v2142 = vshrl.u32 %v2141, 7
  %v2143 = vsub.s32 2, %v2142
  %v2144 = vrot.slane %v2096, %v2143
  %v2145 = vlaneseq
  %v2146 = vshrl.u32 %v2145, 7
  %v2147 = vsub.s32 2, %v2146
  %v2148 = vrot.slane %v2100, %v2147
  %v2149 = vlaneseq
  %v2150 = vshrl.u32 %v2149, 7
  %v2151 = vsub.s32 2, %v2150
  %v2152 = vrot.slane %v2104, %v2151
  %v2153 = vlaneseq
  %v2154 = vshrl.u32 %v2153, 7
  %v2155 = vsub.s32 2, %v2154
  %v2156 = vrot.slane %v2108, %v2155
  %v2157 = vlaneseq
  %v2158 = vshrl.u32 %v2157, 7
  %v2159 = vsub.s32 2, %v2158
  %v2160 = vrot.slane %v2112, %v2159
  %v2161 = vlaneseq
  %v2162 = vshrl.u32 %v2161, 7
  %v2163 = vsub.s32 2, %v2162
  %v2164 = vrot.slane %v2116, %v2163
  %vm2165 = vcmp.eq.s32.totalorder %v34, %v2120
  %vm2166 = vcmp.eq.s32.totalorder %v34, %v2124
  %vm2167 = vcmp.eq.s32.totalorder %v34, %v2128
  %vm2168 = vcmp.eq.s32.totalorder %v34, %v2132
  %vm2169 = vcmp.eq.s32.totalorder %v34, %v2136
  %vm2170 = vcmp.eq.s32.totalorder %v34, %v2140
  %vm2171 = vcmp.eq.s32.totalorder %v34, %v2144
  %vm2172 = vcmp.eq.s32.totalorder %v34, %v2148
  %vm2173 = vcmp.eq.s32.totalorder %v34, %v2152
  %vm2174 = vcmp.eq.s32.totalorder %v34, %v2156
  %vm2175 = vcmp.eq.s32.totalorder %v34, %v2160
  %vm2176 = vcmp.eq.s32.totalorder %v34, %v2164
  %vm2177 = vcmp.eq.s32.totalorder %v35, %v2120
  %vm2178 = vcmp.eq.s32.totalorder %v35, %v2124
  %vm2179 = vcmp.eq.s32.totalorder %v35, %v2128
  %vm2180 = vcmp.eq.s32.totalorder %v35, %v2132
  %vm2181 = vcmp.eq.s32.totalorder %v35, %v2136
  %vm2182 = vcmp.eq.s32.totalorder %v35, %v2140
  %vm2183 = vcmp.eq.s32.totalorder %v35, %v2144
  %vm2184 = vcmp.eq.s32.totalorder %v35, %v2148
  %vm2185 = vcmp.eq.s32.totalorder %v35, %v2152
  %vm2186 = vcmp.eq.s32.totalorder %v35, %v2156
  %vm2187 = vcmp.eq.s32.totalorder %v35, %v2160
  %vm2188 = vcmp.eq.s32.totalorder %v35, %v2164
  %vm2189 = vcmp.eq.s32.totalorder %v36, %v2120
  %vm2190 = vcmp.eq.s32.totalorder %v36, %v2124
  %vm2191 = vcmp.eq.s32.totalorder %v36, %v2128
  %vm2192 = vcmp.eq.s32.totalorder %v36, %v2132
  %vm2193 = vcmp.eq.s32.totalorder %v36, %v2136
  %vm2194 = vcmp.eq.s32.totalorder %v36, %v2140
  %vm2195 = vcmp.eq.s32.totalorder %v36, %v2144
  %vm2196 = vcmp.eq.s32.totalorder %v36, %v2148
  %vm2197 = vcmp.eq.s32.totalorder %v36, %v2152
  %vm2198 = vcmp.eq.s32.totalorder %v36, %v2156
  %vm2199 = vcmp.eq.s32.totalorder %v36, %v2160
  %vm2200 = vcmp.eq.s32.totalorder %v36, %v2164
  %vm2201 = vcmp.eq.s32.totalorder %v37, %v2120
  %vm2202 = vcmp.eq.s32.totalorder %v37, %v2124
  %vm2203 = vcmp.eq.s32.totalorder %v37, %v2128
  %vm2204 = vcmp.eq.s32.totalorder %v37, %v2132
  %vm2205 = vcmp.eq.s32.totalorder %v37, %v2136
  %vm2206 = vcmp.eq.s32.totalorder %v37, %v2140
  %vm2207 = vcmp.eq.s32.totalorder %v37, %v2144
  %vm2208 = vcmp.eq.s32.totalorder %v37, %v2148
  %vm2209 = vcmp.eq.s32.totalorder %v37, %v2152
  %vm2210 = vcmp.eq.s32.totalorder %v37, %v2156
  %vm2211 = vcmp.eq.s32.totalorder %v37, %v2160
  %vm2212 = vcmp.eq.s32.totalorder %v37, %v2164
  %vm2213 = vcmp.eq.s32.totalorder %v38, %v2120
  %vm2214 = vcmp.eq.s32.totalorder %v38, %v2124
  %vm2215 = vcmp.eq.s32.totalorder %v38, %v2128
  %vm2216 = vcmp.eq.s32.totalorder %v38, %v2132
  %vm2217 = vcmp.eq.s32.totalorder %v38, %v2136
  %vm2218 = vcmp.eq.s32.totalorder %v38, %v2140
  %vm2219 = vcmp.eq.s32.totalorder %v38, %v2144
  %vm2220 = vcmp.eq.s32.totalorder %v38, %v2148
  %vm2221 = vcmp.eq.s32.totalorder %v38, %v2152
  %vm2222 = vcmp.eq.s32.totalorder %v38, %v2156
  %vm2223 = vcmp.eq.s32.totalorder %v38, %v2160
  %vm2224 = vcmp.eq.s32.totalorder %v38, %v2164
  %vm2225 = vcmp.eq.s32.totalorder %v39, %v2120
  %vm2226 = vcmp.eq.s32.totalorder %v39, %v2124
  %vm2227 = vcmp.eq.s32.totalorder %v39, %v2128
  %vm2228 = vcmp.eq.s32.totalorder %v39, %v2132
  %vm2229 = vcmp.eq.s32.totalorder %v39, %v2136
  %vm2230 = vcmp.eq.s32.totalorder %v39, %v2140
  %vm2231 = vcmp.eq.s32.totalorder %v39, %v2144
  %vm2232 = vcmp.eq.s32.totalorder %v39, %v2148
  %vm2233 = vcmp.eq.s32.totalorder %v39, %v2152
  %vm2234 = vcmp.eq.s32.totalorder %v39, %v2156
  %vm2235 = vcmp.eq.s32.totalorder %v39, %v2160
  %vm2236 = vcmp.eq.s32.totalorder %v39, %v2164
  %vm2237 = vcmp.eq.s32.totalorder %v40, %v2120
  %vm2238 = vcmp.eq.s32.totalorder %v40, %v2124
  %vm2239 = vcmp.eq.s32.totalorder %v40, %v2128
  %vm2240 = vcmp.eq.s32.totalorder %v40, %v2132
  %vm2241 = vcmp.eq.s32.totalorder %v40, %v2136
  %vm2242 = vcmp.eq.s32.totalorder %v40, %v2140
  %vm2243 = vcmp.eq.s32.totalorder %v40, %v2144
  %vm2244 = vcmp.eq.s32.totalorder %v40, %v2148
  %vm2245 = vcmp.eq.s32.totalorder %v40, %v2152
  %vm2246 = vcmp.eq.s32.totalorder %v40, %v2156
  %vm2247 = vcmp.eq.s32.totalorder %v40, %v2160
  %vm2248 = vcmp.eq.s32.totalorder %v40, %v2164
  %vm2249 = vcmp.eq.s32.totalorder %v41, %v2120
  %vm2250 = vcmp.eq.s32.totalorder %v41, %v2124
  %vm2251 = vcmp.eq.s32.totalorder %v41, %v2128
  %vm2252 = vcmp.eq.s32.totalorder %v41, %v2132
  %vm2253 = vcmp.eq.s32.totalorder %v41, %v2136
  %vm2254 = vcmp.eq.s32.totalorder %v41, %v2140
  %vm2255 = vcmp.eq.s32.totalorder %v41, %v2144
  %vm2256 = vcmp.eq.s32.totalorder %v41, %v2148
  %vm2257 = vcmp.eq.s32.totalorder %v41, %v2152
  %vm2258 = vcmp.eq.s32.totalorder %v41, %v2156
  %vm2259 = vcmp.eq.s32.totalorder %v41, %v2160
  %vm2260 = vcmp.eq.s32.totalorder %v41, %v2164
  %vm2261 = vcmp.eq.s32.totalorder %v42, %v2120
  %vm2262 = vcmp.eq.s32.totalorder %v42, %v2124
  %vm2263 = vcmp.eq.s32.totalorder %v42, %v2128
  %vm2264 = vcmp.eq.s32.totalorder %v42, %v2132
  %vm2265 = vcmp.eq.s32.totalorder %v42, %v2136
  %vm2266 = vcmp.eq.s32.totalorder %v42, %v2140
  %vm2267 = vcmp.eq.s32.totalorder %v42, %v2144
  %vm2268 = vcmp.eq.s32.totalorder %v42, %v2148
  %vm2269 = vcmp.eq.s32.totalorder %v42, %v2152
  %vm2270 = vcmp.eq.s32.totalorder %v42, %v2156
  %vm2271 = vcmp.eq.s32.totalorder %v42, %v2160
  %vm2272 = vcmp.eq.s32.totalorder %v42, %v2164
  %vm2273 = vcmp.eq.s32.totalorder %v43, %v2120
  %vm2274 = vcmp.eq.s32.totalorder %v43, %v2124
  %vm2275 = vcmp.eq.s32.totalorder %v43, %v2128
  %vm2276 = vcmp.eq.s32.totalorder %v43, %v2132
  %vm2277 = vcmp.eq.s32.totalorder %v43, %v2136
  %vm2278 = vcmp.eq.s32.totalorder %v43, %v2140
  %vm2279 = vcmp.eq.s32.totalorder %v43, %v2144
  %vm2280 = vcmp.eq.s32.totalorder %v43, %v2148
  %vm2281 = vcmp.eq.s32.totalorder %v43, %v2152
  %vm2282 = vcmp.eq.s32.totalorder %v43, %v2156
  %vm2283 = vcmp.eq.s32.totalorder %v43, %v2160
  %vm2284 = vcmp.eq.s32.totalorder %v43, %v2164
  %vm2285 = vcmp.eq.s32.totalorder %v44, %v2120
  %vm2286 = vcmp.eq.s32.totalorder %v44, %v2124
  %vm2287 = vcmp.eq.s32.totalorder %v44, %v2128
  %vm2288 = vcmp.eq.s32.totalorder %v44, %v2132
  %vm2289 = vcmp.eq.s32.totalorder %v44, %v2136
  %vm2290 = vcmp.eq.s32.totalorder %v44, %v2140
  %vm2291 = vcmp.eq.s32.totalorder %v44, %v2144
  %vm2292 = vcmp.eq.s32.totalorder %v44, %v2148
  %vm2293 = vcmp.eq.s32.totalorder %v44, %v2152
  %vm2294 = vcmp.eq.s32.totalorder %v44, %v2156
  %vm2295 = vcmp.eq.s32.totalorder %v44, %v2160
  %vm2296 = vcmp.eq.s32.totalorder %v44, %v2164
  %vm2297 = vcmp.eq.s32.totalorder %v45, %v2120
  %vm2298 = vcmp.eq.s32.totalorder %v45, %v2124
  %vm2299 = vcmp.eq.s32.totalorder %v45, %v2128
  %vm2300 = vcmp.eq.s32.totalorder %v45, %v2132
  %vm2301 = vcmp.eq.s32.totalorder %v45, %v2136
  %vm2302 = vcmp.eq.s32.totalorder %v45, %v2140
  %vm2303 = vcmp.eq.s32.totalorder %v45, %v2144
  %vm2304 = vcmp.eq.s32.totalorder %v45, %v2148
  %vm2305 = vcmp.eq.s32.totalorder %v45, %v2152
  %vm2306 = vcmp.eq.s32.totalorder %v45, %v2156
  %vm2307 = vcmp.eq.s32.totalorder %v45, %v2160
  %vm2308 = vcmp.eq.s32.totalorder %v45, %v2164
  %vm2309 = vcmp.eq.s32.totalorder %v46, %v2120
  %vm2310 = vcmp.eq.s32.totalorder %v46, %v2124
  %vm2311 = vcmp.eq.s32.totalorder %v46, %v2128
  %vm2312 = vcmp.eq.s32.totalorder %v46, %v2132
  %vm2313 = vcmp.eq.s32.totalorder %v46, %v2136
  %vm2314 = vcmp.eq.s32.totalorder %v46, %v2140
  %vm2315 = vcmp.eq.s32.totalorder %v46, %v2144
  %vm2316 = vcmp.eq.s32.totalorder %v46, %v2148
  %vm2317 = vcmp.eq.s32.totalorder %v46, %v2152
  %vm2318 = vcmp.eq.s32.totalorder %v46, %v2156
  %vm2319 = vcmp.eq.s32.totalorder %v46, %v2160
  %vm2320 = vcmp.eq.s32.totalorder %v46, %v2164
  %vm2321 = vcmp.eq.s32.totalorder %v47, %v2120
  %vm2322 = vcmp.eq.s32.totalorder %v47, %v2124
  %vm2323 = vcmp.eq.s32.totalorder %v47, %v2128
  %vm2324 = vcmp.eq.s32.totalorder %v47, %v2132
  %vm2325 = vcmp.eq.s32.totalorder %v47, %v2136
  %vm2326 = vcmp.eq.s32.totalorder %v47, %v2140
  %vm2327 = vcmp.eq.s32.totalorder %v47, %v2144
  %vm2328 = vcmp.eq.s32.totalorder %v47, %v2148
  %vm2329 = vcmp.eq.s32.totalorder %v47, %v2152
  %vm2330 = vcmp.eq.s32.totalorder %v47, %v2156
  %vm2331 = vcmp.eq.s32.totalorder %v47, %v2160
  %vm2332 = vcmp.eq.s32.totalorder %v47, %v2164
  %vm2333 = vcmp.eq.s32.totalorder %v48, %v2120
  %vm2334 = vcmp.eq.s32.totalorder %v48, %v2124
  %vm2335 = vcmp.eq.s32.totalorder %v48, %v2128
  %vm2336 = vcmp.eq.s32.totalorder %v48, %v2132
  %vm2337 = vcmp.eq.s32.totalorder %v48, %v2136
  %vm2338 = vcmp.eq.s32.totalorder %v48, %v2140
  %vm2339 = vcmp.eq.s32.totalorder %v48, %v2144
  %vm2340 = vcmp.eq.s32.totalorder %v48, %v2148
  %vm2341 = vcmp.eq.s32.totalorder %v48, %v2152
  %vm2342 = vcmp.eq.s32.totalorder %v48, %v2156
  %vm2343 = vcmp.eq.s32.totalorder %v48, %v2160
  %vm2344 = vcmp.eq.s32.totalorder %v48, %v2164
  %vm2345 = vcmp.eq.s32.totalorder %v49, %v2120
  %vm2346 = vcmp.eq.s32.totalorder %v49, %v2124
  %vm2347 = vcmp.eq.s32.totalorder %v49, %v2128
  %vm2348 = vcmp.eq.s32.totalorder %v49, %v2132
  %vm2349 = vcmp.eq.s32.totalorder %v49, %v2136
  %vm2350 = vcmp.eq.s32.totalorder %v49, %v2140
  %vm2351 = vcmp.eq.s32.totalorder %v49, %v2144
  %vm2352 = vcmp.eq.s32.totalorder %v49, %v2148
  %vm2353 = vcmp.eq.s32.totalorder %v49, %v2152
  %vm2354 = vcmp.eq.s32.totalorder %v49, %v2156
  %vm2355 = vcmp.eq.s32.totalorder %v49, %v2160
  %vm2356 = vcmp.eq.s32.totalorder %v49, %v2164
  %vm2357 = vcmp.eq.s32.totalorder %v50, %v2120
  %vm2358 = vcmp.eq.s32.totalorder %v50, %v2124
  %vm2359 = vcmp.eq.s32.totalorder %v50, %v2128
  %vm2360 = vcmp.eq.s32.totalorder %v50, %v2132
  %vm2361 = vcmp.eq.s32.totalorder %v50, %v2136
  %vm2362 = vcmp.eq.s32.totalorder %v50, %v2140
  %vm2363 = vcmp.eq.s32.totalorder %v50, %v2144
  %vm2364 = vcmp.eq.s32.totalorder %v50, %v2148
  %vm2365 = vcmp.eq.s32.totalorder %v50, %v2152
  %vm2366 = vcmp.eq.s32.totalorder %v50, %v2156
  %vm2367 = vcmp.eq.s32.totalorder %v50, %v2160
  %vm2368 = vcmp.eq.s32.totalorder %v50, %v2164
  %vm2369 = vcmp.eq.s32.totalorder %v51, %v2120
  %vm2370 = vcmp.eq.s32.totalorder %v51, %v2124
  %vm2371 = vcmp.eq.s32.totalorder %v51, %v2128
  %vm2372 = vcmp.eq.s32.totalorder %v51, %v2132
  %vm2373 = vcmp.eq.s32.totalorder %v51, %v2136
  %vm2374 = vcmp.eq.s32.totalorder %v51, %v2140
  %vm2375 = vcmp.eq.s32.totalorder %v51, %v2144
  %vm2376 = vcmp.eq.s32.totalorder %v51, %v2148
  %vm2377 = vcmp.eq.s32.totalorder %v51, %v2152
  %vm2378 = vcmp.eq.s32.totalorder %v51, %v2156
  %vm2379 = vcmp.eq.s32.totalorder %v51, %v2160
  %vm2380 = vcmp.eq.s32.totalorder %v51, %v2164
  %vm2381 = vcmp.eq.s32.totalorder %v52, %v2120
  %vm2382 = vcmp.eq.s32.totalorder %v52, %v2124
  %vm2383 = vcmp.eq.s32.totalorder %v52, %v2128
  %vm2384 = vcmp.eq.s32.totalorder %v52, %v2132
  %vm2385 = vcmp.eq.s32.totalorder %v52, %v2136
  %vm2386 = vcmp.eq.s32.totalorder %v52, %v2140
  %vm2387 = vcmp.eq.s32.totalorder %v52, %v2144
  %vm2388 = vcmp.eq.s32.totalorder %v52, %v2148
  %vm2389 = vcmp.eq.s32.totalorder %v52, %v2152
  %vm2390 = vcmp.eq.s32.totalorder %v52, %v2156
  %vm2391 = vcmp.eq.s32.totalorder %v52, %v2160
  %vm2392 = vcmp.eq.s32.totalorder %v52, %v2164
  %v2393 = vsel %vm2165, 1, 0
  %v2394 = vsel %vm2166, 1, 0
  %v2395 = vsel %vm2167, 1, 0
  %v2396 = vsel %vm2168, 1, 0
  %v2397 = vsel %vm2169, 1, 0
  %v2398 = vsel %vm2170, 1, 0
  %v2399 = vsel %vm2171, 1, 0
  %v2400 = vsel %vm2172, 1, 0
  %v2401 = vsel %vm2173, 1, 0
  %v2402 = vsel %vm2174, 1, 0
  %v2403 = vsel %vm2175, 1, 0
  %v2404 = vsel %vm2176, 1, 0
  %v2405 = vsel %vm2177, 1, 0
  %v2406 = vsel %vm2178, 1, 0
  %v2407 = vsel %vm2179, 1, 0
  %v2408 = vsel %vm2180, 1, 0
  %v2409 = vsel %vm2181, 1, 0
  %v2410 = vsel %vm2182, 1, 0
  %v2411 = vsel %vm2183, 1, 0
  %v2412 = vsel %vm2184, 1, 0
  %v2413 = vsel %vm2185, 1, 0
  %v2414 = vsel %vm2186, 1, 0
  %v2415 = vsel %vm2187, 1, 0
  %v2416 = vsel %vm2188, 1, 0
  %v2417 = vsel %vm2189, 1, 0
  %v2418 = vsel %vm2190, 1, 0
  %v2419 = vsel %vm2191, 1, 0
  %v2420 = vsel %vm2192, 1, 0
  %v2421 = vsel %vm2193, 1, 0
  %v2422 = vsel %vm2194, 1, 0
  %v2423 = vsel %vm2195, 1, 0
  %v2424 = vsel %vm2196, 1, 0
  %v2425 = vsel %vm2197, 1, 0
  %v2426 = vsel %vm2198, 1, 0
  %v2427 = vsel %vm2199, 1, 0
  %v2428 = vsel %vm2200, 1, 0
  %v2429 = vsel %vm2201, 1, 0
  %v2430 = vsel %vm2202, 1, 0
  %v2431 = vsel %vm2203, 1, 0
  %v2432 = vsel %vm2204, 1, 0
  %v2433 = vsel %vm2205, 1, 0
  %v2434 = vsel %vm2206, 1, 0
  %v2435 = vsel %vm2207, 1, 0
  %v2436 = vsel %vm2208, 1, 0
  %v2437 = vsel %vm2209, 1, 0
  %v2438 = vsel %vm2210, 1, 0
  %v2439 = vsel %vm2211, 1, 0
  %v2440 = vsel %vm2212, 1, 0
  %v2441 = vsel %vm2213, 1, 0
  %v2442 = vsel %vm2214, 1, 0
  %v2443 = vsel %vm2215, 1, 0
  %v2444 = vsel %vm2216, 1, 0
  %v2445 = vsel %vm2217, 1, 0
  %v2446 = vsel %vm2218, 1, 0
  %v2447 = vsel %vm2219, 1, 0
  %v2448 = vsel %vm2220, 1, 0
  %v2449 = vsel %vm2221, 1, 0
  %v2450 = vsel %vm2222, 1, 0
  %v2451 = vsel %vm2223, 1, 0
  %v2452 = vsel %vm2224, 1, 0
  %v2453 = vsel %vm2225, 1, 0
  %v2454 = vsel %vm2226, 1, 0
  %v2455 = vsel %vm2227, 1, 0
  %v2456 = vsel %vm2228, 1, 0
  %v2457 = vsel %vm2229, 1, 0
  %v2458 = vsel %vm2230, 1, 0
  %v2459 = vsel %vm2231, 1, 0
  %v2460 = vsel %vm2232, 1, 0
  %v2461 = vsel %vm2233, 1, 0
  %v2462 = vsel %vm2234, 1, 0
  %v2463 = vsel %vm2235, 1, 0
  %v2464 = vsel %vm2236, 1, 0
  %v2465 = vsel %vm2237, 1, 0
  %v2466 = vsel %vm2238, 1, 0
  %v2467 = vsel %vm2239, 1, 0
  %v2468 = vsel %vm2240, 1, 0
  %v2469 = vsel %vm2241, 1, 0
  %v2470 = vsel %vm2242, 1, 0
  %v2471 = vsel %vm2243, 1, 0
  %v2472 = vsel %vm2244, 1, 0
  %v2473 = vsel %vm2245, 1, 0
  %v2474 = vsel %vm2246, 1, 0
  %v2475 = vsel %vm2247, 1, 0
  %v2476 = vsel %vm2248, 1, 0
  %v2477 = vsel %vm2249, 1, 0
  %v2478 = vsel %vm2250, 1, 0
  %v2479 = vsel %vm2251, 1, 0
  %v2480 = vsel %vm2252, 1, 0
  %v2481 = vsel %vm2253, 1, 0
  %v2482 = vsel %vm2254, 1, 0
  %v2483 = vsel %vm2255, 1, 0
  %v2484 = vsel %vm2256, 1, 0
  %v2485 = vsel %vm2257, 1, 0
  %v2486 = vsel %vm2258, 1, 0
  %v2487 = vsel %vm2259, 1, 0
  %v2488 = vsel %vm2260, 1, 0
  %v2489 = vsel %vm2261, 1, 0
  %v2490 = vsel %vm2262, 1, 0
  %v2491 = vsel %vm2263, 1, 0
  %v2492 = vsel %vm2264, 1, 0
  %v2493 = vsel %vm2265, 1, 0
  %v2494 = vsel %vm2266, 1, 0
  %v2495 = vsel %vm2267, 1, 0
  %v2496 = vsel %vm2268, 1, 0
  %v2497 = vsel %vm2269, 1, 0
  %v2498 = vsel %vm2270, 1, 0
  %v2499 = vsel %vm2271, 1, 0
  %v2500 = vsel %vm2272, 1, 0
  %v2501 = vsel %vm2273, 1, 0
  %v2502 = vsel %vm2274, 1, 0
  %v2503 = vsel %vm2275, 1, 0
  %v2504 = vsel %vm2276, 1, 0
  %v2505 = vsel %vm2277, 1, 0
  %v2506 = vsel %vm2278, 1, 0
  %v2507 = vsel %vm2279, 1, 0
  %v2508 = vsel %vm2280, 1, 0
  %v2509 = vsel %vm2281, 1, 0
  %v2510 = vsel %vm2282, 1, 0
  %v2511 = vsel %vm2283, 1, 0
  %v2512 = vsel %vm2284, 1, 0
  %v2513 = vsel %vm2285, 1, 0
  %v2514 = vsel %vm2286, 1, 0
  %v2515 = vsel %vm2287, 1, 0
  %v2516 = vsel %vm2288, 1, 0
  %v2517 = vsel %vm2289, 1, 0
  %v2518 = vsel %vm2290, 1, 0
  %v2519 = vsel %vm2291, 1, 0
  %v2520 = vsel %vm2292, 1, 0
  %v2521 = vsel %vm2293, 1, 0
  %v2522 = vsel %vm2294, 1, 0
  %v2523 = vsel %vm2295, 1, 0
  %v2524 = vsel %vm2296, 1, 0
  %v2525 = vsel %vm2297, 1, 0
  %v2526 = vsel %vm2298, 1, 0
  %v2527 = vsel %vm2299, 1, 0
  %v2528 = vsel %vm2300, 1, 0
  %v2529 = vsel %vm2301, 1, 0
  %v2530 = vsel %vm2302, 1, 0
  %v2531 = vsel %vm2303, 1, 0
  %v2532 = vsel %vm2304, 1, 0
  %v2533 = vsel %vm2305, 1, 0
  %v2534 = vsel %vm2306, 1, 0
  %v2535 = vsel %vm2307, 1, 0
  %v2536 = vsel %vm2308, 1, 0
  %v2537 = vsel %vm2309, 1, 0
  %v2538 = vsel %vm2310, 1, 0
  %v2539 = vsel %vm2311, 1, 0
  %v2540 = vsel %vm2312, 1, 0
  %v2541 = vsel %vm2313, 1, 0
  %v2542 = vsel %vm2314, 1, 0
  %v2543 = vsel %vm2315, 1, 0
  %v2544 = vsel %vm2316, 1, 0
  %v2545 = vsel %vm2317, 1, 0
  %v2546 = vsel %vm2318, 1, 0
  %v2547 = vsel %vm2319, 1, 0
  %v2548 = vsel %vm2320, 1, 0
  %v2549 = vsel %vm2321, 1, 0
  %v2550 = vsel %vm2322, 1, 0
  %v2551 = vsel %vm2323, 1, 0
  %v2552 = vsel %vm2324, 1, 0
  %v2553 = vsel %vm2325, 1, 0
  %v2554 = vsel %vm2326, 1, 0
  %v2555 = vsel %vm2327, 1, 0
  %v2556 = vsel %vm2328, 1, 0
  %v2557 = vsel %vm2329, 1, 0
  %v2558 = vsel %vm2330, 1, 0
  %v2559 = vsel %vm2331, 1, 0
  %v2560 = vsel %vm2332, 1, 0
  %v2561 = vsel %vm2333, 1, 0
  %v2562 = vsel %vm2334, 1, 0
  %v2563 = vsel %vm2335, 1, 0
  %v2564 = vsel %vm2336, 1, 0
  %v2565 = vsel %vm2337, 1, 0
  %v2566 = vsel %vm2338, 1, 0
  %v2567 = vsel %vm2339, 1, 0
  %v2568 = vsel %vm2340, 1, 0
  %v2569 = vsel %vm2341, 1, 0
  %v2570 = vsel %vm2342, 1, 0
  %v2571 = vsel %vm2343, 1, 0
  %v2572 = vsel %vm2344, 1, 0
  %v2573 = vsel %vm2345, 1, 0
  %v2574 = vsel %vm2346, 1, 0
  %v2575 = vsel %vm2347, 1, 0
  %v2576 = vsel %vm2348, 1, 0
  %v2577 = vsel %vm2349, 1, 0
  %v2578 = vsel %vm2350, 1, 0
  %v2579 = vsel %vm2351, 1, 0
  %v2580 = vsel %vm2352, 1, 0
  %v2581 = vsel %vm2353, 1, 0
  %v2582 = vsel %vm2354, 1, 0
  %v2583 = vsel %vm2355, 1, 0
  %v2584 = vsel %vm2356, 1, 0
  %v2585 = vsel %vm2357, 1, 0
  %v2586 = vsel %vm2358, 1, 0
  %v2587 = vsel %vm2359, 1, 0
  %v2588 = vsel %vm2360, 1, 0
  %v2589 = vsel %vm2361, 1, 0
  %v2590 = vsel %vm2362, 1, 0
  %v2591 = vsel %vm2363, 1, 0
  %v2592 = vsel %vm2364, 1, 0
  %v2593 = vsel %vm2365, 1, 0
  %v2594 = vsel %vm2366, 1, 0
  %v2595 = vsel %vm2367, 1, 0
  %v2596 = vsel %vm2368, 1, 0
  %v2597 = vsel %vm2369, 1, 0
  %v2598 = vsel %vm2370, 1, 0
  %v2599 = vsel %vm2371, 1, 0
  %v2600 = vsel %vm2372, 1, 0
  %v2601 = vsel %vm2373, 1, 0
  %v2602 = vsel %vm2374, 1, 0
  %v2603 = vsel %vm2375, 1, 0
  %v2604 = vsel %vm2376, 1, 0
  %v2605 = vsel %vm2377, 1, 0
  %v2606 = vsel %vm2378, 1, 0
  %v2607 = vsel %vm2379, 1, 0
  %v2608 = vsel %vm2380, 1, 0
  %v2609 = vsel %vm2381, 1, 0
  %v2610 = vsel %vm2382, 1, 0
  %v2611 = vsel %vm2383, 1, 0
  %v2612 = vsel %vm2384, 1, 0
  %v2613 = vsel %vm2385, 1, 0
  %v2614 = vsel %vm2386, 1, 0
  %v2615 = vsel %vm2387, 1, 0
  %v2616 = vsel %vm2388, 1, 0
  %v2617 = vsel %vm2389, 1, 0
  %v2618 = vsel %vm2390, 1, 0
  %v2619 = vsel %vm2391, 1, 0
  %v2620 = vsel %vm2392, 1, 0
  %v2621 = vcvt.s32.f32 %v2393
  %v2622 = vcvt.s32.f32 %v2394
  %v2623 = vcvt.s32.f32 %v2395
  %v2624 = vcvt.s32.f32 %v2396
  %v2625 = vcvt.s32.f32 %v2397
  %v2626 = vcvt.s32.f32 %v2398
  %v2627 = vcvt.s32.f32 %v2399
  %v2628 = vcvt.s32.f32 %v2400
  %v2629 = vcvt.s32.f32 %v2401
  %v2630 = vcvt.s32.f32 %v2402
  %v2631 = vcvt.s32.f32 %v2403
  %v2632 = vcvt.s32.f32 %v2404
  %v2633 = vcvt.s32.f32 %v2405
  %v2634 = vcvt.s32.f32 %v2406
  %v2635 = vcvt.s32.f32 %v2407
  %v2636 = vcvt.s32.f32 %v2408
  %v2637 = vcvt.s32.f32 %v2409
  %v2638 = vcvt.s32.f32 %v2410
  %v2639 = vcvt.s32.f32 %v2411
  %v2640 = vcvt.s32.f32 %v2412
  %v2641 = vcvt.s32.f32 %v2413
  %v2642 = vcvt.s32.f32 %v2414
  %v2643 = vcvt.s32.f32 %v2415
  %v2644 = vcvt.s32.f32 %v2416
  %v2645 = vcvt.s32.f32 %v2417
  %v2646 = vcvt.s32.f32 %v2418
  %v2647 = vcvt.s32.f32 %v2419
  %v2648 = vcvt.s32.f32 %v2420
  %v2649 = vcvt.s32.f32 %v2421
  %v2650 = vcvt.s32.f32 %v2422
  %v2651 = vcvt.s32.f32 %v2423
  %v2652 = vcvt.s32.f32 %v2424
  %v2653 = vcvt.s32.f32 %v2425
  %v2654 = vcvt.s32.f32 %v2426
  %v2655 = vcvt.s32.f32 %v2427
  %v2656 = vcvt.s32.f32 %v2428
  %v2657 = vcvt.s32.f32 %v2429
  %v2658 = vcvt.s32.f32 %v2430
  %v2659 = vcvt.s32.f32 %v2431
  %v2660 = vcvt.s32.f32 %v2432
  %v2661 = vcvt.s32.f32 %v2433
  %v2662 = vcvt.s32.f32 %v2434
  %v2663 = vcvt.s32.f32 %v2435
  %v2664 = vcvt.s32.f32 %v2436
  %v2665 = vcvt.s32.f32 %v2437
  %v2666 = vcvt.s32.f32 %v2438
  %v2667 = vcvt.s32.f32 %v2439
  %v2668 = vcvt.s32.f32 %v2440
  %v2669 = vcvt.s32.f32 %v2441
  %v2670 = vcvt.s32.f32 %v2442
  %v2671 = vcvt.s32.f32 %v2443
  %v2672 = vcvt.s32.f32 %v2444
  %v2673 = vcvt.s32.f32 %v2445
  %v2674 = vcvt.s32.f32 %v2446
  %v2675 = vcvt.s32.f32 %v2447
  %v2676 = vcvt.s32.f32 %v2448
  %v2677 = vcvt.s32.f32 %v2449
  %v2678 = vcvt.s32.f32 %v2450
  %v2679 = vcvt.s32.f32 %v2451
  %v2680 = vcvt.s32.f32 %v2452
  %v2681 = vcvt.s32.f32 %v2453
  %v2682 = vcvt.s32.f32 %v2454
  %v2683 = vcvt.s32.f32 %v2455
  %v2684 = vcvt.s32.f32 %v2456
  %v2685 = vcvt.s32.f32 %v2457
  %v2686 = vcvt.s32.f32 %v2458
  %v2687 = vcvt.s32.f32 %v2459
  %v2688 = vcvt.s32.f32 %v2460
  %v2689 = vcvt.s32.f32 %v2461
  %v2690 = vcvt.s32.f32 %v2462
  %v2691 = vcvt.s32.f32 %v2463
  %v2692 = vcvt.s32.f32 %v2464
  %v2693 = vcvt.s32.f32 %v2465
  %v2694 = vcvt.s32.f32 %v2466
  %v2695 = vcvt.s32.f32 %v2467
  %v2696 = vcvt.s32.f32 %v2468
  %v2697 = vcvt.s32.f32 %v2469
  %v2698 = vcvt.s32.f32 %v2470
  %v2699 = vcvt.s32.f32 %v2471
  %v2700 = vcvt.s32.f32 %v2472
  %v2701 = vcvt.s32.f32 %v2473
  %v2702 = vcvt.s32.f32 %v2474
  %v2703 = vcvt.s32.f32 %v2475
  %v2704 = vcvt.s32.f32 %v2476
  %v2705 = vcvt.s32.f32 %v2477
  %v2706 = vcvt.s32.f32 %v2478
  %v2707 = vcvt.s32.f32 %v2479
  %v2708 = vcvt.s32.f32 %v2480
  %v2709 = vcvt.s32.f32 %v2481
  %v2710 = vcvt.s32.f32 %v2482
  %v2711 = vcvt.s32.f32 %v2483
  %v2712 = vcvt.s32.f32 %v2484
  %v2713 = vcvt.s32.f32 %v2485
  %v2714 = vcvt.s32.f32 %v2486
  %v2715 = vcvt.s32.f32 %v2487
  %v2716 = vcvt.s32.f32 %v2488
  %v2717 = vcvt.s32.f32 %v2489
  %v2718 = vcvt.s32.f32 %v2490
  %v2719 = vcvt.s32.f32 %v2491
  %v2720 = vcvt.s32.f32 %v2492
  %v2721 = vcvt.s32.f32 %v2493
  %v2722 = vcvt.s32.f32 %v2494
  %v2723 = vcvt.s32.f32 %v2495
  %v2724 = vcvt.s32.f32 %v2496
  %v2725 = vcvt.s32.f32 %v2497
  %v2726 = vcvt.s32.f32 %v2498
  %v2727 = vcvt.s32.f32 %v2499
  %v2728 = vcvt.s32.f32 %v2500
  %v2729 = vcvt.s32.f32 %v2501
  %v2730 = vcvt.s32.f32 %v2502
  %v2731 = vcvt.s32.f32 %v2503
  %v2732 = vcvt.s32.f32 %v2504
  %v2733 = vcvt.s32.f32 %v2505
  %v2734 = vcvt.s32.f32 %v2506
  %v2735 = vcvt.s32.f32 %v2507
  %v2736 = vcvt.s32.f32 %v2508
  %v2737 = vcvt.s32.f32 %v2509
  %v2738 = vcvt.s32.f32 %v2510
  %v2739 = vcvt.s32.f32 %v2511
  %v2740 = vcvt.s32.f32 %v2512
  %v2741 = vcvt.s32.f32 %v2513
  %v2742 = vcvt.s32.f32 %v2514
  %v2743 = vcvt.s32.f32 %v2515
  %v2744 = vcvt.s32.f32 %v2516
  %v2745 = vcvt.s32.f32 %v2517
  %v2746 = vcvt.s32.f32 %v2518
  %v2747 = vcvt.s32.f32 %v2519
  %v2748 = vcvt.s32.f32 %v2520
  %v2749 = vcvt.s32.f32 %v2521
  %v2750 = vcvt.s32.f32 %v2522
  %v2751 = vcvt.s32.f32 %v2523
  %v2752 = vcvt.s32.f32 %v2524
  %v2753 = vcvt.s32.f32 %v2525
  %v2754 = vcvt.s32.f32 %v2526
  %v2755 = vcvt.s32.f32 %v2527
  %v2756 = vcvt.s32.f32 %v2528
  %v2757 = vcvt.s32.f32 %v2529
  %v2758 = vcvt.s32.f32 %v2530
  %v2759 = vcvt.s32.f32 %v2531
  %v2760 = vcvt.s32.f32 %v2532
  %v2761 = vcvt.s32.f32 %v2533
  %v2762 = vcvt.s32.f32 %v2534
  %v2763 = vcvt.s32.f32 %v2535
  %v2764 = vcvt.s32.f32 %v2536
  %v2765 = vcvt.s32.f32 %v2537
  %v2766 = vcvt.s32.f32 %v2538
  %v2767 = vcvt.s32.f32 %v2539
  %v2768 = vcvt.s32.f32 %v2540
  %v2769 = vcvt.s32.f32 %v2541
  %v2770 = vcvt.s32.f32 %v2542
  %v2771 = vcvt.s32.f32 %v2543
  %v2772 = vcvt.s32.f32 %v2544
  %v2773 = vcvt.s32.f32 %v2545
  %v2774 = vcvt.s32.f32 %v2546
  %v2775 = vcvt.s32.f32 %v2547
  %v2776 = vcvt.s32.f32 %v2548
  %v2777 = vcvt.s32.f32 %v2549
  %v2778 = vcvt.s32.f32 %v2550
  %v2779 = vcvt.s32.f32 %v2551
  %v2780 = vcvt.s32.f32 %v2552
  %v2781 = vcvt.s32.f32 %v2553
  %v2782 = vcvt.s32.f32 %v2554
  %v2783 = vcvt.s32.f32 %v2555
  %v2784 = vcvt.s32.f32 %v2556
  %v2785 = vcvt.s32.f32 %v2557
  %v2786 = vcvt.s32.f32 %v2558
  %v2787 = vcvt.s32.f32 %v2559
  %v2788 = vcvt.s32.f32 %v2560
  %v2789 = vcvt.s32.f32 %v2561
  %v2790 = vcvt.s32.f32 %v2562
  %v2791 = vcvt.s32.f32 %v2563
  %v2792 = vcvt.s32.f32 %v2564
  %v2793 = vcvt.s32.f32 %v2565
  %v2794 = vcvt.s32.f32 %v2566
  %v2795 = vcvt.s32.f32 %v2567
  %v2796 = vcvt.s32.f32 %v2568
  %v2797 = vcvt.s32.f32 %v2569
  %v2798 = vcvt.s32.f32 %v2570
  %v2799 = vcvt.s32.f32 %v2571
  %v2800 = vcvt.s32.f32 %v2572
  %v2801 = vcvt.s32.f32 %v2573
  %v2802 = vcvt.s32.f32 %v2574
  %v2803 = vcvt.s32.f32 %v2575
  %v2804 = vcvt.s32.f32 %v2576
  %v2805 = vcvt.s32.f32 %v2577
  %v2806 = vcvt.s32.f32 %v2578
  %v2807 = vcvt.s32.f32 %v2579
  %v2808 = vcvt.s32.f32 %v2580
  %v2809 = vcvt.s32.f32 %v2581
  %v2810 = vcvt.s32.f32 %v2582
  %v2811 = vcvt.s32.f32 %v2583
  %v2812 = vcvt.s32.f32 %v2584
  %v2813 = vcvt.s32.f32 %v2585
  %v2814 = vcvt.s32.f32 %v2586
  %v2815 = vcvt.s32.f32 %v2587
  %v2816 = vcvt.s32.f32 %v2588
  %v2817 = vcvt.s32.f32 %v2589
  %v2818 = vcvt.s32.f32 %v2590
  %v2819 = vcvt.s32.f32 %v2591
  %v2820 = vcvt.s32.f32 %v2592
  %v2821 = vcvt.s32.f32 %v2593
  %v2822 = vcvt.s32.f32 %v2594
  %v2823 = vcvt.s32.f32 %v2595
  %v2824 = vcvt.s32.f32 %v2596
  %v2825 = vcvt.s32.f32 %v2597
  %v2826 = vcvt.s32.f32 %v2598
  %v2827 = vcvt.s32.f32 %v2599
  %v2828 = vcvt.s32.f32 %v2600
  %v2829 = vcvt.s32.f32 %v2601
  %v2830 = vcvt.s32.f32 %v2602
  %v2831 = vcvt.s32.f32 %v2603
  %v2832 = vcvt.s32.f32 %v2604
  %v2833 = vcvt.s32.f32 %v2605
  %v2834 = vcvt.s32.f32 %v2606
  %v2835 = vcvt.s32.f32 %v2607
  %v2836 = vcvt.s32.f32 %v2608
  %v2837 = vcvt.s32.f32 %v2609
  %v2838 = vcvt.s32.f32 %v2610
  %v2839 = vcvt.s32.f32 %v2611
  %v2840 = vcvt.s32.f32 %v2612
  %v2841 = vcvt.s32.f32 %v2613
  %v2842 = vcvt.s32.f32 %v2614
  %v2843 = vcvt.s32.f32 %v2615
  %v2844 = vcvt.s32.f32 %v2616
  %v2845 = vcvt.s32.f32 %v2617
  %v2846 = vcvt.s32.f32 %v2618
  %v2847 = vcvt.s32.f32 %v2619
  %v2848 = vcvt.s32.f32 %v2620
  %v2849 = vadd.f32 %v1841, %v2621
  %v2850 = vadd.f32 %v1842, %v2622
  %v2851 = vadd.f32 %v1843, %v2623
  %v2852 = vadd.f32 %v1844, %v2624
  %v2853 = vadd.f32 %v1845, %v2625
  %v2854 = vadd.f32 %v1846, %v2626
  %v2855 = vadd.f32 %v1847, %v2627
  %v2856 = vadd.f32 %v1848, %v2628
  %v2857 = vadd.f32 %v1849, %v2629
  %v2858 = vadd.f32 %v1850, %v2630
  %v2859 = vadd.f32 %v1851, %v2631
  %v2860 = vadd.f32 %v1852, %v2632
  %v2861 = vadd.f32 %v1853, %v2633
  %v2862 = vadd.f32 %v1854, %v2634
  %v2863 = vadd.f32 %v1855, %v2635
  %v2864 = vadd.f32 %v1856, %v2636
  %v2865 = vadd.f32 %v1857, %v2637
  %v2866 = vadd.f32 %v1858, %v2638
  %v2867 = vadd.f32 %v1859, %v2639
  %v2868 = vadd.f32 %v1860, %v2640
  %v2869 = vadd.f32 %v1861, %v2641
  %v2870 = vadd.f32 %v1862, %v2642
  %v2871 = vadd.f32 %v1863, %v2643
  %v2872 = vadd.f32 %v1864, %v2644
  %v2873 = vadd.f32 %v1865, %v2645
  %v2874 = vadd.f32 %v1866, %v2646
  %v2875 = vadd.f32 %v1867, %v2647
  %v2876 = vadd.f32 %v1868, %v2648
  %v2877 = vadd.f32 %v1869, %v2649
  %v2878 = vadd.f32 %v1870, %v2650
  %v2879 = vadd.f32 %v1871, %v2651
  %v2880 = vadd.f32 %v1872, %v2652
  %v2881 = vadd.f32 %v1873, %v2653
  %v2882 = vadd.f32 %v1874, %v2654
  %v2883 = vadd.f32 %v1875, %v2655
  %v2884 = vadd.f32 %v1876, %v2656
  %v2885 = vadd.f32 %v1877, %v2657
  %v2886 = vadd.f32 %v1878, %v2658
  %v2887 = vadd.f32 %v1879, %v2659
  %v2888 = vadd.f32 %v1880, %v2660
  %v2889 = vadd.f32 %v1881, %v2661
  %v2890 = vadd.f32 %v1882, %v2662
  %v2891 = vadd.f32 %v1883, %v2663
  %v2892 = vadd.f32 %v1884, %v2664
  %v2893 = vadd.f32 %v1885, %v2665
  %v2894 = vadd.f32 %v1886, %v2666
  %v2895 = vadd.f32 %v1887, %v2667
  %v2896 = vadd.f32 %v1888, %v2668
  %v2897 = vadd.f32 %v1889, %v2669
  %v2898 = vadd.f32 %v1890, %v2670
  %v2899 = vadd.f32 %v1891, %v2671
  %v2900 = vadd.f32 %v1892, %v2672
  %v2901 = vadd.f32 %v1893, %v2673
  %v2902 = vadd.f32 %v1894, %v2674
  %v2903 = vadd.f32 %v1895, %v2675
  %v2904 = vadd.f32 %v1896, %v2676
  %v2905 = vadd.f32 %v1897, %v2677
  %v2906 = vadd.f32 %v1898, %v2678
  %v2907 = vadd.f32 %v1899, %v2679
  %v2908 = vadd.f32 %v1900, %v2680
  %v2909 = vadd.f32 %v1901, %v2681
  %v2910 = vadd.f32 %v1902, %v2682
  %v2911 = vadd.f32 %v1903, %v2683
  %v2912 = vadd.f32 %v1904, %v2684
  %v2913 = vadd.f32 %v1905, %v2685
  %v2914 = vadd.f32 %v1906, %v2686
  %v2915 = vadd.f32 %v1907, %v2687
  %v2916 = vadd.f32 %v1908, %v2688
  %v2917 = vadd.f32 %v1909, %v2689
  %v2918 = vadd.f32 %v1910, %v2690
  %v2919 = vadd.f32 %v1911, %v2691
  %v2920 = vadd.f32 %v1912, %v2692
  %v2921 = vadd.f32 %v1913, %v2693
  %v2922 = vadd.f32 %v1914, %v2694
  %v2923 = vadd.f32 %v1915, %v2695
  %v2924 = vadd.f32 %v1916, %v2696
  %v2925 = vadd.f32 %v1917, %v2697
  %v2926 = vadd.f32 %v1918, %v2698
  %v2927 = vadd.f32 %v1919, %v2699
  %v2928 = vadd.f32 %v1920, %v2700
  %v2929 = vadd.f32 %v1921, %v2701
  %v2930 = vadd.f32 %v1922, %v2702
  %v2931 = vadd.f32 %v1923, %v2703
  %v2932 = vadd.f32 %v1924, %v2704
  %v2933 = vadd.f32 %v1925, %v2705
  %v2934 = vadd.f32 %v1926, %v2706
  %v2935 = vadd.f32 %v1927, %v2707
  %v2936 = vadd.f32 %v1928, %v2708
  %v2937 = vadd.f32 %v1929, %v2709
  %v2938 = vadd.f32 %v1930, %v2710
  %v2939 = vadd.f32 %v1931, %v2711
  %v2940 = vadd.f32 %v1932, %v2712
  %v2941 = vadd.f32 %v1933, %v2713
  %v2942 = vadd.f32 %v1934, %v2714
  %v2943 = vadd.f32 %v1935, %v2715
  %v2944 = vadd.f32 %v1936, %v2716
  %v2945 = vadd.f32 %v1937, %v2717
  %v2946 = vadd.f32 %v1938, %v2718
  %v2947 = vadd.f32 %v1939, %v2719
  %v2948 = vadd.f32 %v1940, %v2720
  %v2949 = vadd.f32 %v1941, %v2721
  %v2950 = vadd.f32 %v1942, %v2722
  %v2951 = vadd.f32 %v1943, %v2723
  %v2952 = vadd.f32 %v1944, %v2724
  %v2953 = vadd.f32 %v1945, %v2725
  %v2954 = vadd.f32 %v1946, %v2726
  %v2955 = vadd.f32 %v1947, %v2727
  %v2956 = vadd.f32 %v1948, %v2728
  %v2957 = vadd.f32 %v1949, %v2729
  %v2958 = vadd.f32 %v1950, %v2730
  %v2959 = vadd.f32 %v1951, %v2731
  %v2960 = vadd.f32 %v1952, %v2732
  %v2961 = vadd.f32 %v1953, %v2733
  %v2962 = vadd.f32 %v1954, %v2734
  %v2963 = vadd.f32 %v1955, %v2735
  %v2964 = vadd.f32 %v1956, %v2736
  %v2965 = vadd.f32 %v1957, %v2737
  %v2966 = vadd.f32 %v1958, %v2738
  %v2967 = vadd.f32 %v1959, %v2739
  %v2968 = vadd.f32 %v1960, %v2740
  %v2969 = vadd.f32 %v1961, %v2741
  %v2970 = vadd.f32 %v1962, %v2742
  %v2971 = vadd.f32 %v1963, %v2743
  %v2972 = vadd.f32 %v1964, %v2744
  %v2973 = vadd.f32 %v1965, %v2745
  %v2974 = vadd.f32 %v1966, %v2746
  %v2975 = vadd.f32 %v1967, %v2747
  %v2976 = vadd.f32 %v1968, %v2748
  %v2977 = vadd.f32 %v1969, %v2749
  %v2978 = vadd.f32 %v1970, %v2750
  %v2979 = vadd.f32 %v1971, %v2751
  %v2980 = vadd.f32 %v1972, %v2752
  %v2981 = vadd.f32 %v1973, %v2753
  %v2982 = vadd.f32 %v1974, %v2754
  %v2983 = vadd.f32 %v1975, %v2755
  %v2984 = vadd.f32 %v1976, %v2756
  %v2985 = vadd.f32 %v1977, %v2757
  %v2986 = vadd.f32 %v1978, %v2758
  %v2987 = vadd.f32 %v1979, %v2759
  %v2988 = vadd.f32 %v1980, %v2760
  %v2989 = vadd.f32 %v1981, %v2761
  %v2990 = vadd.f32 %v1982, %v2762
  %v2991 = vadd.f32 %v1983, %v2763
  %v2992 = vadd.f32 %v1984, %v2764
  %v2993 = vadd.f32 %v1985, %v2765
  %v2994 = vadd.f32 %v1986, %v2766
  %v2995 = vadd.f32 %v1987, %v2767
  %v2996 = vadd.f32 %v1988, %v2768
  %v2997 = vadd.f32 %v1989, %v2769
  %v2998 = vadd.f32 %v1990, %v2770
  %v2999 = vadd.f32 %v1991, %v2771
  %v3000 = vadd.f32 %v1992, %v2772
  %v3001 = vadd.f32 %v1993, %v2773
  %v3002 = vadd.f32 %v1994, %v2774
  %v3003 = vadd.f32 %v1995, %v2775
  %v3004 = vadd.f32 %v1996, %v2776
  %v3005 = vadd.f32 %v1997, %v2777
  %v3006 = vadd.f32 %v1998, %v2778
  %v3007 = vadd.f32 %v1999, %v2779
  %v3008 = vadd.f32 %v2000, %v2780
  %v3009 = vadd.f32 %v2001, %v2781
  %v3010 = vadd.f32 %v2002, %v2782
  %v3011 = vadd.f32 %v2003, %v2783
  %v3012 = vadd.f32 %v2004, %v2784
  %v3013 = vadd.f32 %v2005, %v2785
  %v3014 = vadd.f32 %v2006, %v2786
  %v3015 = vadd.f32 %v2007, %v2787
  %v3016 = vadd.f32 %v2008, %v2788
  %v3017 = vadd.f32 %v2009, %v2789
  %v3018 = vadd.f32 %v2010, %v2790
  %v3019 = vadd.f32 %v2011, %v2791
  %v3020 = vadd.f32 %v2012, %v2792
  %v3021 = vadd.f32 %v2013, %v2793
  %v3022 = vadd.f32 %v2014, %v2794
  %v3023 = vadd.f32 %v2015, %v2795
  %v3024 = vadd.f32 %v2016, %v2796
  %v3025 = vadd.f32 %v2017, %v2797
  %v3026 = vadd.f32 %v2018, %v2798
  %v3027 = vadd.f32 %v2019, %v2799
  %v3028 = vadd.f32 %v2020, %v2800
  %v3029 = vadd.f32 %v2021, %v2801
  %v3030 = vadd.f32 %v2022, %v2802
  %v3031 = vadd.f32 %v2023, %v2803
  %v3032 = vadd.f32 %v2024, %v2804
  %v3033 = vadd.f32 %v2025, %v2805
  %v3034 = vadd.f32 %v2026, %v2806
  %v3035 = vadd.f32 %v2027, %v2807
  %v3036 = vadd.f32 %v2028, %v2808
  %v3037 = vadd.f32 %v2029, %v2809
  %v3038 = vadd.f32 %v2030, %v2810
  %v3039 = vadd.f32 %v2031, %v2811
  %v3040 = vadd.f32 %v2032, %v2812
  %v3041 = vadd.f32 %v2033, %v2813
  %v3042 = vadd.f32 %v2034, %v2814
  %v3043 = vadd.f32 %v2035, %v2815
  %v3044 = vadd.f32 %v2036, %v2816
  %v3045 = vadd.f32 %v2037, %v2817
  %v3046 = vadd.f32 %v2038, %v2818
  %v3047 = vadd.f32 %v2039, %v2819
  %v3048 = vadd.f32 %v2040, %v2820
  %v3049 = vadd.f32 %v2041, %v2821
  %v3050 = vadd.f32 %v2042, %v2822
  %v3051 = vadd.f32 %v2043, %v2823
  %v3052 = vadd.f32 %v2044, %v2824
  %v3053 = vadd.f32 %v2045, %v2825
  %v3054 = vadd.f32 %v2046, %v2826
  %v3055 = vadd.f32 %v2047, %v2827
  %v3056 = vadd.f32 %v2048, %v2828
  %v3057 = vadd.f32 %v2049, %v2829
  %v3058 = vadd.f32 %v2050, %v2830
  %v3059 = vadd.f32 %v2051, %v2831
  %v3060 = vadd.f32 %v2052, %v2832
  %v3061 = vadd.f32 %v2053, %v2833
  %v3062 = vadd.f32 %v2054, %v2834
  %v3063 = vadd.f32 %v2055, %v2835
  %v3064 = vadd.f32 %v2056, %v2836
  %v3065 = vadd.f32 %v2057, %v2837
  %v3066 = vadd.f32 %v2058, %v2838
  %v3067 = vadd.f32 %v2059, %v2839
  %v3068 = vadd.f32 %v2060, %v2840
  %v3069 = vadd.f32 %v2061, %v2841
  %v3070 = vadd.f32 %v2062, %v2842
  %v3071 = vadd.f32 %v2063, %v2843
  %v3072 = vadd.f32 %v2064, %v2844
  %v3073 = vadd.f32 %v2065, %v2845
  %v3074 = vadd.f32 %v2066, %v2846
  %v3075 = vadd.f32 %v2067, %v2847
  %v3076 = vadd.f32 %v2068, %v2848
  %v3077 = vld [vmem:[%s1] sm:$0xff]
  %v3078 = vld [vmem:[%s1 + $0x8] sm:$0xff]
  %v3079 = vld [vmem:[%s1 + $0x10] sm:$0xff]
  %v3080 = vld [vmem:[%s1 + $0x18] sm:$0xff]
  %v3081 = vld [vmem:[%s1 + $0x20] sm:$0xff]
  %v3082 = vld [vmem:[%s1 + $0x28] sm:$0xff]
  %v3083 = vld [vmem:[%s1 + $0x30] sm:$0xff]
  %v3084 = vld [vmem:[%s1 + $0x38] sm:$0xff]
  %v3085 = vld [vmem:[%s1 + $0x40] sm:$0xff]
  %v3086 = vld [vmem:[%s1 + $0x48] sm:$0xff]
  %v3087 = vld [vmem:[%s1 + $0x50] sm:$0xff]
  %v3088 = vld [vmem:[%s1 + $0x58] sm:$0xff]
  %v3089 = vld [vmem:[%s1 + $0x60] sm:$0xff]
  %v3090 = vld [vmem:[%s1 + $0x68] sm:$0xff]
  %v3091 = vld [vmem:[%s1 + $0x70] sm:$0xff]
  %v3092 = vld [vmem:[%s1 + $0x78] sm:$0xff]
  %v3093 = vld [vmem:[%s2] sm:$0xff]
  %v3094 = vld [vmem:[%s2 + $0x8] sm:$0xff]
  %v3095 = vld [vmem:[%s2 + $0x10] sm:$0xff]
  %v3096 = vld [vmem:[%s2 + $0x18] sm:$0xff]
  %v3097 = vld [vmem:[%s2 + $0x20] sm:$0xff]
  %v3098 = vld [vmem:[%s2 + $0x28] sm:$0xff]
  %v3099 = vld [vmem:[%s2 + $0x30] sm:$0xff]
  %v3100 = vld [vmem:[%s2 + $0x38] sm:$0xff]
  %3102 = vset.pattern.permute.xlu0 0
  %3103 = vperm.xlu0 %3102, %v3093
  %v3104 = vpop.permute.xlu0 %3103
  %3107 = vset.pattern.permute.xlu0 0
  %3108 = vperm.xlu0 %3107, %v3094
  %v3109 = vpop.permute.xlu0 %3108
  %3112 = vset.pattern.permute.xlu0 0
  %3113 = vperm.xlu0 %3112, %v3095
  %v3114 = vpop.permute.xlu0 %3113
  %3117 = vset.pattern.permute.xlu0 0
  %3118 = vperm.xlu0 %3117, %v3096
  %v3119 = vpop.permute.xlu0 %3118
  %3122 = vset.pattern.permute.xlu0 0
  %3123 = vperm.xlu0 %3122, %v3097
  %v3124 = vpop.permute.xlu0 %3123
  %3127 = vset.pattern.permute.xlu0 0
  %3128 = vperm.xlu0 %3127, %v3098
  %v3129 = vpop.permute.xlu0 %3128
  %3132 = vset.pattern.permute.xlu0 0
  %3133 = vperm.xlu0 %3132, %v3099
  %v3134 = vpop.permute.xlu0 %3133
  %3137 = vset.pattern.permute.xlu0 0
  %3138 = vperm.xlu0 %3137, %v3100
  %v3139 = vpop.permute.xlu0 %3138
  %vm3141 = vcmask 179200
  %v3143 = vsel %vm3141, %v3078, 0
  %v3146 = vsel %vm3141, %v3080, 0
  %v3149 = vsel %vm3141, %v3082, 0
  %v3152 = vsel %vm3141, %v3084, 0
  %v3155 = vsel %vm3141, %v3086, 0
  %v3158 = vsel %vm3141, %v3088, 0
  %v3161 = vsel %vm3141, %v3090, 0
  %v3164 = vsel %vm3141, %v3092, 0
  %vm3166 = vcmask 1045504
  %v3168 = vsel %vm3166, %v3065, 0
  %v3171 = vsel %vm3166, %v3066, 0
  %v3174 = vsel %vm3166, %v3067, 0
  %v3177 = vsel %vm3166, %v3068, 0
  %v3180 = vsel %vm3166, %v3069, 0
  %v3183 = vsel %vm3166, %v3070, 0
  %v3186 = vsel %vm3166, %v3071, 0
  %v3189 = vsel %vm3166, %v3072, 0
  %v3192 = vsel %vm3166, %v3073, 0
  %v3195 = vsel %vm3166, %v3074, 0
  %v3198 = vsel %vm3166, %v3075, 0
  %v3201 = vsel %vm3166, %v3076, 0
  %3203 = vmatprep.subr.mxu0 %v2850
  %3204 = vmatpush1.msra.mxu0 %v2849
  %3205 = vmatprep.subr.mxu0 %v2862
  %3206 = vmatpush1.msra.mxu0 %v2861
  %3207 = vmatprep.subr.mxu0 %v2874
  %3208 = vmatpush1.msra.mxu0 %v2873
  %3209 = vmatprep.subr.mxu0 %v2886
  %3210 = vmatpush1.msra.mxu0 %v2885
  %3211 = vmatprep.subr.mxu0 %v2898
  %3212 = vmatpush1.msra.mxu0 %v2897
  %3213 = vmatprep.subr.mxu0 %v2910
  %3214 = vmatpush1.msra.mxu0 %v2909
  %3215 = vmatprep.subr.mxu0 %v2922
  %3216 = vmatpush1.msra.mxu0 %v2921
  %3217 = vmatprep.subr.mxu0 %v2934
  %3218 = vmatpush1.msra.mxu0 %v2933
  %3219 = vmatprep.subr.mxu0 %v2946
  %3220 = vmatpush1.msra.mxu0 %v2945
  %3221 = vmatprep.subr.mxu0 %v2958
  %3222 = vmatpush1.msra.mxu0 %v2957
  %3223 = vmatprep.subr.mxu0 %v2970
  %3224 = vmatpush1.msra.mxu0 %v2969
  %3225 = vmatprep.subr.mxu0 %v2982
  %3226 = vmatpush1.msra.mxu0 %v2981
  %3227 = vmatprep.subr.mxu0 %v2994
  %3228 = vmatpush1.msra.mxu0 %v2993
  %3229 = vmatprep.subr.mxu0 %v3006
  %3230 = vmatpush1.msra.mxu0 %v3005
  %3231 = vmatprep.subr.mxu0 %v3018
  %3232 = vmatpush1.msra.mxu0 %v3017
  %3233 = vmatprep.subr.mxu0 %v3030
  %3234 = vmatpush1.msra.mxu0 %v3029
  %3235 = vmatprep.subr.mxu0 %v3042
  %3236 = vmatpush1.msra.mxu0 %v3041
  %3237 = vmatprep.subr.mxu0 %v3054
  %3238 = vmatpush1.msra.mxu0 %v3053
  %3239 = vmatprep.subr.mxu0 %v3171
  %3240 = vmatpush1.msra.mxu0 %v3168
  %3241 = vmatprep.subr.mxu0 0.0
  %3242 = vmatpush1.msra.mxu0 0.0
  %3243 = vmatprep.subr.mxu0 0.0
  %3244 = vmatpush1.msra.mxu0 0.0
  %3245 = vmatprep.subr.mxu0 0.0
  %3246 = vmatpush1.msra.mxu0 0.0
  %3247 = vmatprep.subr.mxu0 0.0
  %3248 = vmatpush1.msra.mxu0 0.0
  %3249 = vmatprep.subr.mxu0 0.0
  %3250 = vmatpush1.msra.mxu0 0.0
  %3251 = vmatprep.subr.mxu0 0.0
  %3252 = vmatpush1.msra.mxu0 0.0
  %3253 = vmatprep.subr.mxu0 0.0
  %3254 = vmatpush1.msra.mxu0 0.0
  %3255 = vmatprep.subr.mxu0 0.0
  %3256 = vmatpush1.msra.mxu0 0.0
  %3257 = vmatprep.subr.mxu0 0.0
  %3258 = vmatpush1.msra.mxu0 0.0
  %3259 = vmatprep.subr.mxu0 0.0
  %3260 = vmatpush1.msra.mxu0 0.0
  %3261 = vmatprep.subr.mxu0 0.0
  %3262 = vmatpush1.msra.mxu0 0.0
  %3263 = vmatprep.subr.mxu0 0.0
  %3264 = vmatpush1.msra.mxu0 0.0
  %3265 = vmatprep.subr.mxu0 0.0
  %3266 = vmatpush1.msra.mxu0 0.0
  %3267 = vmatprep.mubr.f32.mxu0 %v3143
  %3268 = vmatmul.mubr.f32.gmra.mrb[0].mxu0 %v3077
  %v3269 = vpop.f32.mrb[0].mxu0
  %v3270 = vadd.f32 %v3104, %v3269
  %v3271 = vpop.f32.mrb[0].mxu0
  %v3272 = vadd.f32 %v3104, %v3271
  %3273 = vmatprep.mubr.f32.mxu0 %v3146
  %3274 = vmatmul.mubr.f32.gmra.mrb[0].mxu0 %v3079
  %v3275 = vpop.f32.mrb[0].mxu0
  %v3276 = vadd.f32 %v3109, %v3275
  %v3277 = vpop.f32.mrb[0].mxu0
  %v3278 = vadd.f32 %v3109, %v3277
  %3279 = vmatprep.mubr.f32.mxu0 %v3149
  %3280 = vmatmul.mubr.f32.gmra.mrb[0].mxu0 %v3081
  %v3281 = vpop.f32.mrb[0].mxu0
  %v3282 = vadd.f32 %v3114, %v3281
  %v3283 = vpop.f32.mrb[0].mxu0
  %v3284 = vadd.f32 %v3114, %v3283
  %3285 = vmatprep.mubr.f32.mxu0 %v3152
  %3286 = vmatmul.mubr.f32.gmra.mrb[0].mxu0 %v3083
  %v3287 = vpop.f32.mrb[0].mxu0
  %v3288 = vadd.f32 %v3119, %v3287
  %v3289 = vpop.f32.mrb[0].mxu0
  %v3290 = vadd.f32 %v3119, %v3289
  %3291 = vmatprep.mubr.f32.mxu0 %v3155
  %3292 = vmatmul.mubr.f32.gmra.mrb[0].mxu0 %v3085
  %v3293 = vpop.f32.mrb[0].mxu0
  %v3294 = vadd.f32 %v3124, %v3293
  %v3295 = vpop.f32.mrb[0].mxu0
  %v3296 = vadd.f32 %v3124, %v3295
  %3297 = vmatprep.mubr.f32.mxu0 %v3158
  %3298 = vmatmul.mubr.f32.gmra.mrb[0].mxu0 %v3087
  %v3299 = vpop.f32.mrb[0].mxu0
  %v3300 = vadd.f32 %v3129, %v3299
  %v3301 = vpop.f32.mrb[0].mxu0
  %v3302 = vadd.f32 %v3129, %v3301
  %3303 = vmatprep.mubr.f32.mxu0 %v3161
  %3304 = vmatmul.mubr.f32.gmra.mrb[0].mxu0 %v3089
  %v3305 = vpop.f32.mrb[0].mxu0
  %v3306 = vadd.f32 %v3134, %v3305
  %v3307 = vpop.f32.mrb[0].mxu0
  %v3308 = vadd.f32 %v3134, %v3307
  %3309 = vmatprep.mubr.f32.mxu0 %v3164
  %3310 = vmatmul.mubr.f32.gmra.mrb[0].mxu0 %v3091
  %v3311 = vpop.f32.mrb[0].mxu0
  %v3312 = vadd.f32 %v3139, %v3311
  %v3313 = vpop.f32.mrb[0].mxu0
  %v3314 = vadd.f32 %v3139, %v3313
  %3315 = vdwg.mxu0
  %3316 = vmatprep.subr.mxu0 %v2852
  %3317 = vmatpush1.msra.mxu0 %v2851
  %3318 = vmatprep.subr.mxu0 %v2864
  %3319 = vmatpush1.msra.mxu0 %v2863
  %3320 = vmatprep.subr.mxu0 %v2876
  %3321 = vmatpush1.msra.mxu0 %v2875
  %3322 = vmatprep.subr.mxu0 %v2888
  %3323 = vmatpush1.msra.mxu0 %v2887
  %3324 = vmatprep.subr.mxu0 %v2900
  %3325 = vmatpush1.msra.mxu0 %v2899
  %3326 = vmatprep.subr.mxu0 %v2912
  %3327 = vmatpush1.msra.mxu0 %v2911
  %3328 = vmatprep.subr.mxu0 %v2924
  %3329 = vmatpush1.msra.mxu0 %v2923
  %3330 = vmatprep.subr.mxu0 %v2936
  %3331 = vmatpush1.msra.mxu0 %v2935
  %3332 = vmatprep.subr.mxu0 %v2948
  %3333 = vmatpush1.msra.mxu0 %v2947
  %3334 = vmatprep.subr.mxu0 %v2960
  %3335 = vmatpush1.msra.mxu0 %v2959
  %3336 = vmatprep.subr.mxu0 %v2972
  %3337 = vmatpush1.msra.mxu0 %v2971
  %3338 = vmatprep.subr.mxu0 %v2984
  %3339 = vmatpush1.msra.mxu0 %v2983
  %3340 = vmatprep.subr.mxu0 %v2996
  %3341 = vmatpush1.msra.mxu0 %v2995
  %3342 = vmatprep.subr.mxu0 %v3008
  %3343 = vmatpush1.msra.mxu0 %v3007
  %3344 = vmatprep.subr.mxu0 %v3020
  %3345 = vmatpush1.msra.mxu0 %v3019
  %3346 = vmatprep.subr.mxu0 %v3032
  %3347 = vmatpush1.msra.mxu0 %v3031
  %3348 = vmatprep.subr.mxu0 %v3044
  %3349 = vmatpush1.msra.mxu0 %v3043
  %3350 = vmatprep.subr.mxu0 %v3056
  %3351 = vmatpush1.msra.mxu0 %v3055
  %3352 = vmatprep.subr.mxu0 %v3177
  %3353 = vmatpush1.msra.mxu0 %v3174
  %3354 = vmatprep.subr.mxu0 0.0
  %3355 = vmatpush1.msra.mxu0 0.0
  %3356 = vmatprep.subr.mxu0 0.0
  %3357 = vmatpush1.msra.mxu0 0.0
  %3358 = vmatprep.subr.mxu0 0.0
  %3359 = vmatpush1.msra.mxu0 0.0
  %3360 = vmatprep.subr.mxu0 0.0
  %3361 = vmatpush1.msra.mxu0 0.0
  %3362 = vmatprep.subr.mxu0 0.0
  %3363 = vmatpush1.msra.mxu0 0.0
  %3364 = vmatprep.subr.mxu0 0.0
  %3365 = vmatpush1.msra.mxu0 0.0
  %3366 = vmatprep.subr.mxu0 0.0
  %3367 = vmatpush1.msra.mxu0 0.0
  %3368 = vmatprep.subr.mxu0 0.0
  %3369 = vmatpush1.msra.mxu0 0.0
  %3370 = vmatprep.subr.mxu0 0.0
  %3371 = vmatpush1.msra.mxu0 0.0
  %3372 = vmatprep.subr.mxu0 0.0
  %3373 = vmatpush1.msra.mxu0 0.0
  %3374 = vmatprep.subr.mxu0 0.0
  %3375 = vmatpush1.msra.mxu0 0.0
  %3376 = vmatprep.subr.mxu0 0.0
  %3377 = vmatpush1.msra.mxu0 0.0
  %3378 = vmatprep.subr.mxu0 0.0
  %3379 = vmatpush1.msra.mxu0 0.0
  %3380 = vmatprep.mubr.f32.mxu0 %v3143
  %3381 = vmatmul.mubr.f32.gmra.mrb[0].mxu0 %v3077
  %v3382 = vpop.f32.mrb[0].mxu0
  %v3383 = vadd.f32 %v3104, %v3382
  %v3384 = vpop.f32.mrb[0].mxu0
  %v3385 = vadd.f32 %v3104, %v3384
  %3386 = vmatprep.mubr.f32.mxu0 %v3146
  %3387 = vmatmul.mubr.f32.gmra.mrb[0].mxu0 %v3079
  %v3388 = vpop.f32.mrb[0].mxu0
  %v3389 = vadd.f32 %v3109, %v3388
  %v3390 = vpop.f32.mrb[0].mxu0
  %v3391 = vadd.f32 %v3109, %v3390
  %3392 = vmatprep.mubr.f32.mxu0 %v3149
  %3393 = vmatmul.mubr.f32.gmra.mrb[0].mxu0 %v3081
  %v3394 = vpop.f32.mrb[0].mxu0
  %v3395 = vadd.f32 %v3114, %v3394
  %v3396 = vpop.f32.mrb[0].mxu0
  %v3397 = vadd.f32 %v3114, %v3396
  %3398 = vmatprep.mubr.f32.mxu0 %v3152
  %3399 = vmatmul.mubr.f32.gmra.mrb[0].mxu0 %v3083
  %v3400 = vpop.f32.mrb[0].mxu0
  %v3401 = vadd.f32 %v3119, %v3400
  %v3402 = vpop.f32.mrb[0].mxu0
  %v3403 = vadd.f32 %v3119, %v3402
  %3404 = vmatprep.mubr.f32.mxu0 %v3155
  %3405 = vmatmul.mubr.f32.gmra.mrb[0].mxu0 %v3085
  %v3406 = vpop.f32.mrb[0].mxu0
  %v3407 = vadd.f32 %v3124, %v3406
  %v3408 = vpop.f32.mrb[0].mxu0
  %v3409 = vadd.f32 %v3124, %v3408
  %3410 = vmatprep.mubr.f32.mxu0 %v3158
  %3411 = vmatmul.mubr.f32.gmra.mrb[0].mxu0 %v3087
  %v3412 = vpop.f32.mrb[0].mxu0
  %v3413 = vadd.f32 %v3129, %v3412
  %v3414 = vpop.f32.mrb[0].mxu0
  %v3415 = vadd.f32 %v3129, %v3414
  %3416 = vmatprep.mubr.f32.mxu0 %v3161
  %3417 = vmatmul.mubr.f32.gmra.mrb[0].mxu0 %v3089
  %v3418 = vpop.f32.mrb[0].mxu0
  %v3419 = vadd.f32 %v3134, %v3418
  %v3420 = vpop.f32.mrb[0].mxu0
  %v3421 = vadd.f32 %v3134, %v3420
  %3422 = vmatprep.mubr.f32.mxu0 %v3164
  %3423 = vmatmul.mubr.f32.gmra.mrb[0].mxu0 %v3091
  %v3424 = vpop.f32.mrb[0].mxu0
  %v3425 = vadd.f32 %v3139, %v3424
  %v3426 = vpop.f32.mrb[0].mxu0
  %v3427 = vadd.f32 %v3139, %v3426
  %3428 = vdwg.mxu0
  %3429 = vmatprep.subr.mxu0 %v2854
  %3430 = vmatpush1.msra.mxu0 %v2853
  %3431 = vmatprep.subr.mxu0 %v2866
  %3432 = vmatpush1.msra.mxu0 %v2865
  %3433 = vmatprep.subr.mxu0 %v2878
  %3434 = vmatpush1.msra.mxu0 %v2877
  %3435 = vmatprep.subr.mxu0 %v2890
  %3436 = vmatpush1.msra.mxu0 %v2889
  %3437 = vmatprep.subr.mxu0 %v2902
  %3438 = vmatpush1.msra.mxu0 %v2901
  %3439 = vmatprep.subr.mxu0 %v2914
  %3440 = vmatpush1.msra.mxu0 %v2913
  %3441 = vmatprep.subr.mxu0 %v2926
  %3442 = vmatpush1.msra.mxu0 %v2925
  %3443 = vmatprep.subr.mxu0 %v2938
  %3444 = vmatpush1.msra.mxu0 %v2937
  %3445 = vmatprep.subr.mxu0 %v2950
  %3446 = vmatpush1.msra.mxu0 %v2949
  %3447 = vmatprep.subr.mxu0 %v2962
  %3448 = vmatpush1.msra.mxu0 %v2961
  %3449 = vmatprep.subr.mxu0 %v2974
  %3450 = vmatpush1.msra.mxu0 %v2973
  %3451 = vmatprep.subr.mxu0 %v2986
  %3452 = vmatpush1.msra.mxu0 %v2985
  %3453 = vmatprep.subr.mxu0 %v2998
  %3454 = vmatpush1.msra.mxu0 %v2997
  %3455 = vmatprep.subr.mxu0 %v3010
  %3456 = vmatpush1.msra.mxu0 %v3009
  %3457 = vmatprep.subr.mxu0 %v3022
  %3458 = vmatpush1.msra.mxu0 %v3021
  %3459 = vmatprep.subr.mxu0 %v3034
  %3460 = vmatpush1.msra.mxu0 %v3033
  %3461 = vmatprep.subr.mxu0 %v3046
  %3462 = vmatpush1.msra.mxu0 %v3045
  %3463 = vmatprep.subr.mxu0 %v3058
  %3464 = vmatpush1.msra.mxu0 %v3057
  %3465 = vmatprep.subr.mxu0 %v3183
  %3466 = vmatpush1.msra.mxu0 %v3180
  %3467 = vmatprep.subr.mxu0 0.0
  %3468 = vmatpush1.msra.mxu0 0.0
  %3469 = vmatprep.subr.mxu0 0.0
  %3470 = vmatpush1.msra.mxu0 0.0
  %3471 = vmatprep.subr.mxu0 0.0
  %3472 = vmatpush1.msra.mxu0 0.0
  %3473 = vmatprep.subr.mxu0 0.0
  %3474 = vmatpush1.msra.mxu0 0.0
  %3475 = vmatprep.subr.mxu0 0.0
  %3476 = vmatpush1.msra.mxu0 0.0
  %3477 = vmatprep.subr.mxu0 0.0
  %3478 = vmatpush1.msra.mxu0 0.0
  %3479 = vmatprep.subr.mxu0 0.0
  %3480 = vmatpush1.msra.mxu0 0.0
  %3481 = vmatprep.subr.mxu0 0.0
  %3482 = vmatpush1.msra.mxu0 0.0
  %3483 = vmatprep.subr.mxu0 0.0
  %3484 = vmatpush1.msra.mxu0 0.0
  %3485 = vmatprep.subr.mxu0 0.0
  %3486 = vmatpush1.msra.mxu0 0.0
  %3487 = vmatprep.subr.mxu0 0.0
  %3488 = vmatpush1.msra.mxu0 0.0
  %3489 = vmatprep.subr.mxu0 0.0
  %3490 = vmatpush1.msra.mxu0 0.0
  %3491 = vmatprep.subr.mxu0 0.0
  %3492 = vmatpush1.msra.mxu0 0.0
  %3493 = vmatprep.mubr.f32.mxu0 %v3143
  %3494 = vmatmul.mubr.f32.gmra.mrb[0].mxu0 %v3077
  %v3495 = vpop.f32.mrb[0].mxu0
  %v3496 = vadd.f32 %v3104, %v3495
  %v3497 = vpop.f32.mrb[0].mxu0
  %v3498 = vadd.f32 %v3104, %v3497
  %3499 = vmatprep.mubr.f32.mxu0 %v3146
  %3500 = vmatmul.mubr.f32.gmra.mrb[0].mxu0 %v3079
  %v3501 = vpop.f32.mrb[0].mxu0
  %v3502 = vadd.f32 %v3109, %v3501
  %v3503 = vpop.f32.mrb[0].mxu0
  %v3504 = vadd.f32 %v3109, %v3503
  %3505 = vmatprep.mubr.f32.mxu0 %v3149
  %3506 = vmatmul.mubr.f32.gmra.mrb[0].mxu0 %v3081
  %v3507 = vpop.f32.mrb[0].mxu0
  %v3508 = vadd.f32 %v3114, %v3507
  %v3509 = vpop.f32.mrb[0].mxu0
  %v3510 = vadd.f32 %v3114, %v3509
  %3511 = vmatprep.mubr.f32.mxu0 %v3152
  %3512 = vmatmul.mubr.f32.gmra.mrb[0].mxu0 %v3083
  %v3513 = vpop.f32.mrb[0].mxu0
  %v3514 = vadd.f32 %v3119, %v3513
  %v3515 = vpop.f32.mrb[0].mxu0
  %v3516 = vadd.f32 %v3119, %v3515
  %3517 = vmatprep.mubr.f32.mxu0 %v3155
  %3518 = vmatmul.mubr.f32.gmra.mrb[0].mxu0 %v3085
  %v3519 = vpop.f32.mrb[0].mxu0
  %v3520 = vadd.f32 %v3124, %v3519
  %v3521 = vpop.f32.mrb[0].mxu0
  %v3522 = vadd.f32 %v3124, %v3521
  %3523 = vmatprep.mubr.f32.mxu0 %v3158
  %3524 = vmatmul.mubr.f32.gmra.mrb[0].mxu0 %v3087
  %v3525 = vpop.f32.mrb[0].mxu0
  %v3526 = vadd.f32 %v3129, %v3525
  %v3527 = vpop.f32.mrb[0].mxu0
  %v3528 = vadd.f32 %v3129, %v3527
  %3529 = vmatprep.mubr.f32.mxu0 %v3161
  %3530 = vmatmul.mubr.f32.gmra.mrb[0].mxu0 %v3089
  %v3531 = vpop.f32.mrb[0].mxu0
  %v3532 = vadd.f32 %v3134, %v3531
  %v3533 = vpop.f32.mrb[0].mxu0
  %v3534 = vadd.f32 %v3134, %v3533
  %3535 = vmatprep.mubr.f32.mxu0 %v3164
  %3536 = vmatmul.mubr.f32.gmra.mrb[0].mxu0 %v3091
  %v3537 = vpop.f32.mrb[0].mxu0
  %v3538 = vadd.f32 %v3139, %v3537
  %v3539 = vpop.f32.mrb[0].mxu0
  %v3540 = vadd.f32 %v3139, %v3539
  %3541 = vdwg.mxu0
  %3542 = vmatprep.subr.mxu0 %v2856
  %3543 = vmatpush1.msra.mxu0 %v2855
  %3544 = vmatprep.subr.mxu0 %v2868
  %3545 = vmatpush1.msra.mxu0 %v2867
  %3546 = vmatprep.subr.mxu0 %v2880
  %3547 = vmatpush1.msra.mxu0 %v2879
  %3548 = vmatprep.subr.mxu0 %v2892
  %3549 = vmatpush1.msra.mxu0 %v2891
  %3550 = vmatprep.subr.mxu0 %v2904
  %3551 = vmatpush1.msra.mxu0 %v2903
  %3552 = vmatprep.subr.mxu0 %v2916
  %3553 = vmatpush1.msra.mxu0 %v2915
  %3554 = vmatprep.subr.mxu0 %v2928
  %3555 = vmatpush1.msra.mxu0 %v2927
  %3556 = vmatprep.subr.mxu0 %v2940
  %3557 = vmatpush1.msra.mxu0 %v2939
  %3558 = vmatprep.subr.mxu0 %v2952
  %3559 = vmatpush1.msra.mxu0 %v2951
  %3560 = vmatprep.subr.mxu0 %v2964
  %3561 = vmatpush1.msra.mxu0 %v2963
  %3562 = vmatprep.subr.mxu0 %v2976
  %3563 = vmatpush1.msra.mxu0 %v2975
  %3564 = vmatprep.subr.mxu0 %v2988
  %3565 = vmatpush1.msra.mxu0 %v2987
  %3566 = vmatprep.subr.mxu0 %v3000
  %3567 = vmatpush1.msra.mxu0 %v2999
  %3568 = vmatprep.subr.mxu0 %v3012
  %3569 = vmatpush1.msra.mxu0 %v3011
  %3570 = vmatprep.subr.mxu0 %v3024
  %3571 = vmatpush1.msra.mxu0 %v3023
  %3572 = vmatprep.subr.mxu0 %v3036
  %3573 = vmatpush1.msra.mxu0 %v3035
  %3574 = vmatprep.subr.mxu0 %v3048
  %3575 = vmatpush1.msra.mxu0 %v3047
  %3576 = vmatprep.subr.mxu0 %v3060
  %3577 = vmatpush1.msra.mxu0 %v3059
  %3578 = vmatprep.subr.mxu0 %v3189
  %3579 = vmatpush1.msra.mxu0 %v3186
  %3580 = vmatprep.subr.mxu0 0.0
  %3581 = vmatpush1.msra.mxu0 0.0
  %3582 = vmatprep.subr.mxu0 0.0
  %3583 = vmatpush1.msra.mxu0 0.0
  %3584 = vmatprep.subr.mxu0 0.0
  %3585 = vmatpush1.msra.mxu0 0.0
  %3586 = vmatprep.subr.mxu0 0.0
  %3587 = vmatpush1.msra.mxu0 0.0
  %3588 = vmatprep.subr.mxu0 0.0
  %3589 = vmatpush1.msra.mxu0 0.0
  %3590 = vmatprep.subr.mxu0 0.0
  %3591 = vmatpush1.msra.mxu0 0.0
  %3592 = vmatprep.subr.mxu0 0.0
  %3593 = vmatpush1.msra.mxu0 0.0
  %3594 = vmatprep.subr.mxu0 0.0
  %3595 = vmatpush1.msra.mxu0 0.0
  %3596 = vmatprep.subr.mxu0 0.0
  %3597 = vmatpush1.msra.mxu0 0.0
  %3598 = vmatprep.subr.mxu0 0.0
  %3599 = vmatpush1.msra.mxu0 0.0
  %3600 = vmatprep.subr.mxu0 0.0
  %3601 = vmatpush1.msra.mxu0 0.0
  %3602 = vmatprep.subr.mxu0 0.0
  %3603 = vmatpush1.msra.mxu0 0.0
  %3604 = vmatprep.subr.mxu0 0.0
  %3605 = vmatpush1.msra.mxu0 0.0
  %3606 = vmatprep.mubr.f32.mxu0 %v3143
  %3607 = vmatmul.mubr.f32.gmra.mrb[0].mxu0 %v3077
  %v3608 = vpop.f32.mrb[0].mxu0
  %v3609 = vadd.f32 %v3104, %v3608
  %v3610 = vpop.f32.mrb[0].mxu0
  %v3611 = vadd.f32 %v3104, %v3610
  %3612 = vmatprep.mubr.f32.mxu0 %v3146
  %3613 = vmatmul.mubr.f32.gmra.mrb[0].mxu0 %v3079
  %v3614 = vpop.f32.mrb[0].mxu0
  %v3615 = vadd.f32 %v3109, %v3614
  %v3616 = vpop.f32.mrb[0].mxu0
  %v3617 = vadd.f32 %v3109, %v3616
  %3618 = vmatprep.mubr.f32.mxu0 %v3149
  %3619 = vmatmul.mubr.f32.gmra.mrb[0].mxu0 %v3081
  %v3620 = vpop.f32.mrb[0].mxu0
  %v3621 = vadd.f32 %v3114, %v3620
  %v3622 = vpop.f32.mrb[0].mxu0
  %v3623 = vadd.f32 %v3114, %v3622
  %3624 = vmatprep.mubr.f32.mxu0 %v3152
  %3625 = vmatmul.mubr.f32.gmra.mrb[0].mxu0 %v3083
  %v3626 = vpop.f32.mrb[0].mxu0
  %v3627 = vadd.f32 %v3119, %v3626
  %v3628 = vpop.f32.mrb[0].mxu0
  %v3629 = vadd.f32 %v3119, %v3628
  %3630 = vmatprep.mubr.f32.mxu0 %v3155
  %3631 = vmatmul.mubr.f32.gmra.mrb[0].mxu0 %v3085
  %v3632 = vpop.f32.mrb[0].mxu0
  %v3633 = vadd.f32 %v3124, %v3632
  %v3634 = vpop.f32.mrb[0].mxu0
  %v3635 = vadd.f32 %v3124, %v3634
  %3636 = vmatprep.mubr.f32.mxu0 %v3158
  %3637 = vmatmul.mubr.f32.gmra.mrb[0].mxu0 %v3087
  %v3638 = vpop.f32.mrb[0].mxu0
  %v3639 = vadd.f32 %v3129, %v3638
  %v3640 = vpop.f32.mrb[0].mxu0
  %v3641 = vadd.f32 %v3129, %v3640
  %3642 = vmatprep.mubr.f32.mxu0 %v3161
  %3643 = vmatmul.mubr.f32.gmra.mrb[0].mxu0 %v3089
  %v3644 = vpop.f32.mrb[0].mxu0
  %v3645 = vadd.f32 %v3134, %v3644
  %v3646 = vpop.f32.mrb[0].mxu0
  %v3647 = vadd.f32 %v3134, %v3646
  %3648 = vmatprep.mubr.f32.mxu0 %v3164
  %3649 = vmatmul.mubr.f32.gmra.mrb[0].mxu0 %v3091
  %v3650 = vpop.f32.mrb[0].mxu0
  %v3651 = vadd.f32 %v3139, %v3650
  %v3652 = vpop.f32.mrb[0].mxu0
  %v3653 = vadd.f32 %v3139, %v3652
  %3654 = vdwg.mxu0
  %3655 = vmatprep.subr.mxu0 %v2858
  %3656 = vmatpush1.msra.mxu0 %v2857
  %3657 = vmatprep.subr.mxu0 %v2870
  %3658 = vmatpush1.msra.mxu0 %v2869
  %3659 = vmatprep.subr.mxu0 %v2882
  %3660 = vmatpush1.msra.mxu0 %v2881
  %3661 = vmatprep.subr.mxu0 %v2894
  %3662 = vmatpush1.msra.mxu0 %v2893
  %3663 = vmatprep.subr.mxu0 %v2906
  %3664 = vmatpush1.msra.mxu0 %v2905
  %3665 = vmatprep.subr.mxu0 %v2918
  %3666 = vmatpush1.msra.mxu0 %v2917
  %3667 = vmatprep.subr.mxu0 %v2930
  %3668 = vmatpush1.msra.mxu0 %v2929
  %3669 = vmatprep.subr.mxu0 %v2942
  %3670 = vmatpush1.msra.mxu0 %v2941
  %3671 = vmatprep.subr.mxu0 %v2954
  %3672 = vmatpush1.msra.mxu0 %v2953
  %3673 = vmatprep.subr.mxu0 %v2966
  %3674 = vmatpush1.msra.mxu0 %v2965
  %3675 = vmatprep.subr.mxu0 %v2978
  %3676 = vmatpush1.msra.mxu0 %v2977
  %3677 = vmatprep.subr.mxu0 %v2990
  %3678 = vmatpush1.msra.mxu0 %v2989
  %3679 = vmatprep.subr.mxu0 %v3002
  %3680 = vmatpush1.msra.mxu0 %v3001
  %3681 = vmatprep.subr.mxu0 %v3014
  %3682 = vmatpush1.msra.mxu0 %v3013
  %3683 = vmatprep.subr.mxu0 %v3026
  %3684 = vmatpush1.msra.mxu0 %v3025
  %3685 = vmatprep.subr.mxu0 %v3038
  %3686 = vmatpush1.msra.mxu0 %v3037
  %3687 = vmatprep.subr.mxu0 %v3050
  %3688 = vmatpush1.msra.mxu0 %v3049
  %3689 = vmatprep.subr.mxu0 %v3062
  %3690 = vmatpush1.msra.mxu0 %v3061
  %3691 = vmatprep.subr.mxu0 %v3195
  %3692 = vmatpush1.msra.mxu0 %v3192
  %3693 = vmatprep.subr.mxu0 0.0
  %3694 = vmatpush1.msra.mxu0 0.0
  %3695 = vmatprep.subr.mxu0 0.0
  %3696 = vmatpush1.msra.mxu0 0.0
  %3697 = vmatprep.subr.mxu0 0.0
  %3698 = vmatpush1.msra.mxu0 0.0
  %3699 = vmatprep.subr.mxu0 0.0
  %3700 = vmatpush1.msra.mxu0 0.0
  %3701 = vmatprep.subr.mxu0 0.0
  %3702 = vmatpush1.msra.mxu0 0.0
  %3703 = vmatprep.subr.mxu0 0.0
  %3704 = vmatpush1.msra.mxu0 0.0
  %3705 = vmatprep.subr.mxu0 0.0
  %3706 = vmatpush1.msra.mxu0 0.0
  %3707 = vmatprep.subr.mxu0 0.0
  %3708 = vmatpush1.msra.mxu0 0.0
  %3709 = vmatprep.subr.mxu0 0.0
  %3710 = vmatpush1.msra.mxu0 0.0
  %3711 = vmatprep.subr.mxu0 0.0
  %3712 = vmatpush1.msra.mxu0 0.0
  %3713 = vmatprep.subr.mxu0 0.0
  %3714 = vmatpush1.msra.mxu0 0.0
  %3715 = vmatprep.subr.mxu0 0.0
  %3716 = vmatpush1.msra.mxu0 0.0
  %3717 = vmatprep.subr.mxu0 0.0
  %3718 = vmatpush1.msra.mxu0 0.0
  %3719 = vmatprep.mubr.f32.mxu0 %v3143
  %3720 = vmatmul.mubr.f32.gmra.mrb[0].mxu0 %v3077
  %v3721 = vpop.f32.mrb[0].mxu0
  %v3722 = vadd.f32 %v3104, %v3721
  %v3723 = vpop.f32.mrb[0].mxu0
  %v3724 = vadd.f32 %v3104, %v3723
  %3725 = vmatprep.mubr.f32.mxu0 %v3146
  %3726 = vmatmul.mubr.f32.gmra.mrb[0].mxu0 %v3079
  %v3727 = vpop.f32.mrb[0].mxu0
  %v3728 = vadd.f32 %v3109, %v3727
  %v3729 = vpop.f32.mrb[0].mxu0
  %v3730 = vadd.f32 %v3109, %v3729
  %3731 = vmatprep.mubr.f32.mxu0 %v3149
  %3732 = vmatmul.mubr.f32.gmra.mrb[0].mxu0 %v3081
  %v3733 = vpop.f32.mrb[0].mxu0
  %v3734 = vadd.f32 %v3114, %v3733
  %v3735 = vpop.f32.mrb[0].mxu0
  %v3736 = vadd.f32 %v3114, %v3735
  %3737 = vmatprep.mubr.f32.mxu0 %v3152
  %3738 = vmatmul.mubr.f32.gmra.mrb[0].mxu0 %v3083
  %v3739 = vpop.f32.mrb[0].mxu0
  %v3740 = vadd.f32 %v3119, %v3739
  %v3741 = vpop.f32.mrb[0].mxu0
  %v3742 = vadd.f32 %v3119, %v3741
  %3743 = vmatprep.mubr.f32.mxu0 %v3155
  %3744 = vmatmul.mubr.f32.gmra.mrb[0].mxu0 %v3085
  %v3745 = vpop.f32.mrb[0].mxu0
  %v3746 = vadd.f32 %v3124, %v3745
  %v3747 = vpop.f32.mrb[0].mxu0
  %v3748 = vadd.f32 %v3124, %v3747
  %3749 = vmatprep.mubr.f32.mxu0 %v3158
  %3750 = vmatmul.mubr.f32.gmra.mrb[0].mxu0 %v3087
  %v3751 = vpop.f32.mrb[0].mxu0
  %v3752 = vadd.f32 %v3129, %v3751
  %v3753 = vpop.f32.mrb[0].mxu0
  %v3754 = vadd.f32 %v3129, %v3753
  %3755 = vmatprep.mubr.f32.mxu0 %v3161
  %3756 = vmatmul.mubr.f32.gmra.mrb[0].mxu0 %v3089
  %v3757 = vpop.f32.mrb[0].mxu0
  %v3758 = vadd.f32 %v3134, %v3757
  %v3759 = vpop.f32.mrb[0].mxu0
  %v3760 = vadd.f32 %v3134, %v3759
  %3761 = vmatprep.mubr.f32.mxu0 %v3164
  %3762 = vmatmul.mubr.f32.gmra.mrb[0].mxu0 %v3091
  %v3763 = vpop.f32.mrb[0].mxu0
  %v3764 = vadd.f32 %v3139, %v3763
  %v3765 = vpop.f32.mrb[0].mxu0
  %v3766 = vadd.f32 %v3139, %v3765
  %3767 = vdwg.mxu0
  %3768 = vmatprep.subr.mxu0 %v2860
  %3769 = vmatpush1.msra.mxu0 %v2859
  %3770 = vmatprep.subr.mxu0 %v2872
  %3771 = vmatpush1.msra.mxu0 %v2871
  %3772 = vmatprep.subr.mxu0 %v2884
  %3773 = vmatpush1.msra.mxu0 %v2883
  %3774 = vmatprep.subr.mxu0 %v2896
  %3775 = vmatpush1.msra.mxu0 %v2895
  %3776 = vmatprep.subr.mxu0 %v2908
  %3777 = vmatpush1.msra.mxu0 %v2907
  %3778 = vmatprep.subr.mxu0 %v2920
  %3779 = vmatpush1.msra.mxu0 %v2919
  %3780 = vmatprep.subr.mxu0 %v2932
  %3781 = vmatpush1.msra.mxu0 %v2931
  %3782 = vmatprep.subr.mxu0 %v2944
  %3783 = vmatpush1.msra.mxu0 %v2943
  %3784 = vmatprep.subr.mxu0 %v2956
  %3785 = vmatpush1.msra.mxu0 %v2955
  %3786 = vmatprep.subr.mxu0 %v2968
  %3787 = vmatpush1.msra.mxu0 %v2967
  %3788 = vmatprep.subr.mxu0 %v2980
  %3789 = vmatpush1.msra.mxu0 %v2979
  %3790 = vmatprep.subr.mxu0 %v2992
  %3791 = vmatpush1.msra.mxu0 %v2991
  %3792 = vmatprep.subr.mxu0 %v3004
  %3793 = vmatpush1.msra.mxu0 %v3003
  %3794 = vmatprep.subr.mxu0 %v3016
  %3795 = vmatpush1.msra.mxu0 %v3015
  %3796 = vmatprep.subr.mxu0 %v3028
  %3797 = vmatpush1.msra.mxu0 %v3027
  %3798 = vmatprep.subr.mxu0 %v3040
  %3799 = vmatpush1.msra.mxu0 %v3039
  %3800 = vmatprep.subr.mxu0 %v3052
  %3801 = vmatpush1.msra.mxu0 %v3051
  %3802 = vmatprep.subr.mxu0 %v3064
  %3803 = vmatpush1.msra.mxu0 %v3063
  %3804 = vmatprep.subr.mxu0 %v3201
  %3805 = vmatpush1.msra.mxu0 %v3198
  %3806 = vmatprep.subr.mxu0 0.0
  %3807 = vmatpush1.msra.mxu0 0.0
  %3808 = vmatprep.subr.mxu0 0.0
  %3809 = vmatpush1.msra.mxu0 0.0
  %3810 = vmatprep.subr.mxu0 0.0
  %3811 = vmatpush1.msra.mxu0 0.0
  %3812 = vmatprep.subr.mxu0 0.0
  %3813 = vmatpush1.msra.mxu0 0.0
  %3814 = vmatprep.subr.mxu0 0.0
  %3815 = vmatpush1.msra.mxu0 0.0
  %3816 = vmatprep.subr.mxu0 0.0
  %3817 = vmatpush1.msra.mxu0 0.0
  %3818 = vmatprep.subr.mxu0 0.0
  %3819 = vmatpush1.msra.mxu0 0.0
  %3820 = vmatprep.subr.mxu0 0.0
  %3821 = vmatpush1.msra.mxu0 0.0
  %3822 = vmatprep.subr.mxu0 0.0
  %3823 = vmatpush1.msra.mxu0 0.0
  %3824 = vmatprep.subr.mxu0 0.0
  %3825 = vmatpush1.msra.mxu0 0.0
  %3826 = vmatprep.subr.mxu0 0.0
  %3827 = vmatpush1.msra.mxu0 0.0
  %3828 = vmatprep.subr.mxu0 0.0
  %3829 = vmatpush1.msra.mxu0 0.0
  %3830 = vmatprep.subr.mxu0 0.0
  %3831 = vmatpush1.msra.mxu0 0.0
  %3832 = vmatprep.mubr.f32.mxu0 %v3143
  %3833 = vmatmul.mubr.f32.gmra.mrb[0].mxu0 %v3077
  %v3834 = vpop.f32.mrb[0].mxu0
  %v3835 = vadd.f32 %v3104, %v3834
  %v3836 = vpop.f32.mrb[0].mxu0
  %v3837 = vadd.f32 %v3104, %v3836
  %3838 = vmatprep.mubr.f32.mxu0 %v3146
  %3839 = vmatmul.mubr.f32.gmra.mrb[0].mxu0 %v3079
  %v3840 = vpop.f32.mrb[0].mxu0
  %v3841 = vadd.f32 %v3109, %v3840
  %v3842 = vpop.f32.mrb[0].mxu0
  %v3843 = vadd.f32 %v3109, %v3842
  %3844 = vmatprep.mubr.f32.mxu0 %v3149
  %3845 = vmatmul.mubr.f32.gmra.mrb[0].mxu0 %v3081
  %v3846 = vpop.f32.mrb[0].mxu0
  %v3847 = vadd.f32 %v3114, %v3846
  %v3848 = vpop.f32.mrb[0].mxu0
  %v3849 = vadd.f32 %v3114, %v3848
  %3850 = vmatprep.mubr.f32.mxu0 %v3152
  %3851 = vmatmul.mubr.f32.gmra.mrb[0].mxu0 %v3083
  %v3852 = vpop.f32.mrb[0].mxu0
  %v3853 = vadd.f32 %v3119, %v3852
  %v3854 = vpop.f32.mrb[0].mxu0
  %v3855 = vadd.f32 %v3119, %v3854
  %3856 = vmatprep.mubr.f32.mxu0 %v3155
  %3857 = vmatmul.mubr.f32.gmra.mrb[0].mxu0 %v3085
  %v3858 = vpop.f32.mrb[0].mxu0
  %v3859 = vadd.f32 %v3124, %v3858
  %v3860 = vpop.f32.mrb[0].mxu0
  %v3861 = vadd.f32 %v3124, %v3860
  %3862 = vmatprep.mubr.f32.mxu0 %v3158
  %3863 = vmatmul.mubr.f32.gmra.mrb[0].mxu0 %v3087
  %v3864 = vpop.f32.mrb[0].mxu0
  %v3865 = vadd.f32 %v3129, %v3864
  %v3866 = vpop.f32.mrb[0].mxu0
  %v3867 = vadd.f32 %v3129, %v3866
  %3868 = vmatprep.mubr.f32.mxu0 %v3161
  %3869 = vmatmul.mubr.f32.gmra.mrb[0].mxu0 %v3089
  %v3870 = vpop.f32.mrb[0].mxu0
  %v3871 = vadd.f32 %v3134, %v3870
  %v3872 = vpop.f32.mrb[0].mxu0
  %v3873 = vadd.f32 %v3134, %v3872
  %3874 = vmatprep.mubr.f32.mxu0 %v3164
  %3875 = vmatmul.mubr.f32.gmra.mrb[0].mxu0 %v3091
  %v3876 = vpop.f32.mrb[0].mxu0
  %v3877 = vadd.f32 %v3139, %v3876
  %v3878 = vpop.f32.mrb[0].mxu0
  %v3879 = vadd.f32 %v3139, %v3878
  %3880 = vdwg.mxu0
  %v3881 = vtanh.pop %v3270
  %v3882 = vtanh.pop %v3272
  %v3883 = vtanh.pop %v3383
  %v3884 = vtanh.pop %v3385
  %v3885 = vtanh.pop %v3496
  %v3886 = vtanh.pop %v3498
  %v3887 = vtanh.pop %v3609
  %v3888 = vtanh.pop %v3611
  %v3889 = vtanh.pop %v3722
  %v3890 = vtanh.pop %v3724
  %v3891 = vtanh.pop %v3835
  %v3892 = vtanh.pop %v3837
  %v3893 = vtanh.pop %v3276
  %v3894 = vtanh.pop %v3278
  %v3895 = vtanh.pop %v3389
  %v3896 = vtanh.pop %v3391
  %v3897 = vtanh.pop %v3502
  %v3898 = vtanh.pop %v3504
  %v3899 = vtanh.pop %v3615
  %v3900 = vtanh.pop %v3617
  %v3901 = vtanh.pop %v3728
  %v3902 = vtanh.pop %v3730
  %v3903 = vtanh.pop %v3841
  %v3904 = vtanh.pop %v3843
  %v3905 = vtanh.pop %v3282
  %v3906 = vtanh.pop %v3284
  %v3907 = vtanh.pop %v3395
  %v3908 = vtanh.pop %v3397
  %v3909 = vtanh.pop %v3508
  %v3910 = vtanh.pop %v3510
  %v3911 = vtanh.pop %v3621
  %v3912 = vtanh.pop %v3623
  %v3913 = vtanh.pop %v3734
  %v3914 = vtanh.pop %v3736
  %v3915 = vtanh.pop %v3847
  %v3916 = vtanh.pop %v3849
  %v3917 = vtanh.pop %v3288
  %v3918 = vtanh.pop %v3290
  %v3919 = vtanh.pop %v3401
  %v3920 = vtanh.pop %v3403
  %v3921 = vtanh.pop %v3514
  %v3922 = vtanh.pop %v3516
  %v3923 = vtanh.pop %v3627
  %v3924 = vtanh.pop %v3629
  %v3925 = vtanh.pop %v3740
  %v3926 = vtanh.pop %v3742
  %v3927 = vtanh.pop %v3853
  %v3928 = vtanh.pop %v3855
  %v3929 = vtanh.pop %v3294
  %v3930 = vtanh.pop %v3296
  %v3931 = vtanh.pop %v3407
  %v3932 = vtanh.pop %v3409
  %v3933 = vtanh.pop %v3520
  %v3934 = vtanh.pop %v3522
  %v3935 = vtanh.pop %v3633
  %v3936 = vtanh.pop %v3635
  %v3937 = vtanh.pop %v3746
  %v3938 = vtanh.pop %v3748
  %v3939 = vtanh.pop %v3859
  %v3940 = vtanh.pop %v3861
  %v3941 = vtanh.pop %v3300
  %v3942 = vtanh.pop %v3302
  %v3943 = vtanh.pop %v3413
  %v3944 = vtanh.pop %v3415
  %v3945 = vtanh.pop %v3526
  %v3946 = vtanh.pop %v3528
  %v3947 = vtanh.pop %v3639
  %v3948 = vtanh.pop %v3641
  %v3949 = vtanh.pop %v3752
  %v3950 = vtanh.pop %v3754
  %v3951 = vtanh.pop %v3865
  %v3952 = vtanh.pop %v3867
  %v3953 = vtanh.pop %v3306
  %v3954 = vtanh.pop %v3308
  %v3955 = vtanh.pop %v3419
  %v3956 = vtanh.pop %v3421
  %v3957 = vtanh.pop %v3532
  %v3958 = vtanh.pop %v3534
  %v3959 = vtanh.pop %v3645
  %v3960 = vtanh.pop %v3647
  %v3961 = vtanh.pop %v3758
  %v3962 = vtanh.pop %v3760
  %v3963 = vtanh.pop %v3871
  %v3964 = vtanh.pop %v3873
  %v3965 = vtanh.pop %v3312
  %v3966 = vtanh.pop %v3314
  %v3967 = vtanh.pop %v3425
  %v3968 = vtanh.pop %v3427
  %v3969 = vtanh.pop %v3538
  %v3970 = vtanh.pop %v3540
  %v3971 = vtanh.pop %v3651
  %v3972 = vtanh.pop %v3653
  %v3973 = vtanh.pop %v3764
  %v3974 = vtanh.pop %v3766
  %v3975 = vtanh.pop %v3877
  %v3976 = vtanh.pop %v3879
  %v3977 = vmax.f32 %v3881, %v3883
  %v3978 = vmax.f32 %v3882, %v3884
  %v3979 = vmax.f32 %v3893, %v3895
  %v3980 = vmax.f32 %v3894, %v3896
  %v3981 = vmax.f32 %v3905, %v3907
  %v3982 = vmax.f32 %v3906, %v3908
  %v3983 = vmax.f32 %v3917, %v3919
  %v3984 = vmax.f32 %v3918, %v3920
  %v3985 = vmax.f32 %v3929, %v3931
  %v3986 = vmax.f32 %v3930, %v3932
  %v3987 = vmax.f32 %v3941, %v3943
  %v3988 = vmax.f32 %v3942, %v3944
  %v3989 = vmax.f32 %v3953, %v3955
  %v3990 = vmax.f32 %v3954, %v3956
  %v3991 = vmax.f32 %v3965, %v3967
  %v3992 = vmax.f32 %v3966, %v3968
  %v3993 = vmax.f32 %v3977, %v3885
  %v3994 = vmax.f32 %v3978, %v3886
  %v3995 = vmax.f32 %v3979, %v3897
  %v3996 = vmax.f32 %v3980, %v3898
  %v3997 = vmax.f32 %v3981, %v3909
  %v3998 = vmax.f32 %v3982, %v3910
  %v3999 = vmax.f32 %v3983, %v3921
  %v4000 = vmax.f32 %v3984, %v3922
  %v4001 = vmax.f32 %v3985, %v3933
  %v4002 = vmax.f32 %v3986, %v3934
  %v4003 = vmax.f32 %v3987, %v3945
  %v4004 = vmax.f32 %v3988, %v3946
  %v4005 = vmax.f32 %v3989, %v3957
  %v4006 = vmax.f32 %v3990, %v3958
  %v4007 = vmax.f32 %v3991, %v3969
  %v4008 = vmax.f32 %v3992, %v3970
  %v4009 = vmax.f32 %v3993, %v3887
  %v4010 = vmax.f32 %v3994, %v3888
  %v4011 = vmax.f32 %v3995, %v3899
  %v4012 = vmax.f32 %v3996, %v3900
  %v4013 = vmax.f32 %v3997, %v3911
  %v4014 = vmax.f32 %v3998, %v3912
  %v4015 = vmax.f32 %v3999, %v3923
  %v4016 = vmax.f32 %v4000, %v3924
  %v4017 = vmax.f32 %v4001, %v3935
  %v4018 = vmax.f32 %v4002, %v3936
  %v4019 = vmax.f32 %v4003, %v3947
  %v4020 = vmax.f32 %v4004, %v3948
  %v4021 = vmax.f32 %v4005, %v3959
  %v4022 = vmax.f32 %v4006, %v3960
  %v4023 = vmax.f32 %v4007, %v3971
  %v4024 = vmax.f32 %v4008, %v3972
  %v4025 = vmax.f32 %v4009, %v3889
  %v4026 = vmax.f32 %v4010, %v3890
  %v4027 = vmax.f32 %v4011, %v3901
  %v4028 = vmax.f32 %v4012, %v3902
  %v4029 = vmax.f32 %v4013, %v3913
  %v4030 = vmax.f32 %v4014, %v3914
  %v4031 = vmax.f32 %v4015, %v3925
  %v4032 = vmax.f32 %v4016, %v3926
  %v4033 = vmax.f32 %v4017, %v3937
  %v4034 = vmax.f32 %v4018, %v3938
  %v4035 = vmax.f32 %v4019, %v3949
  %v4036 = vmax.f32 %v4020, %v3950
  %v4037 = vmax.f32 %v4021, %v3961
  %v4038 = vmax.f32 %v4022, %v3962
  %v4039 = vmax.f32 %v4023, %v3973
  %v4040 = vmax.f32 %v4024, %v3974
  %v4041 = vmax.f32 %v4025, %v3891
  %v4042 = vmax.f32 %v4026, %v3892
  %v4043 = vmax.f32 %v4027, %v3903
  %v4044 = vmax.f32 %v4028, %v3904
  %v4045 = vmax.f32 %v4029, %v3915
  %v4046 = vmax.f32 %v4030, %v3916
  %v4047 = vmax.f32 %v4031, %v3927
  %v4048 = vmax.f32 %v4032, %v3928
  %v4049 = vmax.f32 %v4033, %v3939
  %v4050 = vmax.f32 %v4034, %v3940
  %v4051 = vmax.f32 %v4035, %v3951
  %v4052 = vmax.f32 %v4036, %v3952
  %v4053 = vmax.f32 %v4037, %v3963
  %v4054 = vmax.f32 %v4038, %v3964
  %v4055 = vmax.f32 %v4039, %v3975
  %v4056 = vmax.f32 %v4040, %v3976
  %v4057 = vld [vmem:[%s3] sm:$0xff]
  %v4058 = vld [vmem:[%s3 + $0x8] sm:$0xff]
  %v4059 = vld [vmem:[%s3 + $0x10] sm:$0xff]
  %v4060 = vld [vmem:[%s3 + $0x18] sm:$0xff]
  %v4061 = vld [vmem:[%s4] sm:$0xff]
  %v4062 = vld [vmem:[%s4 + $0x8] sm:$0xff]
  %v4063 = vld [vmem:[%s4 + $0x10] sm:$0xff]
  %v4064 = vld [vmem:[%s4 + $0x18] sm:$0xff]
  %4066 = vset.pattern.permute.xlu0 0
  %4067 = vperm.xlu0 %4066, %v4061
  %v4068 = vpop.permute.xlu0 %4067
  %4071 = vset.pattern.permute.xlu0 0
  %4072 = vperm.xlu0 %4071, %v4062
  %v4073 = vpop.permute.xlu0 %4072
  %4076 = vset.pattern.permute.xlu0 0
  %4077 = vperm.xlu0 %4076, %v4063
  %v4078 = vpop.permute.xlu0 %4077
  %4081 = vset.pattern.permute.xlu0 0
  %4082 = vperm.xlu0 %4081, %v4064
  %v4083 = vpop.permute.xlu0 %4082
  %vm4085 = vcmask 523264
  %v4087 = vsel %vm4085, %v4057, 0
  %v4090 = vsel %vm4085, %v4058, 0
  %v4093 = vsel %vm4085, %v4059, 0
  %v4096 = vsel %vm4085, %v4060, 0
  %4098 = vmatprep.subr.mxu0 %v4042
  %4099 = vmatpush1.msra.mxu0 %v4041
  %4100 = vmatprep.subr.mxu0 %v4044
  %4101 = vmatpush1.msra.mxu0 %v4043
  %4102 = vmatprep.subr.mxu0 %v4046
  %4103 = vmatpush1.msra.mxu0 %v4045
  %4104 = vmatprep.subr.mxu0 %v4048
  %4105 = vmatpush1.msra.mxu0 %v4047
  %4106 = vmatprep.subr.mxu0 %v4050
  %4107 = vmatpush1.msra.mxu0 %v4049
  %4108 = vmatprep.subr.mxu0 %v4052
  %4109 = vmatpush1.msra.mxu0 %v4051
  %4110 = vmatprep.subr.mxu0 %v4054
  %4111 = vmatpush1.msra.mxu0 %v4053
  %4112 = vmatprep.subr.mxu0 %v4056
  %4113 = vmatpush1.msra.mxu0 %v4055
  %4114 = vmatprep.subr.mxu0 0.0
  %4115 = vmatpush1.msra.mxu0 0.0
  %4116 = vmatprep.subr.mxu0 0.0
  %4117 = vmatpush1.msra.mxu0 0.0
  %4118 = vmatprep.subr.mxu0 0.0
  %4119 = vmatpush1.msra.mxu0 0.0
  %4120 = vmatprep.subr.mxu0 0.0
  %4121 = vmatpush1.msra.mxu0 0.0
  %4122 = vmatprep.subr.mxu0 0.0
  %4123 = vmatpush1.msra.mxu0 0.0
  %4124 = vmatprep.subr.mxu0 0.0
  %4125 = vmatpush1.msra.mxu0 0.0
  %4126 = vmatprep.subr.mxu0 0.0
  %4127 = vmatpush1.msra.mxu0 0.0
  %4128 = vmatprep.subr.mxu0 0.0
  %4129 = vmatpush1.msra.mxu0 0.0
  %4130 = vmatprep.subr.mxu0 0.0
  %4131 = vmatpush1.msra.mxu0 0.0
  %4132 = vmatprep.subr.mxu0 0.0
  %4133 = vmatpush1.msra.mxu0 0.0
  %4134 = vmatprep.subr.mxu0 0.0
  %4135 = vmatpush1.msra.mxu0 0.0
  %4136 = vmatprep.subr.mxu0 0.0
  %4137 = vmatpush1.msra.mxu0 0.0
  %4138 = vmatprep.subr.mxu0 0.0
  %4139 = vmatpush1.msra.mxu0 0.0
  %4140 = vmatprep.subr.mxu0 0.0
  %4141 = vmatpush1.msra.mxu0 0.0
  %4142 = vmatprep.subr.mxu0 0.0
  %4143 = vmatpush1.msra.mxu0 0.0
  %4144 = vmatprep.subr.mxu0 0.0
  %4145 = vmatpush1.msra.mxu0 0.0
  %4146 = vmatprep.subr.mxu0 0.0
  %4147 = vmatpush1.msra.mxu0 0.0
  %4148 = vmatprep.subr.mxu0 0.0
  %4149 = vmatpush1.msra.mxu0 0.0
  %4150 = vmatprep.subr.mxu0 0.0
  %4151 = vmatpush1.msra.mxu0 0.0
  %4152 = vmatprep.subr.mxu0 0.0
  %4153 = vmatpush1.msra.mxu0 0.0
  %4154 = vmatprep.subr.mxu0 0.0
  %4155 = vmatpush1.msra.mxu0 0.0
  %4156 = vmatprep.subr.mxu0 0.0
  %4157 = vmatpush1.msra.mxu0 0.0
  %4158 = vmatprep.subr.mxu0 0.0
  %4159 = vmatpush1.msra.mxu0 0.0
  %4160 = vmatprep.subr.mxu0 0.0
  %4161 = vmatpush1.msra.mxu0 0.0
  %4162 = vmatprep.mubr.f32.mxu0 0.0
  %4163 = vmatmul.mubr.f32.gmra.mrb[0].mxu0 %v4087
  %v4164 = vpop.f32.mrb[0].mxu0
  %v4165 = vadd.f32 %v4068, %v4164
  %v4166 = vpop.f32.mrb[0].mxu0
  %v4167 = vadd.f32 %v4068, %v4166
  %4168 = vmatprep.mubr.f32.mxu0 0.0
  %4169 = vmatmul.mubr.f32.gmra.mrb[0].mxu0 %v4090
  %v4170 = vpop.f32.mrb[0].mxu0
  %v4171 = vadd.f32 %v4073, %v4170
  %v4172 = vpop.f32.mrb[0].mxu0
  %v4173 = vadd.f32 %v4073, %v4172
  %4174 = vmatprep.mubr.f32.mxu0 0.0
  %4175 = vmatmul.mubr.f32.gmra.mrb[0].mxu0 %v4093
  %v4176 = vpop.f32.mrb[0].mxu0
  %v4177 = vadd.f32 %v4078, %v4176
  %v4178 = vpop.f32.mrb[0].mxu0
  %v4179 = vadd.f32 %v4078, %v4178
  %4180 = vmatprep.mubr.f32.mxu0 0.0
  %4181 = vmatmul.mubr.f32.gmra.mrb[0].mxu0 %v4096
  %v4182 = vpop.f32.mrb[0].mxu0
  %v4183 = vadd.f32 %v4083, %v4182
  %v4184 = vpop.f32.mrb[0].mxu0
  %v4185 = vadd.f32 %v4083, %v4184
  %4186 = vdwg.mxu0
  %v4187 = vtanh.pop %v4165
  %v4188 = vtanh.pop %v4167
  %v4189 = vtanh.pop %v4171
  %v4190 = vtanh.pop %v4173
  %v4191 = vtanh.pop %v4177
  %v4192 = vtanh.pop %v4179
  %v4193 = vtanh.pop %v4183
  %v4194 = vtanh.pop %v4185
  %v4195 = vmul.f32 %v4187, %v4188
  %v4196 = vmul.f32 %v4189, %v4190
  %v4197 = vmul.f32 %v4191, %v4192
  %v4198 = vmul.f32 %v4193, %v4194
  %v4199 = vld [vmem:[%s5] sm:$0x1]
  %s4200 = sld [smem:[#allocation2]]
  %v4201 = vstv %s4200
  %vm4202 = vcmask 261120
  %v4204 = vsel %vm4202, %v4199, 0
  %4206 = vmatprep.subr.mxu0 0.0
  %4207 = vmatpush1.msra.mxu0 %v4195
  %4208 = vmatprep.subr.mxu0 0.0
  %4209 = vmatpush1.msra.mxu0 %v4196
  %4210 = vmatprep.subr.mxu0 0.0
  %4211 = vmatpush1.msra.mxu0 %v4197
  %4212 = vmatprep.subr.mxu0 0.0
  %4213 = vmatpush1.msra.mxu0 %v4198
  %4214 = vmatprep.subr.mxu0 0.0
  %4215 = vmatpush1.msra.mxu0 0.0
  %4216 = vmatprep.subr.mxu0 0.0
  %4217 = vmatpush1.msra.mxu0 0.0
  %4218 = vmatprep.subr.mxu0 0.0
  %4219 = vmatpush1.msra.mxu0 0.0
  %4220 = vmatprep.subr.mxu0 0.0
  %4221 = vmatpush1.msra.mxu0 0.0
  %4222 = vmatprep.subr.mxu0 0.0
  %4223 = vmatpush1.msra.mxu0 0.0
  %4224 = vmatprep.subr.mxu0 0.0
  %4225 = vmatpush1.msra.mxu0 0.0
  %4226 = vmatprep.subr.mxu0 0.0
  %4227 = vmatpush1.msra.mxu0 0.0
  %4228 = vmatprep.subr.mxu0 0.0
  %4229 = vmatpush1.msra.mxu0 0.0
  %4230 = vmatprep.subr.mxu0 0.0
  %4231 = vmatpush1.msra.mxu0 0.0
  %4232 = vmatprep.subr.mxu0 0.0
  %4233 = vmatpush1.msra.mxu0 0.0
  %4234 = vmatprep.subr.mxu0 0.0
  %4235 = vmatpush1.msra.mxu0 0.0
  %4236 = vmatprep.subr.mxu0 0.0
  %4237 = vmatpush1.msra.mxu0 0.0
  %4238 = vmatprep.subr.mxu0 0.0
  %4239 = vmatpush1.msra.mxu0 0.0
  %4240 = vmatprep.subr.mxu0 0.0
  %4241 = vmatpush1.msra.mxu0 0.0
  %4242 = vmatprep.subr.mxu0 0.0
  %4243 = vmatpush1.msra.mxu0 0.0
  %4244 = vmatprep.subr.mxu0 0.0
  %4245 = vmatpush1.msra.mxu0 0.0
  %4246 = vmatprep.subr.mxu0 0.0
  %4247 = vmatpush1.msra.mxu0 0.0
  %4248 = vmatprep.subr.mxu0 0.0
  %4249 = vmatpush1.msra.mxu0 0.0
  %4250 = vmatprep.subr.mxu0 0.0
  %4251 = vmatpush1.msra.mxu0 0.0
  %4252 = vmatprep.subr.mxu0 0.0
  %4253 = vmatpush1.msra.mxu0 0.0
  %4254 = vmatprep.subr.mxu0 0.0
  %4255 = vmatpush1.msra.mxu0 0.0
  %4256 = vmatprep.subr.mxu0 0.0
  %4257 = vmatpush1.msra.mxu0 0.0
  %4258 = vmatprep.subr.mxu0 0.0
  %4259 = vmatpush1.msra.mxu0 0.0
  %4260 = vmatprep.subr.mxu0 0.0
  %4261 = vmatpush1.msra.mxu0 0.0
  %4262 = vmatprep.subr.mxu0 0.0
  %4263 = vmatpush1.msra.mxu0 0.0
  %4264 = vmatprep.subr.mxu0 0.0
  %4265 = vmatpush1.msra.mxu0 0.0
  %4266 = vmatprep.subr.mxu0 0.0
  %4267 = vmatpush1.msra.mxu0 0.0
  %4268 = vmatprep.subr.mxu0 0.0
  %4269 = vmatpush1.msra.mxu0 0.0
  %4270 = vmatprep.mubr.f32.mxu0 0.0
  %4271 = vmatmul.mubr.f32.gmra.mrb[0].mxu0 %v4204
  %v4272 = vpop.f32.mrb[0].mxu0
  %v4273 = vadd.f32 %v4201, %v4272
  %v4274 = vpop.f32.mrb[0].mxu0
  %4275 = vdwg.mxu0
  %v4276 = vxor.u32 %v4273, 2147483648
  %v4277 = vmul.f32 %v4276, 1.442695
  %v4278 = vpow.pop %v4277
  %v4279 = vadd.f32 %v4278, 1.0
  %v4280 = vrcp.pop %v4279
  %v4281 = vmul.f32 1.0, %v4280
  %4282 = vst [vmem:[%s7] sm:$0x1] %v4281
  // Predicated region
  $region30: #{siames_forward.1} parent=0 // pred_check
    _
  $region31: #{siames_forward.1} parent=0 // pred_check_branch
    %4284 = sbr.rel (0) target = $region33
  $region32: #{siames_forward.1} parent=0 // pred_region
    _
  $region33: #{siames_forward.1} parent=0 // pred_fallthru
    _
  // Predicated region
  $region34: #{siames_forward.1} parent=0 // pred_check
    _
  $region35: #{siames_forward.1} parent=0 // pred_check_branch
    %4286 = sbr.rel (0) target = $region37
  $region36: #{siames_forward.1} parent=0 // pred_region
    _
  $region37: #{siames_forward.1} parent=0 // pred_fallthru
    _

</llo_original>
